<compile_context>
chip_gen: v7x
topology: tpu7x:2x2x1
jax: 0.10.0
libtpu: 0.0.40
codegen_flags: <defaults>
</compile_context>

<pallas_src>
import functools
import math

import jax
import jax.numpy as jnp
import numpy as np
from jax.experimental import pallas as pl
from jax.experimental.pallas import tpu as pltpu


# ----- module hyper-parameters fixed by the PyTorch spec --------------------
C_IN, OC1, KH1 = 3, 10, 4          # nn.Conv2d(3, 10, 4)  (square kernel)
OC2, K2 = 10, 3                    # nn.Conv2d(10, 10, 3)
POOL = 3                           # nn.MaxPool2d(3), used twice
HID, NCLS = 20, 10                 # nn.Linear(40, 20), nn.Linear(20, 10)

# ----- packed-weight / staging layout (shared by prepare_params & kernel) ---
CP1 = 8    # conv1 slots per tap : 3 data ch + 1 all-ones (bias) + 4 zero
CP2 = 16   # conv2/lin1 slots/tap: 10 data ch + 1 all-ones (bias) + 5 finite-pad
PACK_ROWS, PACK_COLS = 64, 256
R_C1, R_C2, R_L1, R_L2 = 0, 16, 32, 52


def _round_up(v, m):
    return ((v + m - 1) // m) * m


def _pick_batch_tile(n):
    """Largest divisor of n (<= 8) that still leaves >= 2 grid steps (v7x)."""
    for bt in (8, 4, 2):
        if n % bt == 0 and n // bt >= 2:
            return bt
    return 1


# ------------------------------ fused kernel -------------------------------- #

def _simple_cnn_kernel(x_ref, w_ref, o_ref,
                       s1_ref, a1_ref, p1_ref, s2_ref, a2_ref, p2_ref, s3_ref,
                       *, B_TILE, W, W1, W2, W3, W4, W5, off_lin):
    """conv1 -> pool1 -> conv2 -> pool2 -> lin1+ReLU -> lin2 for B_TILE images.

    Activations live as (channels, flat_spatial) slabs with flat = y*W + x on
    the 128-lane axis ("spread" domain).  Each layer is evaluated as ONE MXU
    contraction against an im2col stack staged in VMEM scratch; only lanes
    corresponding to valid output positions are meaningful, and the working
    widths W1..W5 guarantee valid positions never read out of the previous
    slab (asserted statically in the wrapper).
    """
    f32 = jnp.float32
    NT1 = KH1 * KH1
    FSP = len(off_lin)

    # Constant pad rows of the pool staging slabs.  Rewritten every grid step
    # (a handful of vreg stores) so the kernel stays correct when the
    # "parallel" grid is sharded across TensorCores (no program_id==0 init).
    # Row OC is an all-ones bias row (conv2 / lin1 biases are folded into the
    # packed weights); the remaining rows are zero so padded K columns add 0.
    p1_ref[pl.ds(OC1, 1), :] = jnp.ones((1, W2), f32)
    p1_ref[pl.ds(OC1 + 1, CP2 - OC1 - 1), :] = jnp.zeros((CP2 - OC1 - 1, W2), f32)
    p2_ref[pl.ds(OC2, 1), :] = jnp.ones((1, W4), f32)
    p2_ref[pl.ds(OC2 + 1, CP2 - OC2 - 1), :] = jnp.zeros((CP2 - OC2 - 1, W4), f32)

    # Packed weights: one lane-dense (64, 256) array, sliced once per step.
    w1 = w_ref[pl.ds(R_C1, OC1), pl.ds(0, NT1 * CP1)]          # (10, 128)
    w2 = w_ref[pl.ds(R_C2, OC2), pl.ds(0, K2 * K2 * CP2)]      # (10, 144)
    wl1 = w_ref[pl.ds(R_L1, HID), pl.ds(0, FSP * CP2)]         # (20, 64)
    wl2 = w_ref[pl.ds(R_L2, NCLS), pl.ds(0, HID)]              # (10, 20)
    bl2 = w_ref[pl.ds(R_L2, NCLS), pl.ds(HID, 1)]              # (10, 1)

    for im in range(B_TILE):
        # -- conv1: in-kernel im2col (taps on 8-aligned sublane slots) + ONE
        #    K=128 dot.  Bias arrives via the all-ones input channel (slot 3).
        for i in range(KH1):
            for j in range(KH1):
                t = i * KH1 + j
                s1_ref[pl.ds(t * CP1, CP1), :] = x_ref[im, :, pl.ds(i * W + j, W1)]
        a1_ref[...] = jnp.dot(w1, s1_ref[...], preferred_element_type=f32)

        # -- pool1: elementwise max of ref-sliced shifted windows (VPU only).
        m1 = a1_ref[:, pl.ds(0, W2)]
        for dy in range(POOL):
            for dx in range(POOL):
                if dy or dx:
                    m1 = jnp.maximum(m1, a1_ref[:, pl.ds(dy * W + dx, W2)])
        p1_ref[pl.ds(0, OC1), :] = m1

        # -- conv2 on the stride-POOL spread grid: stack 9 taps + ONE K=144 dot.
        for di in range(K2):
            for dj in range(K2):
                d = di * K2 + dj
                s2_ref[pl.ds(d * CP2, CP2), :] = \
                    p1_ref[:, pl.ds(POOL * di * W + POOL * dj, W3)]
        a2_ref[...] = jnp.dot(w2, s2_ref[...], preferred_element_type=f32)

        # -- pool2.
        m2 = a2_ref[:, pl.ds(0, W4)]
        for dy in range(POOL):
            for dx in range(POOL):
                if dy or dx:
                    m2 = jnp.maximum(m2, a2_ref[:, pl.ds(POOL * dy * W + POOL * dx, W4)])
        p2_ref[pl.ds(0, OC2), :] = m2

        # -- flatten + linear1 (+folded bias) + ReLU: one K=64 dot.
        for k in range(FSP):
            s3_ref[pl.ds(k * CP2, CP2), :] = p2_ref[:, pl.ds(off_lin[k], W5)]
        h1 = jnp.maximum(jnp.dot(wl1, s3_ref[...], preferred_element_type=f32), 0.0)

        # -- linear2 -> lane-dense (NCLS, 128) tile; lane 0 holds the logits.
        #    Full-width unmasked store; the wrapper slices lane 0.
        o_ref[im] = jnp.dot(wl2, h1, preferred_element_type=f32) + bl2


# --------------------------- params & weight packing ------------------------ #

def init_params(key):
    """Deterministic init mirroring nn.Conv2d / nn.Linear default shapes."""
    def uniform(k, shape, fan_in):
        bound = 1.0 / math.sqrt(fan_in)
        return jax.random.uniform(k, shape, jnp.float32, -bound, bound)

    ks = jax.random.split(key, 8)
    return {
        "conv1_w": uniform(ks[0], (OC1, C_IN, KH1, KH1), C_IN * KH1 * KH1),
        "conv1_b": uniform(ks[1], (OC1,), C_IN * KH1 * KH1),
        "conv2_w": uniform(ks[2], (OC2, OC1, K2, K2), OC1 * K2 * K2),
        "conv2_b": uniform(ks[3], (OC2,), OC1 * K2 * K2),
        "lin1_w": uniform(ks[4], (HID, 40), 40),   # PyTorch Linear: (out, in)
        "lin1_b": uniform(ks[5], (HID,), 40),
        "lin2_w": uniform(ks[6], (NCLS, HID), HID),
        "lin2_b": uniform(ks[7], (NCLS,), HID),
    }


def prepare_params(params):
    """One-time re-layout of ALL weights+biases into a single packed array."""
    w1 = np.asarray(params["conv1_w"]); b1 = np.asarray(params["conv1_b"])
    w2 = np.asarray(params["conv2_w"]); b2 = np.asarray(params["conv2_b"])
    l1w = np.asarray(params["lin1_w"]); l1b = np.asarray(params["lin1_b"])
    l2w = np.asarray(params["lin2_w"]); l2b = np.asarray(params["lin2_b"])

    oc1, c, kh1, _ = w1.shape
    oc2, ic2, k2, _ = w2.shape
    hid, feat = l1w.shape
    ncls = l2w.shape[0]
    fsp = feat // oc2

    assert (oc1, c, kh1, oc2, ic2, k2, hid, ncls) == \
           (OC1, C_IN, KH1, OC2, OC1, K2, HID, NCLS)
    assert c < CP1 and ic2 < CP2 and oc2 < CP2
    assert kh1 * kh1 * CP1 <= PACK_COLS and k2 * k2 * CP2 <= PACK_COLS
    assert fsp * CP2 <= PACK_COLS and hid + 1 <= PACK_COLS
    assert R_L2 + ncls <= PACK_ROWS

    wpk = np.zeros((PACK_ROWS, PACK_COLS), np.float32)
    # conv1: column (tap, slot) = tap*CP1 + slot; bias via the all-ones input
    # channel (slot C_IN) of tap 0.
    for i in range(kh1):
        for j in range(kh1):
            t = i * kh1 + j
            wpk[R_C1:R_C1 + oc1, t * CP1: t * CP1 + c] = w1[:, :, i, j]
    wpk[R_C1:R_C1 + oc1, 0 * CP1 + c] = b1
    # conv2: bias via the all-ones pad row (sublane OC1) of the pool1 slab.
    for di in range(k2):
        for dj in range(k2):
            d = di * k2 + dj
            wpk[R_C2:R_C2 + oc2, d * CP2: d * CP2 + ic2] = w2[:, :, di, dj]
    wpk[R_C2:R_C2 + oc2, 0 * CP2 + ic2] = b2
    # linear1: torch flatten is channel-major (feature = c*FSP + k); bias via
    # the all-ones pad row (sublane OC2) of the pool2 slab.
    for k in range(fsp):
        wpk[R_L1:R_L1 + hid, k * CP2: k * CP2 + oc2] = l1w[:, k::fsp]
    wpk[R_L1:R_L1 + hid, 0 * CP2 + oc2] = l1b
    # linear2: bias sits in the column right after the weights.
    wpk[R_L2:R_L2 + ncls, 0:hid] = l2w
    wpk[R_L2:R_L2 + ncls, hid] = l2b
    return jnp.asarray(wpk)


# --------------------------------- forward ---------------------------------- #

@jax.jit
def simple_cnn_forward(wpk, x):
    N, C, H, W = x.shape
    assert C == C_IN

    # Spread-domain geometry (all static).
    OH1, OW1 = H - KH1 + 1, W - KH1 + 1
    PH1, PW1 = OH1 // POOL, OW1 // POOL
    OH2, OW2 = PH1 - K2 + 1, PW1 - K2 + 1
    FH, FW = OH2 // POOL, OW2 // POOL
    FSP = FH * FW
    assert FSP * OC2 == 40, "input spatial size inconsistent with Linear(40, 20)"
    off_lin = tuple(POOL * POOL * ry * W + POOL * POOL * rx
                    for ry in range(FH) for rx in range(FW))

    # Largest static lane shift used by each stage, and working widths that
    # shrink as shifts accumulate (each slab wide enough for the next stage's
    # largest shifted read) -- these asserts encode the "valid lanes never read
    # past the previous slab / garbage lanes stay finite" invariant.
    s_c1 = (KH1 - 1) * W + (KH1 - 1)
    s_p1 = (POOL - 1) * W + (POOL - 1)
    s_c2 = POOL * (K2 - 1) * W + POOL * (K2 - 1)
    s_p2 = POOL * (POOL - 1) * W + POOL * (POOL - 1)
    W5 = 128
    W4 = _round_up(W5 + max(off_lin), 128)
    W3 = _round_up(W4 + s_p2, 128)
    W2 = _round_up(W3 + s_c2, 128)
    W1 = _round_up(W2 + s_p1, 128)
    W0 = max(_round_up(W1 + s_c1, 128), _round_up(H * W, 128))
    assert W0 >= W1 + s_c1 and W1 >= W2 + s_p1 and W2 >= W3 + s_c2
    assert W3 >= W4 + s_p2 and W4 >= W5 + max(off_lin)

    B_TILE = _pick_batch_tile(N)
    assert N % B_TILE == 0

    # Pre-pad the flattened image once in the wrapper (review item): channels
    # 0..2 = data, channel 3 = all-ones (carries the conv1 bias), 4..7 = zero;
    # lanes beyond H*W are zero.  One fused XLA op, nothing copied in-kernel.
    xf = x.astype(jnp.float32).reshape(N, C, H * W)
    xp = jnp.zeros((N, CP1, W0), jnp.float32)
    xp = xp.at[:, :C, :H * W].set(xf)
    xp = xp.at[:, C, :].set(1.0)

    kernel = functools.partial(_simple_cnn_kernel, B_TILE=B_TILE, W=W,
                               W1=W1, W2=W2, W3=W3, W4=W4, W5=W5,
                               off_lin=off_lin)

    flops = 2 * N * (OH1 * OW1 * OC1 * C_IN * KH1 * KH1
                     + OH2 * OW2 * OC2 * OC1 * K2 * K2
                     + FSP * OC2 * HID + HID * NCLS)
    bytes_accessed = 4 * (N * CP1 * W0 + PACK_ROWS * PACK_COLS + N * NCLS * 128)

    out = pl.pallas_call(
        kernel,
        out_shape=jax.ShapeDtypeStruct((N, NCLS, 128), jnp.float32),
        grid=(N // B_TILE,),
        in_specs=[
            pl.BlockSpec((B_TILE, CP1, W0), lambda n: (n, 0, 0)),
            pl.BlockSpec((PACK_ROWS, PACK_COLS), lambda n: (0, 0)),  # fetched once
        ],
        out_specs=pl.BlockSpec((B_TILE, NCLS, 128), lambda n: (n, 0, 0)),
        scratch_shapes=[
            pltpu.VMEM((KH1 * KH1 * CP1, W1), jnp.float32),  # conv1 im2col stack
            pltpu.VMEM((OC1, W1), jnp.float32),              # conv1 output slab
            pltpu.VMEM((CP2, W2), jnp.float32),              # pool1 slab (+bias/zero rows)
            pltpu.VMEM((K2 * K2 * CP2, W3), jnp.float32),    # conv2 im2col stack
            pltpu.VMEM((OC2, W3), jnp.float32),              # conv2 output slab
            pltpu.VMEM((CP2, W4), jnp.float32),              # pool2 slab (+bias/zero rows)
            pltpu.VMEM((FSP * CP2, W5), jnp.float32),        # flatten/lin1 stack
        ],
        compiler_params=pltpu.CompilerParams(
            dimension_semantics=("parallel",)),
        cost_estimate=pl.CostEstimate(flops=flops, transcendentals=0,
                                      bytes_accessed=bytes_accessed),
    )(xp, wpk)

    return out[:, :, 0]                     # lane 0 of each (NCLS, 128) tile


# ------------------------------ reference (jnp) ----------------------------- #

def reference_forward(params, x):
    def conv_ref(x, w, b):
        N, C, H, W = x.shape
        OC, _, KH, KW = w.shape
        OH, OW = H - KH + 1, W - KW + 1
        cols = [x[:, :, i:i + OH, j:j + OW] for i in range(KH) for j in range(KW)]
        patches = jnp.stack(cols, axis=2).transpose(0, 3, 4, 1, 2)
        patches = patches.reshape(N * OH * OW, C * KH * KW)
        out = patches @ w.reshape(OC, -1).T + b
        return out.reshape(N, OH, OW, OC).transpose(0, 3, 1, 2)

    def pool_ref(x, k):
        N, C, H, W = x.shape
        OH, OW = H // k, W // k
        x = x[:, :, :OH * k, :OW * k].reshape(N, C, OH, k, OW, k)
        return x.max(axis=(3, 5))

    x = conv_ref(x, params["conv1_w"], params["conv1_b"])
    x = pool_ref(x, POOL)
    x = conv_ref(x, params["conv2_w"], params["conv2_b"])
    x = pool_ref(x, POOL)
    x = x.reshape(x.shape[0], -1)
    x = jnp.maximum(x @ params["lin1_w"].T + params["lin1_b"], 0.0)
    x = x @ params["lin2_w"].T + params["lin2_b"]
    return x


# ---------------------------------- main ------------------------------------ #

if __name__ == "__main__":
    key = jax.random.PRNGKey(0)
    pkey, xkey = jax.random.split(key)
    params = init_params(pkey)
    wpk = prepare_params(params)            # one-time weight packing

    # Smallest input consistent with Linear(40, 20): 3x32x32 -> 10*2*2 = 40.
    x = jax.random.normal(xkey, (2, 3, 32, 32), dtype=jnp.float32)

    out = jax.block_until_ready(simple_cnn_forward(wpk, x))
    assert out.shape == (2, 10), out.shape

    ref = reference_forward(params, x)
    assert jnp.allclose(out, ref, rtol=1e-3, atol=1e-3), "mismatch vs reference"

    print("KERNEL_OK")
</pallas_src>

<mosaic_0001>
module attributes {stable_mosaic.version = 11 : i64} {
  func.func @_simple_cnn_kernel(%arg0: i32, %arg1: memref<1x8x1280xf32, #tpu.memory_space<vmem>>, %arg2: memref<64x256xf32, #tpu.memory_space<vmem>>, %arg3: memref<1x10x128xf32, #tpu.memory_space<vmem>>, %arg4: memref<128x1152xf32, #tpu.memory_space<vmem>>, %arg5: memref<10x1152xf32, #tpu.memory_space<vmem>>, %arg6: memref<16x1024xf32, #tpu.memory_space<vmem>>, %arg7: memref<144x768xf32, #tpu.memory_space<vmem>>, %arg8: memref<10x768xf32, #tpu.memory_space<vmem>>, %arg9: memref<16x512xf32, #tpu.memory_space<vmem>>, %arg10: memref<64x128xf32, #tpu.memory_space<vmem>>) attributes {dimension_semantics = [#tpu.dimension_semantics<parallel>], iteration_bounds = array<i64: 2>, scalar_prefetch = 0 : i64, scratch_operands = 7 : i64, tpu.core_type = #tpu.core_type<tc>, window_params = [{transform_indices = @transform_0, window_bounds = array<i64: 1, 8, 1280>}, {pipeline_mode = #tpu.pipeline_mode<synchronous>, transform_indices = @transform_1, window_bounds = array<i64: 64, 256>}, {transform_indices = @transform_2, window_bounds = array<i64: 1, 10, 128>}]} {
    %cst = arith.constant 1.000000e+00 : f32
    %0 = vector.broadcast %cst : f32 to vector<1x1024xf32>
    %c10 = arith.constant 10 : index
    %c0 = arith.constant 0 : index
    %1 = vector.load %arg6[%c10, %c0] : memref<16x1024xf32, #tpu.memory_space<vmem>>, vector<1x1024xf32>
    tpu.vector_store %arg6[%c10, %c0], %0 {strides = array<i32>} : memref<16x1024xf32, #tpu.memory_space<vmem>>, vector<1x1024xf32>,
    %cst_0 = arith.constant 0.000000e+00 : f32
    %2 = vector.broadcast %cst_0 : f32 to vector<5x1024xf32>
    %c11 = arith.constant 11 : index
    %c0_1 = arith.constant 0 : index
    %3 = vector.load %arg6[%c11, %c0_1] : memref<16x1024xf32, #tpu.memory_space<vmem>>, vector<5x1024xf32>
    tpu.vector_store %arg6[%c11, %c0_1], %2 {strides = array<i32>} : memref<16x1024xf32, #tpu.memory_space<vmem>>, vector<5x1024xf32>,
    %cst_2 = arith.constant 1.000000e+00 : f32
    %4 = vector.broadcast %cst_2 : f32 to vector<1x512xf32>
    %c10_3 = arith.constant 10 : index
    %c0_4 = arith.constant 0 : index
    %5 = vector.load %arg9[%c10_3, %c0_4] : memref<16x512xf32, #tpu.memory_space<vmem>>, vector<1x512xf32>
    tpu.vector_store %arg9[%c10_3, %c0_4], %4 {strides = array<i32>} : memref<16x512xf32, #tpu.memory_space<vmem>>, vector<1x512xf32>,
    %cst_5 = arith.constant 0.000000e+00 : f32
    %6 = vector.broadcast %cst_5 : f32 to vector<5x512xf32>
    %c11_6 = arith.constant 11 : index
    %c0_7 = arith.constant 0 : index
    %7 = vector.load %arg9[%c11_6, %c0_7] : memref<16x512xf32, #tpu.memory_space<vmem>>, vector<5x512xf32>
    tpu.vector_store %arg9[%c11_6, %c0_7], %6 {strides = array<i32>} : memref<16x512xf32, #tpu.memory_space<vmem>>, vector<5x512xf32>,
    %c0_8 = arith.constant 0 : index
    %c0_9 = arith.constant 0 : index
    %8 = vector.load %arg2[%c0_8, %c0_9] : memref<64x256xf32, #tpu.memory_space<vmem>>, vector<10x128xf32>
    %c16 = arith.constant 16 : index
    %c0_10 = arith.constant 0 : index
    %9 = vector.load %arg2[%c16, %c0_10] : memref<64x256xf32, #tpu.memory_space<vmem>>, vector<10x144xf32>
    %c32 = arith.constant 32 : index
    %c0_11 = arith.constant 0 : index
    %10 = vector.load %arg2[%c32, %c0_11] : memref<64x256xf32, #tpu.memory_space<vmem>>, vector<20x64xf32>
    %c52 = arith.constant 52 : index
    %c0_12 = arith.constant 0 : index
    %11 = vector.load %arg2[%c52, %c0_12] : memref<64x256xf32, #tpu.memory_space<vmem>>, vector<10x20xf32>
    %c52_13 = arith.constant 52 : index
    %c20 = arith.constant 20 : index
    %12 = vector.load %arg2[%c52_13, %c20] : memref<64x256xf32, #tpu.memory_space<vmem>>, vector<10x1xf32>
    %c0_14 = arith.constant 0 : index
    %c0_15 = arith.constant 0 : index
    %c0_16 = arith.constant 0 : index
    %13 = vector.load %arg1[%c0_14, %c0_15, %c0_16] : memref<1x8x1280xf32, #tpu.memory_space<vmem>>, vector<1x8x1152xf32>
    %14 = vector.shape_cast %13 : vector<1x8x1152xf32> to vector<8x1152xf32>
    %c0_17 = arith.constant 0 : index
    %c0_18 = arith.constant 0 : index
    %15 = vector.load %arg4[%c0_17, %c0_18] : memref<128x1152xf32, #tpu.memory_space<vmem>>, vector<8x1152xf32>
    tpu.vector_store %arg4[%c0_17, %c0_18], %14 {strides = array<i32>} : memref<128x1152xf32, #tpu.memory_space<vmem>>, vector<8x1152xf32>,
    %c0_19 = arith.constant 0 : index
    %c0_20 = arith.constant 0 : index
    %c1 = arith.constant 1 : index
    %16 = vector.load %arg1[%c0_19, %c0_20, %c1] : memref<1x8x1280xf32, #tpu.memory_space<vmem>>, vector<1x8x1152xf32>
    %17 = vector.shape_cast %16 : vector<1x8x1152xf32> to vector<8x1152xf32>
    %c8 = arith.constant 8 : index
    %c0_21 = arith.constant 0 : index
    %18 = vector.load %arg4[%c8, %c0_21] : memref<128x1152xf32, #tpu.memory_space<vmem>>, vector<8x1152xf32>
    tpu.vector_store %arg4[%c8, %c0_21], %17 {strides = array<i32>} : memref<128x1152xf32, #tpu.memory_space<vmem>>, vector<8x1152xf32>,
    %c0_22 = arith.constant 0 : index
    %c0_23 = arith.constant 0 : index
    %c2 = arith.constant 2 : index
    %19 = vector.load %arg1[%c0_22, %c0_23, %c2] : memref<1x8x1280xf32, #tpu.memory_space<vmem>>, vector<1x8x1152xf32>
    %20 = vector.shape_cast %19 : vector<1x8x1152xf32> to vector<8x1152xf32>
    %c16_24 = arith.constant 16 : index
    %c0_25 = arith.constant 0 : index
    %21 = vector.load %arg4[%c16_24, %c0_25] : memref<128x1152xf32, #tpu.memory_space<vmem>>, vector<8x1152xf32>
    tpu.vector_store %arg4[%c16_24, %c0_25], %20 {strides = array<i32>} : memref<128x1152xf32, #tpu.memory_space<vmem>>, vector<8x1152xf32>,
    %c0_26 = arith.constant 0 : index
    %c0_27 = arith.constant 0 : index
    %c3 = arith.constant 3 : index
    %22 = vector.load %arg1[%c0_26, %c0_27, %c3] : memref<1x8x1280xf32, #tpu.memory_space<vmem>>, vector<1x8x1152xf32>
    %23 = vector.shape_cast %22 : vector<1x8x1152xf32> to vector<8x1152xf32>
    %c24 = arith.constant 24 : index
    %c0_28 = arith.constant 0 : index
    %24 = vector.load %arg4[%c24, %c0_28] : memref<128x1152xf32, #tpu.memory_space<vmem>>, vector<8x1152xf32>
    tpu.vector_store %arg4[%c24, %c0_28], %23 {strides = array<i32>} : memref<128x1152xf32, #tpu.memory_space<vmem>>, vector<8x1152xf32>,
    %c0_29 = arith.constant 0 : index
    %c0_30 = arith.constant 0 : index
    %c32_31 = arith.constant 32 : index
    %25 = vector.load %arg1[%c0_29, %c0_30, %c32_31] : memref<1x8x1280xf32, #tpu.memory_space<vmem>>, vector<1x8x1152xf32>
    %26 = vector.shape_cast %25 : vector<1x8x1152xf32> to vector<8x1152xf32>
    %c32_32 = arith.constant 32 : index
    %c0_33 = arith.constant 0 : index
    %27 = vector.load %arg4[%c32_32, %c0_33] : memref<128x1152xf32, #tpu.memory_space<vmem>>, vector<8x1152xf32>
    tpu.vector_store %arg4[%c32_32, %c0_33], %26 {strides = array<i32>} : memref<128x1152xf32, #tpu.memory_space<vmem>>, vector<8x1152xf32>,
    %c0_34 = arith.constant 0 : index
    %c0_35 = arith.constant 0 : index
    %c33 = arith.constant 33 : index
    %28 = vector.load %arg1[%c0_34, %c0_35, %c33] : memref<1x8x1280xf32, #tpu.memory_space<vmem>>, vector<1x8x1152xf32>
    %29 = vector.shape_cast %28 : vector<1x8x1152xf32> to vector<8x1152xf32>
    %c40 = arith.constant 40 : index
    %c0_36 = arith.constant 0 : index
    %30 = vector.load %arg4[%c40, %c0_36] : memref<128x1152xf32, #tpu.memory_space<vmem>>, vector<8x1152xf32>
    tpu.vector_store %arg4[%c40, %c0_36], %29 {strides = array<i32>} : memref<128x1152xf32, #tpu.memory_space<vmem>>, vector<8x1152xf32>,
    %c0_37 = arith.constant 0 : index
    %c0_38 = arith.constant 0 : index
    %c34 = arith.constant 34 : index
    %31 = vector.load %arg1[%c0_37, %c0_38, %c34] : memref<1x8x1280xf32, #tpu.memory_space<vmem>>, vector<1x8x1152xf32>
    %32 = vector.shape_cast %31 : vector<1x8x1152xf32> to vector<8x1152xf32>
    %c48 = arith.constant 48 : index
    %c0_39 = arith.constant 0 : index
    %33 = vector.load %arg4[%c48, %c0_39] : memref<128x1152xf32, #tpu.memory_space<vmem>>, vector<8x1152xf32>
    tpu.vector_store %arg4[%c48, %c0_39], %32 {strides = array<i32>} : memref<128x1152xf32, #tpu.memory_space<vmem>>, vector<8x1152xf32>,
    %c0_40 = arith.constant 0 : index
    %c0_41 = arith.constant 0 : index
    %c35 = arith.constant 35 : index
    %34 = vector.load %arg1[%c0_40, %c0_41, %c35] : memref<1x8x1280xf32, #tpu.memory_space<vmem>>, vector<1x8x1152xf32>
    %35 = vector.shape_cast %34 : vector<1x8x1152xf32> to vector<8x1152xf32>
    %c56 = arith.constant 56 : index
    %c0_42 = arith.constant 0 : index
    %36 = vector.load %arg4[%c56, %c0_42] : memref<128x1152xf32, #tpu.memory_space<vmem>>, vector<8x1152xf32>
    tpu.vector_store %arg4[%c56, %c0_42], %35 {strides = array<i32>} : memref<128x1152xf32, #tpu.memory_space<vmem>>, vector<8x1152xf32>,
    %c0_43 = arith.constant 0 : index
    %c0_44 = arith.constant 0 : index
    %c64 = arith.constant 64 : index
    %37 = vector.load %arg1[%c0_43, %c0_44, %c64] : memref<1x8x1280xf32, #tpu.memory_space<vmem>>, vector<1x8x1152xf32>
    %38 = vector.shape_cast %37 : vector<1x8x1152xf32> to vector<8x1152xf32>
    %c64_45 = arith.constant 64 : index
    %c0_46 = arith.constant 0 : index
    %39 = vector.load %arg4[%c64_45, %c0_46] : memref<128x1152xf32, #tpu.memory_space<vmem>>, vector<8x1152xf32>
    tpu.vector_store %arg4[%c64_45, %c0_46], %38 {strides = array<i32>} : memref<128x1152xf32, #tpu.memory_space<vmem>>, vector<8x1152xf32>,
    %c0_47 = arith.constant 0 : index
    %c0_48 = arith.constant 0 : index
    %c65 = arith.constant 65 : index
    %40 = vector.load %arg1[%c0_47, %c0_48, %c65] : memref<1x8x1280xf32, #tpu.memory_space<vmem>>, vector<1x8x1152xf32>
    %41 = vector.shape_cast %40 : vector<1x8x1152xf32> to vector<8x1152xf32>
    %c72 = arith.constant 72 : index
    %c0_49 = arith.constant 0 : index
    %42 = vector.load %arg4[%c72, %c0_49] : memref<128x1152xf32, #tpu.memory_space<vmem>>, vector<8x1152xf32>
    tpu.vector_store %arg4[%c72, %c0_49], %41 {strides = array<i32>} : memref<128x1152xf32, #tpu.memory_space<vmem>>, vector<8x1152xf32>,
    %c0_50 = arith.constant 0 : index
    %c0_51 = arith.constant 0 : index
    %c66 = arith.constant 66 : index
    %43 = vector.load %arg1[%c0_50, %c0_51, %c66] : memref<1x8x1280xf32, #tpu.memory_space<vmem>>, vector<1x8x1152xf32>
    %44 = vector.shape_cast %43 : vector<1x8x1152xf32> to vector<8x1152xf32>
    %c80 = arith.constant 80 : index
    %c0_52 = arith.constant 0 : index
    %45 = vector.load %arg4[%c80, %c0_52] : memref<128x1152xf32, #tpu.memory_space<vmem>>, vector<8x1152xf32>
    tpu.vector_store %arg4[%c80, %c0_52], %44 {strides = array<i32>} : memref<128x1152xf32, #tpu.memory_space<vmem>>, vector<8x1152xf32>,
    %c0_53 = arith.constant 0 : index
    %c0_54 = arith.constant 0 : index
    %c67 = arith.constant 67 : index
    %46 = vector.load %arg1[%c0_53, %c0_54, %c67] : memref<1x8x1280xf32, #tpu.memory_space<vmem>>, vector<1x8x1152xf32>
    %47 = vector.shape_cast %46 : vector<1x8x1152xf32> to vector<8x1152xf32>
    %c88 = arith.constant 88 : index
    %c0_55 = arith.constant 0 : index
    %48 = vector.load %arg4[%c88, %c0_55] : memref<128x1152xf32, #tpu.memory_space<vmem>>, vector<8x1152xf32>
    tpu.vector_store %arg4[%c88, %c0_55], %47 {strides = array<i32>} : memref<128x1152xf32, #tpu.memory_space<vmem>>, vector<8x1152xf32>,
    %c0_56 = arith.constant 0 : index
    %c0_57 = arith.constant 0 : index
    %c96 = arith.constant 96 : index
    %49 = vector.load %arg1[%c0_56, %c0_57, %c96] : memref<1x8x1280xf32, #tpu.memory_space<vmem>>, vector<1x8x1152xf32>
    %50 = vector.shape_cast %49 : vector<1x8x1152xf32> to vector<8x1152xf32>
    %c96_58 = arith.constant 96 : index
    %c0_59 = arith.constant 0 : index
    %51 = vector.load %arg4[%c96_58, %c0_59] : memref<128x1152xf32, #tpu.memory_space<vmem>>, vector<8x1152xf32>
    tpu.vector_store %arg4[%c96_58, %c0_59], %50 {strides = array<i32>} : memref<128x1152xf32, #tpu.memory_space<vmem>>, vector<8x1152xf32>,
    %c0_60 = arith.constant 0 : index
    %c0_61 = arith.constant 0 : index
    %c97 = arith.constant 97 : index
    %52 = vector.load %arg1[%c0_60, %c0_61, %c97] : memref<1x8x1280xf32, #tpu.memory_space<vmem>>, vector<1x8x1152xf32>
    %53 = vector.shape_cast %52 : vector<1x8x1152xf32> to vector<8x1152xf32>
    %c104 = arith.constant 104 : index
    %c0_62 = arith.constant 0 : index
    %54 = vector.load %arg4[%c104, %c0_62] : memref<128x1152xf32, #tpu.memory_space<vmem>>, vector<8x1152xf32>
    tpu.vector_store %arg4[%c104, %c0_62], %53 {strides = array<i32>} : memref<128x1152xf32, #tpu.memory_space<vmem>>, vector<8x1152xf32>,
    %c0_63 = arith.constant 0 : index
    %c0_64 = arith.constant 0 : index
    %c98 = arith.constant 98 : index
    %55 = vector.load %arg1[%c0_63, %c0_64, %c98] : memref<1x8x1280xf32, #tpu.memory_space<vmem>>, vector<1x8x1152xf32>
    %56 = vector.shape_cast %55 : vector<1x8x1152xf32> to vector<8x1152xf32>
    %c112 = arith.constant 112 : index
    %c0_65 = arith.constant 0 : index
    %57 = vector.load %arg4[%c112, %c0_65] : memref<128x1152xf32, #tpu.memory_space<vmem>>, vector<8x1152xf32>
    tpu.vector_store %arg4[%c112, %c0_65], %56 {strides = array<i32>} : memref<128x1152xf32, #tpu.memory_space<vmem>>, vector<8x1152xf32>,
    %c0_66 = arith.constant 0 : index
    %c0_67 = arith.constant 0 : index
    %c99 = arith.constant 99 : index
    %58 = vector.load %arg1[%c0_66, %c0_67, %c99] : memref<1x8x1280xf32, #tpu.memory_space<vmem>>, vector<1x8x1152xf32>
    %59 = vector.shape_cast %58 : vector<1x8x1152xf32> to vector<8x1152xf32>
    %c120 = arith.constant 120 : index
    %c0_68 = arith.constant 0 : index
    %60 = vector.load %arg4[%c120, %c0_68] : memref<128x1152xf32, #tpu.memory_space<vmem>>, vector<8x1152xf32>
    tpu.vector_store %arg4[%c120, %c0_68], %59 {strides = array<i32>} : memref<128x1152xf32, #tpu.memory_space<vmem>>, vector<8x1152xf32>,
    %c0_69 = arith.constant 0 : index
    %c0_70 = arith.constant 0 : index
    %61 = vector.load %arg4[%c0_69, %c0_70] : memref<128x1152xf32, #tpu.memory_space<vmem>>, vector<128x1152xf32>
    %cst_71 = arith.constant dense<0.000000e+00> : vector<10x1152xf32>
    %62 = tpu.matmul %8, %61, %cst_71 {dimension_numbers = #tpu.dot_dimension_numbers<[1], [0], [0], [1], [0, 0, 1, 1], [], []>} : vector<10x128xf32>, vector<128x1152xf32>, vector<10x1152xf32> -> vector<10x1152xf32>
    %c0_72 = arith.constant 0 : index
    %c0_73 = arith.constant 0 : index
    %63 = vector.load %arg5[%c0_72, %c0_73] : memref<10x1152xf32, #tpu.memory_space<vmem>>, vector<10x1152xf32>
    tpu.vector_store %arg5[%c0_72, %c0_73], %62 {strides = array<i32>} : memref<10x1152xf32, #tpu.memory_space<vmem>>, vector<10x1152xf32>,
    %c0_74 = arith.constant 0 : index
    %c0_75 = arith.constant 0 : index
    %64 = vector.load %arg5[%c0_74, %c0_75] : memref<10x1152xf32, #tpu.memory_space<vmem>>, vector<10x1024xf32>
    %c0_76 = arith.constant 0 : index
    %c1_77 = arith.constant 1 : index
    %65 = vector.load %arg5[%c0_76, %c1_77] : memref<10x1152xf32, #tpu.memory_space<vmem>>, vector<10x1024xf32>
    %66 = arith.maximumf %64, %65 : vector<10x1024xf32>
    %c0_78 = arith.constant 0 : index
    %c2_79 = arith.constant 2 : index
    %67 = vector.load %arg5[%c0_78, %c2_79] : memref<10x1152xf32, #tpu.memory_space<vmem>>, vector<10x1024xf32>
    %68 = arith.maximumf %66, %67 : vector<10x1024xf32>
    %c0_80 = arith.constant 0 : index
    %c32_81 = arith.constant 32 : index
    %69 = vector.load %arg5[%c0_80, %c32_81] : memref<10x1152xf32, #tpu.memory_space<vmem>>, vector<10x1024xf32>
    %70 = arith.maximumf %68, %69 : vector<10x1024xf32>
    %c0_82 = arith.constant 0 : index
    %c33_83 = arith.constant 33 : index
    %71 = vector.load %arg5[%c0_82, %c33_83] : memref<10x1152xf32, #tpu.memory_space<vmem>>, vector<10x1024xf32>
    %72 = arith.maximumf %70, %71 : vector<10x1024xf32>
    %c0_84 = arith.constant 0 : index
    %c34_85 = arith.constant 34 : index
    %73 = vector.load %arg5[%c0_84, %c34_85] : memref<10x1152xf32, #tpu.memory_space<vmem>>, vector<10x1024xf32>
    %74 = arith.maximumf %72, %73 : vector<10x1024xf32>
    %c0_86 = arith.constant 0 : index
    %c64_87 = arith.constant 64 : index
    %75 = vector.load %arg5[%c0_86, %c64_87] : memref<10x1152xf32, #tpu.memory_space<vmem>>, vector<10x1024xf32>
    %76 = arith.maximumf %74, %75 : vector<10x1024xf32>
    %c0_88 = arith.constant 0 : index
    %c65_89 = arith.constant 65 : index
    %77 = vector.load %arg5[%c0_88, %c65_89] : memref<10x1152xf32, #tpu.memory_space<vmem>>, vector<10x1024xf32>
    %78 = arith.maximumf %76, %77 : vector<10x1024xf32>
    %c0_90 = arith.constant 0 : index
    %c66_91 = arith.constant 66 : index
    %79 = vector.load %arg5[%c0_90, %c66_91] : memref<10x1152xf32, #tpu.memory_space<vmem>>, vector<10x1024xf32>
    %80 = arith.maximumf %78, %79 : vector<10x1024xf32>
    %c0_92 = arith.constant 0 : index
    %c0_93 = arith.constant 0 : index
    %81 = vector.load %arg6[%c0_92, %c0_93] : memref<16x1024xf32, #tpu.memory_space<vmem>>, vector<10x1024xf32>
    tpu.vector_store %arg6[%c0_92, %c0_93], %80 {strides = array<i32>} : memref<16x1024xf32, #tpu.memory_space<vmem>>, vector<10x1024xf32>,
    %c0_94 = arith.constant 0 : index
    %c0_95 = arith.constant 0 : index
    %82 = vector.load %arg6[%c0_94, %c0_95] : memref<16x1024xf32, #tpu.memory_space<vmem>>, vector<16x768xf32>
    %c0_96 = arith.constant 0 : index
    %c0_97 = arith.constant 0 : index
    %83 = vector.load %arg7[%c0_96, %c0_97] : memref<144x768xf32, #tpu.memory_space<vmem>>, vector<16x768xf32>
    tpu.vector_store %arg7[%c0_96, %c0_97], %82 {strides = array<i32>} : memref<144x768xf32, #tpu.memory_space<vmem>>, vector<16x768xf32>,
    %c0_98 = arith.constant 0 : index
    %c3_99 = arith.constant 3 : index
    %84 = vector.load %arg6[%c0_98, %c3_99] : memref<16x1024xf32, #tpu.memory_space<vmem>>, vector<16x768xf32>
    %c16_100 = arith.constant 16 : index
    %c0_101 = arith.constant 0 : index
    %85 = vector.load %arg7[%c16_100, %c0_101] : memref<144x768xf32, #tpu.memory_space<vmem>>, vector<16x768xf32>
    tpu.vector_store %arg7[%c16_100, %c0_101], %84 {strides = array<i32>} : memref<144x768xf32, #tpu.memory_space<vmem>>, vector<16x768xf32>,
    %c0_102 = arith.constant 0 : index
    %c6 = arith.constant 6 : index
    %86 = vector.load %arg6[%c0_102, %c6] : memref<16x1024xf32, #tpu.memory_space<vmem>>, vector<16x768xf32>
    %c32_103 = arith.constant 32 : index
    %c0_104 = arith.constant 0 : index
    %87 = vector.load %arg7[%c32_103, %c0_104] : memref<144x768xf32, #tpu.memory_space<vmem>>, vector<16x768xf32>
    tpu.vector_store %arg7[%c32_103, %c0_104], %86 {strides = array<i32>} : memref<144x768xf32, #tpu.memory_space<vmem>>, vector<16x768xf32>,
    %c0_105 = arith.constant 0 : index
    %c96_106 = arith.constant 96 : index
    %88 = vector.load %arg6[%c0_105, %c96_106] : memref<16x1024xf32, #tpu.memory_space<vmem>>, vector<16x768xf32>
    %c48_107 = arith.constant 48 : index
    %c0_108 = arith.constant 0 : index
    %89 = vector.load %arg7[%c48_107, %c0_108] : memref<144x768xf32, #tpu.memory_space<vmem>>, vector<16x768xf32>
    tpu.vector_store %arg7[%c48_107, %c0_108], %88 {strides = array<i32>} : memref<144x768xf32, #tpu.memory_space<vmem>>, vector<16x768xf32>,
    %c0_109 = arith.constant 0 : index
    %c99_110 = arith.constant 99 : index
    %90 = vector.load %arg6[%c0_109, %c99_110] : memref<16x1024xf32, #tpu.memory_space<vmem>>, vector<16x768xf32>
    %c64_111 = arith.constant 64 : index
    %c0_112 = arith.constant 0 : index
    %91 = vector.load %arg7[%c64_111, %c0_112] : memref<144x768xf32, #tpu.memory_space<vmem>>, vector<16x768xf32>
    tpu.vector_store %arg7[%c64_111, %c0_112], %90 {strides = array<i32>} : memref<144x768xf32, #tpu.memory_space<vmem>>, vector<16x768xf32>,
    %c0_113 = arith.constant 0 : index
    %c102 = arith.constant 102 : index
    %92 = vector.load %arg6[%c0_113, %c102] : memref<16x1024xf32, #tpu.memory_space<vmem>>, vector<16x768xf32>
    %c80_114 = arith.constant 80 : index
    %c0_115 = arith.constant 0 : index
    %93 = vector.load %arg7[%c80_114, %c0_115] : memref<144x768xf32, #tpu.memory_space<vmem>>, vector<16x768xf32>
    tpu.vector_store %arg7[%c80_114, %c0_115], %92 {strides = array<i32>} : memref<144x768xf32, #tpu.memory_space<vmem>>, vector<16x768xf32>,
    %c0_116 = arith.constant 0 : index
    %c192 = arith.constant 192 : index
    %94 = vector.load %arg6[%c0_116, %c192] : memref<16x1024xf32, #tpu.memory_space<vmem>>, vector<16x768xf32>
    %c96_117 = arith.constant 96 : index
    %c0_118 = arith.constant 0 : index
    %95 = vector.load %arg7[%c96_117, %c0_118] : memref<144x768xf32, #tpu.memory_space<vmem>>, vector<16x768xf32>
    tpu.vector_store %arg7[%c96_117, %c0_118], %94 {strides = array<i32>} : memref<144x768xf32, #tpu.memory_space<vmem>>, vector<16x768xf32>,
    %c0_119 = arith.constant 0 : index
    %c195 = arith.constant 195 : index
    %96 = vector.load %arg6[%c0_119, %c195] : memref<16x1024xf32, #tpu.memory_space<vmem>>, vector<16x768xf32>
    %c112_120 = arith.constant 112 : index
    %c0_121 = arith.constant 0 : index
    %97 = vector.load %arg7[%c112_120, %c0_121] : memref<144x768xf32, #tpu.memory_space<vmem>>, vector<16x768xf32>
    tpu.vector_store %arg7[%c112_120, %c0_121], %96 {strides = array<i32>} : memref<144x768xf32, #tpu.memory_space<vmem>>, vector<16x768xf32>,
    %c0_122 = arith.constant 0 : index
    %c198 = arith.constant 198 : index
    %98 = vector.load %arg6[%c0_122, %c198] : memref<16x1024xf32, #tpu.memory_space<vmem>>, vector<16x768xf32>
    %c128 = arith.constant 128 : index
    %c0_123 = arith.constant 0 : index
    %99 = vector.load %arg7[%c128, %c0_123] : memref<144x768xf32, #tpu.memory_space<vmem>>, vector<16x768xf32>
    tpu.vector_store %arg7[%c128, %c0_123], %98 {strides = array<i32>} : memref<144x768xf32, #tpu.memory_space<vmem>>, vector<16x768xf32>,
    %c0_124 = arith.constant 0 : index
    %c0_125 = arith.constant 0 : index
    %100 = vector.load %arg7[%c0_124, %c0_125] : memref<144x768xf32, #tpu.memory_space<vmem>>, vector<144x768xf32>
    %cst_126 = arith.constant dense<0.000000e+00> : vector<10x768xf32>
    %101 = tpu.matmul %9, %100, %cst_126 {dimension_numbers = #tpu.dot_dimension_numbers<[1], [0], [0], [1], [0, 0, 1, 1], [], []>} : vector<10x144xf32>, vector<144x768xf32>, vector<10x768xf32> -> vector<10x768xf32>
    %c0_127 = arith.constant 0 : index
    %c0_128 = arith.constant 0 : index
    %102 = vector.load %arg8[%c0_127, %c0_128] : memref<10x768xf32, #tpu.memory_space<vmem>>, vector<10x768xf32>
    tpu.vector_store %arg8[%c0_127, %c0_128], %101 {strides = array<i32>} : memref<10x768xf32, #tpu.memory_space<vmem>>, vector<10x768xf32>,
    %c0_129 = arith.constant 0 : index
    %c0_130 = arith.constant 0 : index
    %103 = vector.load %arg8[%c0_129, %c0_130] : memref<10x768xf32, #tpu.memory_space<vmem>>, vector<10x512xf32>
    %c0_131 = arith.constant 0 : index
    %c3_132 = arith.constant 3 : index
    %104 = vector.load %arg8[%c0_131, %c3_132] : memref<10x768xf32, #tpu.memory_space<vmem>>, vector<10x512xf32>
    %105 = arith.maximumf %103, %104 : vector<10x512xf32>
    %c0_133 = arith.constant 0 : index
    %c6_134 = arith.constant 6 : index
    %106 = vector.load %arg8[%c0_133, %c6_134] : memref<10x768xf32, #tpu.memory_space<vmem>>, vector<10x512xf32>
    %107 = arith.maximumf %105, %106 : vector<10x512xf32>
    %c0_135 = arith.constant 0 : index
    %c96_136 = arith.constant 96 : index
    %108 = vector.load %arg8[%c0_135, %c96_136] : memref<10x768xf32, #tpu.memory_space<vmem>>, vector<10x512xf32>
    %109 = arith.maximumf %107, %108 : vector<10x512xf32>
    %c0_137 = arith.constant 0 : index
    %c99_138 = arith.constant 99 : index
    %110 = vector.load %arg8[%c0_137, %c99_138] : memref<10x768xf32, #tpu.memory_space<vmem>>, vector<10x512xf32>
    %111 = arith.maximumf %109, %110 : vector<10x512xf32>
    %c0_139 = arith.constant 0 : index
    %c102_140 = arith.constant 102 : index
    %112 = vector.load %arg8[%c0_139, %c102_140] : memref<10x768xf32, #tpu.memory_space<vmem>>, vector<10x512xf32>
    %113 = arith.maximumf %111, %112 : vector<10x512xf32>
    %c0_141 = arith.constant 0 : index
    %c192_142 = arith.constant 192 : index
    %114 = vector.load %arg8[%c0_141, %c192_142] : memref<10x768xf32, #tpu.memory_space<vmem>>, vector<10x512xf32>
    %115 = arith.maximumf %113, %114 : vector<10x512xf32>
    %c0_143 = arith.constant 0 : index
    %c195_144 = arith.constant 195 : index
    %116 = vector.load %arg8[%c0_143, %c195_144] : memref<10x768xf32, #tpu.memory_space<vmem>>, vector<10x512xf32>
    %117 = arith.maximumf %115, %116 : vector<10x512xf32>
    %c0_145 = arith.constant 0 : index
    %c198_146 = arith.constant 198 : index
    %118 = vector.load %arg8[%c0_145, %c198_146] : memref<10x768xf32, #tpu.memory_space<vmem>>, vector<10x512xf32>
    %119 = arith.maximumf %117, %118 : vector<10x512xf32>
    %c0_147 = arith.constant 0 : index
    %c0_148 = arith.constant 0 : index
    %120 = vector.load %arg9[%c0_147, %c0_148] : memref<16x512xf32, #tpu.memory_space<vmem>>, vector<10x512xf32>
    tpu.vector_store %arg9[%c0_147, %c0_148], %119 {strides = array<i32>} : memref<16x512xf32, #tpu.memory_space<vmem>>, vector<10x512xf32>,
    %c0_149 = arith.constant 0 : index
    %c0_150 = arith.constant 0 : index
    %121 = vector.load %arg9[%c0_149, %c0_150] : memref<16x512xf32, #tpu.memory_space<vmem>>, vector<16x128xf32>
    %c0_151 = arith.constant 0 : index
    %c0_152 = arith.constant 0 : index
    %122 = vector.load %arg10[%c0_151, %c0_152] : memref<64x128xf32, #tpu.memory_space<vmem>>, vector<16x128xf32>
    tpu.vector_store %arg10[%c0_151, %c0_152], %121 {strides = array<i32>} : memref<64x128xf32, #tpu.memory_space<vmem>>, vector<16x128xf32>,
    %c0_153 = arith.constant 0 : index
    %c9 = arith.constant 9 : index
    %123 = vector.load %arg9[%c0_153, %c9] : memref<16x512xf32, #tpu.memory_space<vmem>>, vector<16x128xf32>
    %c16_154 = arith.constant 16 : index
    %c0_155 = arith.constant 0 : index
    %124 = vector.load %arg10[%c16_154, %c0_155] : memref<64x128xf32, #tpu.memory_space<vmem>>, vector<16x128xf32>
    tpu.vector_store %arg10[%c16_154, %c0_155], %123 {strides = array<i32>} : memref<64x128xf32, #tpu.memory_space<vmem>>, vector<16x128xf32>,
    %c0_156 = arith.constant 0 : index
    %c288 = arith.constant 288 : index
    %125 = vector.load %arg9[%c0_156, %c288] : memref<16x512xf32, #tpu.memory_space<vmem>>, vector<16x128xf32>
    %c32_157 = arith.constant 32 : index
    %c0_158 = arith.constant 0 : index
    %126 = vector.load %arg10[%c32_157, %c0_158] : memref<64x128xf32, #tpu.memory_space<vmem>>, vector<16x128xf32>
    tpu.vector_store %arg10[%c32_157, %c0_158], %125 {strides = array<i32>} : memref<64x128xf32, #tpu.memory_space<vmem>>, vector<16x128xf32>,
    %c0_159 = arith.constant 0 : index
    %c297 = arith.constant 297 : index
    %127 = vector.load %arg9[%c0_159, %c297] : memref<16x512xf32, #tpu.memory_space<vmem>>, vector<16x128xf32>
    %c48_160 = arith.constant 48 : index
    %c0_161 = arith.constant 0 : index
    %128 = vector.load %arg10[%c48_160, %c0_161] : memref<64x128xf32, #tpu.memory_space<vmem>>, vector<16x128xf32>
    tpu.vector_store %arg10[%c48_160, %c0_161], %127 {strides = array<i32>} : memref<64x128xf32, #tpu.memory_space<vmem>>, vector<16x128xf32>,
    %c0_162 = arith.constant 0 : index
    %c0_163 = arith.constant 0 : index
    %129 = vector.load %arg10[%c0_162, %c0_163] : memref<64x128xf32, #tpu.memory_space<vmem>>, vector<64x128xf32>
    %cst_164 = arith.constant dense<0.000000e+00> : vector<20x128xf32>
    %130 = tpu.matmul %10, %129, %cst_164 {dimension_numbers = #tpu.dot_dimension_numbers<[1], [0], [0], [1], [0, 0, 1, 1], [], []>} : vector<20x64xf32>, vector<64x128xf32>, vector<20x128xf32> -> vector<20x128xf32>
    %cst_165 = arith.constant 0.000000e+00 : f32
    %131 = vector.broadcast %cst_165 : f32 to vector<20x128xf32>
    %132 = arith.maximumf %130, %131 : vector<20x128xf32>
    %cst_166 = arith.constant dense<0.000000e+00> : vector<10x128xf32>
    %133 = tpu.matmul %11, %132, %cst_166 {dimension_numbers = #tpu.dot_dimension_numbers<[1], [0], [0], [1], [0, 0, 1, 1], [], []>} : vector<10x20xf32>, vector<20x128xf32>, vector<10x128xf32> -> vector<10x128xf32>
    %134 = vector.broadcast %12 : vector<10x1xf32> to vector<10x128xf32>
    %135 = arith.addf %133, %134 : vector<10x128xf32>
    %c0_167 = arith.constant 0 : index
    %c0_168 = arith.constant 0 : index
    %c0_169 = arith.constant 0 : index
    %136 = vector.load %arg3[%c0_167, %c0_168, %c0_169] : memref<1x10x128xf32, #tpu.memory_space<vmem>>, vector<1x10x128xf32>
    %137 = vector.shape_cast %136 : vector<1x10x128xf32> to vector<10x128xf32>
    %138 = vector.shape_cast %135 : vector<10x128xf32> to vector<1x10x128xf32>
    tpu.vector_store %arg3[%c0_167, %c0_168, %c0_169], %138 {strides = array<i32>} : memref<1x10x128xf32, #tpu.memory_space<vmem>>, vector<1x10x128xf32>,
    return
  }
  func.func @transform_0(%arg0: i32) -> (i32, i32, i32) {
    %c0_i32 = arith.constant 0 : i32
    %c0_i32_0 = arith.constant 0 : i32
    %c0_i32_1 = arith.constant 0 : i32
    return %arg0, %c0_i32, %c0_i32_0 : i32, i32, i32
  }
  func.func @transform_1(%arg0: i32) -> (i32, i32) {
    %c0_i32 = arith.constant 0 : i32
    %c0_i32_0 = arith.constant 0 : i32
    %c0_i32_1 = arith.constant 0 : i32
    return %c0_i32, %c0_i32_0 : i32, i32
  }
  func.func @transform_2(%arg0: i32) -> (i32, i32, i32) {
    %c0_i32 = arith.constant 0 : i32
    %c0_i32_0 = arith.constant 0 : i32
    %c0_i32_1 = arith.constant 0 : i32
    return %arg0, %c0_i32, %c0_i32_0 : i32, i32, i32
  }
}

</mosaic_0001>

<llo_original>
// kernel: simple_cnn_forward.1
$region0: #{simple_cnn_forward.1}
  #allocation0 [shape = 'u32[]', space=smem, size = 0x4, offset = 0x4, fixed_abs, tag = 'smem constant byte address 0x4 - core index']
  #allocation1 [shape = 'u32[144,128]{1,0:T(1,128)}', space=vmem, size = 0x12000, scoped, tag = 'internal scratch']
  #allocation2 [shape = 'f32[128,1152]{1,0:T(8,128)}', space=vmem, size = 0x90000, scoped, tag = 'scratch operand']
  #allocation3 [shape = 'f32[10,1152]{1,0:T(8,128)}', space=vmem, size = 0x12000, scoped, tag = 'scratch operand']
  #allocation4 [shape = 'f32[16,1024]{1,0:T(8,128)}', space=vmem, size = 0x10000, scoped, tag = 'scratch operand']
  #allocation5 [shape = 'f32[144,768]{1,0:T(8,128)}', space=vmem, size = 0x6c000, scoped, tag = 'scratch operand']
  #allocation6 [shape = 'f32[10,768]{1,0:T(8,128)}', space=vmem, size = 0xc000, scoped, tag = 'scratch operand']
  #allocation7 [shape = 'f32[16,512]{1,0:T(8,128)}', space=vmem, size = 0x8000, scoped, tag = 'scratch operand']
  #allocation8 [shape = 'f32[64,128]{1,0:T(8,128)}', space=vmem, size = 0x8000, scoped, tag = 'scratch operand']
  %s0 = inlined_call_operand.vmem [shape: f32[2,8,1280], index: 0, kind: input, shape index: {}]
  %s1 = inlined_call_operand.vmem [shape: f32[64,256], index: 1, kind: input, shape index: {}]
  %s2 = inlined_call_operand.vmem [shape: f32[2,10,128], index: 2, kind: output, shape index: {}]
  %s3 = sld [smem:[#allocation0]]
  $region41: #{simple_cnn_forward.1} parent=0
    _
  %s5 = ssub.s32 1, %s3
  %s6 = scalar_select 0, %s5, %s3
  loop: start=0, step=1, limit=4
  $region2: #{simple_cnn_forward.1} parent=0 // loop_pre_header
    _
  $region3: #{simple_cnn_forward.1} parent=0 // loop_header
    %s8 = sphi 0, %s12
    %p9 = scmp.ge.s32.totalorder %s8, 4
    %s18 = sphi 0, %s20
    %s21 = sphi 0, %s18
    %s22 = sphi 0, %s21
    %s38 = sphi 0, %s22
    %s42 = sphi 0, %s42
    %s44 = sphi 0, %s42
    %s45 = sphi 0, %s44
    %s59 = sphi 0, %s45
    %s65 = sphi 0, %s67
    %s68 = sphi 0, %s65
    %s69 = sphi 0, %s68
    %s85 = sphi 0, %s69
  $region4: #{simple_cnn_forward.1} parent=0 // loop_header_branch
    %11 = sbr.rel (%p9) target = $region8
  $region5: #{simple_cnn_forward.1} parent=0 // loop_body
    %s13 = ssub.s32 %s8, 1
    %s14 = ssub.s32 %s8, 2
    %s15 = sadd.s32 %s8, 1
    %s16 = ssub.s32 %s8, %s15
    %p17 = scmp.eq.s32.totalorder %s16, 0
    %s19 = sadd.s32 %s18, 1
    %s20 = scalar_select %p17, %s18, %s19
    %p23 = pneg %p17
    %p24 = scmp.eq.s32.totalorder %s8, 1
    %p25 = por %p23, %p24
    %p26 = scmp.ne.s32.totalorder %s18, %s21
    %p27 = scmp.eq.s32.totalorder %s8, 0
    %p28 = por %p26, %p27
    %p29 = scmp.ne.s32.totalorder %s18, %s21
    %p30 = scmp.eq.s32.totalorder %s13, 1
    %p31 = por %p29, %p30
    %p32 = scmp.ne.s32.totalorder %s21, %s22
    %p33 = scmp.eq.s32.totalorder %s13, 0
    %p34 = por %p32, %p33
    %p35 = scmp.ne.s32.totalorder %s21, %s22
    %p36 = scmp.eq.s32.totalorder %s14, 1
    %p37 = por %p35, %p36
    %p39 = scmp.ne.s32.totalorder %s22, %s38
    %p40 = scmp.eq.s32.totalorder %s14, 0
    %p41 = por %p39, %p40
    %s43 = sadd.s32 %s42, 1
    %p46 = scmp.eq.s32.totalorder %s8, 1
    %p47 = scmp.ne.s32.totalorder %s42, %s44
    %p48 = scmp.eq.s32.totalorder %s8, 0
    %p49 = por %p47, %p48
    %p50 = scmp.ne.s32.totalorder %s42, %s44
    %p51 = scmp.eq.s32.totalorder %s13, 1
    %p52 = por %p50, %p51
    %p53 = scmp.ne.s32.totalorder %s44, %s45
    %p54 = scmp.eq.s32.totalorder %s13, 0
    %p55 = por %p53, %p54
    %p56 = scmp.ne.s32.totalorder %s44, %s45
    %p57 = scmp.eq.s32.totalorder %s14, 1
    %p58 = por %p56, %p57
    %p60 = scmp.ne.s32.totalorder %s45, %s59
    %p61 = scmp.eq.s32.totalorder %s14, 0
    %p62 = por %p60, %p61
    %s63 = ssub.s32 %s8, %s15
    %p64 = scmp.eq.s32.totalorder %s63, 0
    %s66 = sadd.s32 %s65, 1
    %s67 = scalar_select %p64, %s65, %s66
    %p70 = pneg %p64
    %p71 = scmp.eq.s32.totalorder %s8, 1
    %p72 = por %p70, %p71
    %p73 = scmp.ne.s32.totalorder %s65, %s68
    %p74 = scmp.eq.s32.totalorder %s8, 0
    %p75 = por %p73, %p74
    %p76 = scmp.ne.s32.totalorder %s65, %s68
    %p77 = scmp.eq.s32.totalorder %s13, 1
    %p78 = por %p76, %p77
    %p79 = scmp.ne.s32.totalorder %s68, %s69
    %p80 = scmp.eq.s32.totalorder %s13, 0
    %p81 = por %p79, %p80
    %p82 = scmp.ne.s32.totalorder %s68, %s69
    %p83 = scmp.eq.s32.totalorder %s14, 1
    %p84 = por %p82, %p83
    %p86 = scmp.ne.s32.totalorder %s69, %s85
    %p87 = scmp.eq.s32.totalorder %s14, 0
    %p88 = por %p86, %p87
    %p89 = scmp.le.s32.totalorder 1, %s8
    %p90 = scmp.lt.s32.totalorder %s8, 3
    %p91 = pnand %p89, %p90
    %p92 = pneg %p91
    // Predicated region
    $region9: #{simple_cnn_forward.1} parent=5 // pred_check
      _
    $region10: #{simple_cnn_forward.1} parent=5 // pred_check_branch
      %94 = sbr.rel (%p91) target = $region12
    $region11: #{simple_cnn_forward.1} parent=5 // pred_region
      %s95 = ssub.s32 %s8, 1
      // Predicated region
      $region13: #{simple_cnn_forward.1} parent=11 // pred_check
        %p96 = pneg %p55
      $region14: #{simple_cnn_forward.1} parent=11 // pred_check_branch
        %98 = sbr.rel (%p96) target = $region16
      $region15: #{simple_cnn_forward.1} parent=11 // pred_region
        _
      $region16: #{simple_cnn_forward.1} parent=11 // pred_fallthru
        _
    $region12: #{simple_cnn_forward.1} parent=5 // pred_fallthru
      _
    %p99 = scmp.lt.s32.totalorder %s8, 2
    // Predicated region
    $region17: #{simple_cnn_forward.1} parent=5 // pred_check
      %p100 = pneg %p99
    $region18: #{simple_cnn_forward.1} parent=5 // pred_check_branch
      %102 = sbr.rel (%p100) target = $region20
    $region19: #{simple_cnn_forward.1} parent=5 // pred_region
      // Predicated region
      $region21: #{simple_cnn_forward.1} parent=19 // pred_check
        %p103 = pneg %p28
      $region22: #{simple_cnn_forward.1} parent=19 // pred_check_branch
        %105 = sbr.rel (%p103) target = $region24
      $region23: #{simple_cnn_forward.1} parent=19 // pred_region
        %p106 = scmp.lt.s32.totalorder %s8, 1
        %s107 = scalar_select %p106, %s8, 1
        %s108 = smul.addr %s107, 10
        %s109 = smul.addr %s108, 8
        %s110 = scalar_lea.vmem %s0, %s109
      $region24: #{simple_cnn_forward.1} parent=19 // pred_fallthru
        _
    $region20: #{simple_cnn_forward.1} parent=5 // pred_fallthru
      _
    %p111 = scmp.le.s32.totalorder 1, %s8
    %p112 = scmp.lt.s32.totalorder %s8, 3
    %p113 = pnand %p111, %p112
    %p114 = pneg %p113
    // Predicated region
    $region25: #{simple_cnn_forward.1} parent=5 // pred_check
      _
    $region26: #{simple_cnn_forward.1} parent=5 // pred_check_branch
      %116 = sbr.rel (%p113) target = $region28
    $region27: #{simple_cnn_forward.1} parent=5 // pred_region
      %s117 = ssub.s32 %s8, 1
      %p118 = scmp.lt.s32.totalorder %s13, 1
      %s119 = scalar_select %p118, %s13, 1
      %s120 = smul.addr %s119, 10
      %s121 = smul.addr %s120, 8
      %s122 = scalar_lea.vmem %s0, %s121
      %p123 = pneg %p34
      %p124 = pneg %p31
      %p125 = pneg %p55
      %p126 = pneg %p52
      %p127 = pneg %p81
      %p128 = pneg %p78
      %p129 = scmp.lt.s32.totalorder %s13, 1
      %s130 = scalar_select %p129, %s13, 1
      %s131 = smul.addr %s130, 2
      %s132 = smul.addr %s131, 8
      %s133 = scalar_lea.vmem %s2, %s132
      %p134 = scmp.lt.s32.totalorder %s13, 1
      %s135 = scalar_select %p134, %s13, 1
      %s136 = smul.addr %s135, 10
      %s137 = smul.addr %s136, 8
      %s138 = scalar_lea.vmem %s0, %s137
      %p139 = scmp.lt.s32.totalorder %s13, 1
      %s140 = scalar_select %p139, %s13, 1
      %s141 = smul.addr %s140, 2
      %s142 = smul.addr %s141, 8
      %s143 = scalar_lea.vmem %s2, %s142
      %s144 = scalar_lea.vmem [#allocation4], 66
      %145 = vst [vmem:[%s144] ss:$8 sm:$0xf] 1.0
      %146 = vst [vmem:[%s144] ss:$8 sm:$0xf0] 1.0
      %147 = vst [vmem:[#allocation4 + $0x40] sm:$0xf8] 0.0
      %148 = vst [vmem:[#allocation4 + $0x48] sm:$0xf8] 0.0
      %149 = vst [vmem:[#allocation4 + $0x50] sm:$0xf8] 0.0
      %150 = vst [vmem:[#allocation4 + $0x58] sm:$0xf8] 0.0
      %151 = vst [vmem:[#allocation4 + $0x60] sm:$0xf8] 0.0
      %152 = vst [vmem:[#allocation4 + $0x68] sm:$0xf8] 0.0
      %153 = vst [vmem:[#allocation4 + $0x70] sm:$0xf8] 0.0
      %154 = vst [vmem:[#allocation4 + $0x78] sm:$0xf8] 0.0
      %v155 = vlaneseq
      %vm156 = vcmp.ge.s32.totalorder %v155, 0
      %vm157 = vcmp.lt.s32.totalorder %v155, 512
      %vm158 = vmand %vm156, %vm157
      %s159 = scalar_lea.vmem [#allocation7], 34
      %160 = vst.msk [vmem:[%s159] ss:$8 sm:$0xf] %vm158, 1.0
      %161 = vst.msk [vmem:[%s159] ss:$8 sm:$0x0] %vm158, 1.0
      %162 = vst [vmem:[#allocation7 + $0x20] sm:$0xf8] 0.0
      %163 = vst [vmem:[#allocation7 + $0x28] sm:$0xf8] 0.0
      %164 = vst [vmem:[#allocation7 + $0x30] sm:$0xf8] 0.0
      %165 = vst [vmem:[#allocation7 + $0x38] sm:$0xf8] 0.0
      %v166 = vld [vmem:[%s1] sm:$0xff]
      %v167 = vld [vmem:[%s1 + $0x10] sm:$0x3]
      %v168 = vld [vmem:[%s1 + $0x20] sm:$0xff]
      %v169 = vld [vmem:[%s1 + $0x28] sm:$0xff]
      %v170 = vld [vmem:[%s1 + $0x30] sm:$0x3]
      %v171 = vld [vmem:[%s1 + $0x38] sm:$0x3]
      %v172 = vld [vmem:[%s1 + $0x40] sm:$0xff]
      %v173 = vld [vmem:[%s1 + $0x50] sm:$0xff]
      %v174 = vld [vmem:[%s1 + $0x60] sm:$0xf]
      %v175 = vld [vmem:[%s1 + $0x60] sm:$0xf0]
      %v176 = vld [vmem:[%s1 + $0x70] sm:$0x3f]
      %v177 = vld [vmem:[%s138] sm:$0xff]
      %v178 = vld [vmem:[%s138 + $0x8] sm:$0xff]
      %v179 = vld [vmem:[%s138 + $0x10] sm:$0xff]
      %v180 = vld [vmem:[%s138 + $0x18] sm:$0xff]
      %v181 = vld [vmem:[%s138 + $0x20] sm:$0xff]
      %v182 = vld [vmem:[%s138 + $0x28] sm:$0xff]
      %v183 = vld [vmem:[%s138 + $0x30] sm:$0xff]
      %v184 = vld [vmem:[%s138 + $0x38] sm:$0xff]
      %v185 = vld [vmem:[%s138 + $0x40] sm:$0xff]
      %186 = vst [vmem:[#allocation2] sm:$0xff] %v177
      %187 = vst [vmem:[#allocation2 + $0x8] sm:$0xff] %v178
      %188 = vst [vmem:[#allocation2 + $0x10] sm:$0xff] %v179
      %189 = vst [vmem:[#allocation2 + $0x18] sm:$0xff] %v180
      %190 = vst [vmem:[#allocation2 + $0x20] sm:$0xff] %v181
      %191 = vst [vmem:[#allocation2 + $0x28] sm:$0xff] %v182
      %192 = vst [vmem:[#allocation2 + $0x30] sm:$0xff] %v183
      %193 = vst [vmem:[#allocation2 + $0x38] sm:$0xff] %v184
      %194 = vst [vmem:[#allocation2 + $0x40] sm:$0xff] %v185
      %v195 = vld [vmem:[%s138] sm:$0xff]
      %v196 = vld [vmem:[%s138 + $0x8] sm:$0xff]
      %v197 = vld [vmem:[%s138 + $0x10] sm:$0xff]
      %v198 = vld [vmem:[%s138 + $0x18] sm:$0xff]
      %v199 = vld [vmem:[%s138 + $0x20] sm:$0xff]
      %v200 = vld [vmem:[%s138 + $0x28] sm:$0xff]
      %v201 = vld [vmem:[%s138 + $0x30] sm:$0xff]
      %v202 = vld [vmem:[%s138 + $0x38] sm:$0xff]
      %v203 = vld [vmem:[%s138 + $0x40] sm:$0xff]
      %v204 = vld [vmem:[%s138 + $0x48] sm:$0xff]
      %215 = vrot.lane.b32.xlu0 %v195, 127
      %v216 = vpop.permute.xlu0 %215
      %217 = vrot.lane.b32.xlu0 %v196, 127
      %v218 = vpop.permute.xlu0 %217
      %219 = vrot.lane.b32.xlu0 %v197, 127
      %v220 = vpop.permute.xlu0 %219
      %221 = vrot.lane.b32.xlu0 %v198, 127
      %v222 = vpop.permute.xlu0 %221
      %223 = vrot.lane.b32.xlu0 %v199, 127
      %v224 = vpop.permute.xlu0 %223
      %225 = vrot.lane.b32.xlu0 %v200, 127
      %v226 = vpop.permute.xlu0 %225
      %227 = vrot.lane.b32.xlu0 %v201, 127
      %v228 = vpop.permute.xlu0 %227
      %229 = vrot.lane.b32.xlu0 %v202, 127
      %v230 = vpop.permute.xlu0 %229
      %231 = vrot.lane.b32.xlu0 %v203, 127
      %v232 = vpop.permute.xlu0 %231
      %233 = vrot.lane.b32.xlu0 %v204, 127
      %v234 = vpop.permute.xlu0 %233
      %vm235 = vcmask 1039360
      %v236 = vsel %vm235, %v216, %v218
      %v237 = vsel %vm235, %v218, %v220
      %v238 = vsel %vm235, %v220, %v222
      %v239 = vsel %vm235, %v222, %v224
      %v240 = vsel %vm235, %v224, %v226
      %v241 = vsel %vm235, %v226, %v228
      %v242 = vsel %vm235, %v228, %v230
      %v243 = vsel %vm235, %v230, %v232
      %v244 = vsel %vm235, %v232, %v234
      %254 = vst [vmem:[#allocation2 + $0x48] sm:$0xff] %v236
      %255 = vst [vmem:[#allocation2 + $0x50] sm:$0xff] %v237
      %256 = vst [vmem:[#allocation2 + $0x58] sm:$0xff] %v238
      %257 = vst [vmem:[#allocation2 + $0x60] sm:$0xff] %v239
      %258 = vst [vmem:[#allocation2 + $0x68] sm:$0xff] %v240
      %259 = vst [vmem:[#allocation2 + $0x70] sm:$0xff] %v241
      %260 = vst [vmem:[#allocation2 + $0x78] sm:$0xff] %v242
      %261 = vst [vmem:[#allocation2 + $0x80] sm:$0xff] %v243
      %262 = vst [vmem:[#allocation2 + $0x88] sm:$0xff] %v244
      %v263 = vld [vmem:[%s138] sm:$0xff]
      %v264 = vld [vmem:[%s138 + $0x8] sm:$0xff]
      %v265 = vld [vmem:[%s138 + $0x10] sm:$0xff]
      %v266 = vld [vmem:[%s138 + $0x18] sm:$0xff]
      %v267 = vld [vmem:[%s138 + $0x20] sm:$0xff]
      %v268 = vld [vmem:[%s138 + $0x28] sm:$0xff]
      %v269 = vld [vmem:[%s138 + $0x30] sm:$0xff]
      %v270 = vld [vmem:[%s138 + $0x38] sm:$0xff]
      %v271 = vld [vmem:[%s138 + $0x40] sm:$0xff]
      %v272 = vld [vmem:[%s138 + $0x48] sm:$0xff]
      %283 = vrot.lane.b32.xlu0 %v263, 126
      %v284 = vpop.permute.xlu0 %283
      %285 = vrot.lane.b32.xlu0 %v264, 126
      %v286 = vpop.permute.xlu0 %285
      %287 = vrot.lane.b32.xlu0 %v265, 126
      %v288 = vpop.permute.xlu0 %287
      %289 = vrot.lane.b32.xlu0 %v266, 126
      %v290 = vpop.permute.xlu0 %289
      %291 = vrot.lane.b32.xlu0 %v267, 126
      %v292 = vpop.permute.xlu0 %291
      %293 = vrot.lane.b32.xlu0 %v268, 126
      %v294 = vpop.permute.xlu0 %293
      %295 = vrot.lane.b32.xlu0 %v269, 126
      %v296 = vpop.permute.xlu0 %295
      %297 = vrot.lane.b32.xlu0 %v270, 126
      %v298 = vpop.permute.xlu0 %297
      %299 = vrot.lane.b32.xlu0 %v271, 126
      %v300 = vpop.permute.xlu0 %299
      %301 = vrot.lane.b32.xlu0 %v272, 126
      %v302 = vpop.permute.xlu0 %301
      %vm303 = vcmask 1031168
      %v304 = vsel %vm303, %v284, %v286
      %v305 = vsel %vm303, %v286, %v288
      %v306 = vsel %vm303, %v288, %v290
      %v307 = vsel %vm303, %v290, %v292
      %v308 = vsel %vm303, %v292, %v294
      %v309 = vsel %vm303, %v294, %v296
      %v310 = vsel %vm303, %v296, %v298
      %v311 = vsel %vm303, %v298, %v300
      %v312 = vsel %vm303, %v300, %v302
      %322 = vst [vmem:[#allocation2 + $0x90] sm:$0xff] %v304
      %323 = vst [vmem:[#allocation2 + $0x98] sm:$0xff] %v305
      %324 = vst [vmem:[#allocation2 + $0xa0] sm:$0xff] %v306
      %325 = vst [vmem:[#allocation2 + $0xa8] sm:$0xff] %v307
      %326 = vst [vmem:[#allocation2 + $0xb0] sm:$0xff] %v308
      %327 = vst [vmem:[#allocation2 + $0xb8] sm:$0xff] %v309
      %328 = vst [vmem:[#allocation2 + $0xc0] sm:$0xff] %v310
      %329 = vst [vmem:[#allocation2 + $0xc8] sm:$0xff] %v311
      %330 = vst [vmem:[#allocation2 + $0xd0] sm:$0xff] %v312
      %v331 = vld [vmem:[%s138] sm:$0xff]
      %v332 = vld [vmem:[%s138 + $0x8] sm:$0xff]
      %v333 = vld [vmem:[%s138 + $0x10] sm:$0xff]
      %v334 = vld [vmem:[%s138 + $0x18] sm:$0xff]
      %v335 = vld [vmem:[%s138 + $0x20] sm:$0xff]
      %v336 = vld [vmem:[%s138 + $0x28] sm:$0xff]
      %v337 = vld [vmem:[%s138 + $0x30] sm:$0xff]
      %v338 = vld [vmem:[%s138 + $0x38] sm:$0xff]
      %v339 = vld [vmem:[%s138 + $0x40] sm:$0xff]
      %v340 = vld [vmem:[%s138 + $0x48] sm:$0xff]
      %351 = vrot.lane.b32.xlu0 %v331, 125
      %v352 = vpop.permute.xlu0 %351
      %353 = vrot.lane.b32.xlu0 %v332, 125
      %v354 = vpop.permute.xlu0 %353
      %355 = vrot.lane.b32.xlu0 %v333, 125
      %v356 = vpop.permute.xlu0 %355
      %357 = vrot.lane.b32.xlu0 %v334, 125
      %v358 = vpop.permute.xlu0 %357
      %359 = vrot.lane.b32.xlu0 %v335, 125
      %v360 = vpop.permute.xlu0 %359
      %361 = vrot.lane.b32.xlu0 %v336, 125
      %v362 = vpop.permute.xlu0 %361
      %363 = vrot.lane.b32.xlu0 %v337, 125
      %v364 = vpop.permute.xlu0 %363
      %365 = vrot.lane.b32.xlu0 %v338, 125
      %v366 = vpop.permute.xlu0 %365
      %367 = vrot.lane.b32.xlu0 %v339, 125
      %v368 = vpop.permute.xlu0 %367
      %369 = vrot.lane.b32.xlu0 %v340, 125
      %v370 = vpop.permute.xlu0 %369
      %vm371 = vcmask 1022976
      %v372 = vsel %vm371, %v352, %v354
      %v373 = vsel %vm371, %v354, %v356
      %v374 = vsel %vm371, %v356, %v358
      %v375 = vsel %vm371, %v358, %v360
      %v376 = vsel %vm371, %v360, %v362
      %v377 = vsel %vm371, %v362, %v364
      %v378 = vsel %vm371, %v364, %v366
      %v379 = vsel %vm371, %v366, %v368
      %v380 = vsel %vm371, %v368, %v370
      %390 = vst [vmem:[#allocation2 + $0xd8] sm:$0xff] %v372
      %391 = vst [vmem:[#allocation2 + $0xe0] sm:$0xff] %v373
      %392 = vst [vmem:[#allocation2 + $0xe8] sm:$0xff] %v374
      %393 = vst [vmem:[#allocation2 + $0xf0] sm:$0xff] %v375
      %394 = vst [vmem:[#allocation2 + $0xf8] sm:$0xff] %v376
      %395 = vst [vmem:[#allocation2 + $0x100] sm:$0xff] %v377
      %396 = vst [vmem:[#allocation2 + $0x108] sm:$0xff] %v378
      %397 = vst [vmem:[#allocation2 + $0x110] sm:$0xff] %v379
      %398 = vst [vmem:[#allocation2 + $0x118] sm:$0xff] %v380
      %v399 = vld [vmem:[%s138] sm:$0xff]
      %v400 = vld [vmem:[%s138 + $0x8] sm:$0xff]
      %v401 = vld [vmem:[%s138 + $0x10] sm:$0xff]
      %v402 = vld [vmem:[%s138 + $0x18] sm:$0xff]
      %v403 = vld [vmem:[%s138 + $0x20] sm:$0xff]
      %v404 = vld [vmem:[%s138 + $0x28] sm:$0xff]
      %v405 = vld [vmem:[%s138 + $0x30] sm:$0xff]
      %v406 = vld [vmem:[%s138 + $0x38] sm:$0xff]
      %v407 = vld [vmem:[%s138 + $0x40] sm:$0xff]
      %v408 = vld [vmem:[%s138 + $0x48] sm:$0xff]
      %419 = vrot.lane.b32.xlu0 %v399, 96
      %v420 = vpop.permute.xlu0 %419
      %421 = vrot.lane.b32.xlu0 %v400, 96
      %v422 = vpop.permute.xlu0 %421
      %423 = vrot.lane.b32.xlu0 %v401, 96
      %v424 = vpop.permute.xlu0 %423
      %425 = vrot.lane.b32.xlu0 %v402, 96
      %v426 = vpop.permute.xlu0 %425
      %427 = vrot.lane.b32.xlu0 %v403, 96
      %v428 = vpop.permute.xlu0 %427
      %429 = vrot.lane.b32.xlu0 %v404, 96
      %v430 = vpop.permute.xlu0 %429
      %431 = vrot.lane.b32.xlu0 %v405, 96
      %v432 = vpop.permute.xlu0 %431
      %433 = vrot.lane.b32.xlu0 %v406, 96
      %v434 = vpop.permute.xlu0 %433
      %435 = vrot.lane.b32.xlu0 %v407, 96
      %v436 = vpop.permute.xlu0 %435
      %437 = vrot.lane.b32.xlu0 %v408, 96
      %v438 = vpop.permute.xlu0 %437
      %vm439 = vcmask 785408
      %v440 = vsel %vm439, %v420, %v422
      %v441 = vsel %vm439, %v422, %v424
      %v442 = vsel %vm439, %v424, %v426
      %v443 = vsel %vm439, %v426, %v428
      %v444 = vsel %vm439, %v428, %v430
      %v445 = vsel %vm439, %v430, %v432
      %v446 = vsel %vm439, %v432, %v434
      %v447 = vsel %vm439, %v434, %v436
      %v448 = vsel %vm439, %v436, %v438
      %458 = vst [vmem:[#allocation2 + $0x120] sm:$0xff] %v440
      %459 = vst [vmem:[#allocation2 + $0x128] sm:$0xff] %v441
      %460 = vst [vmem:[#allocation2 + $0x130] sm:$0xff] %v442
      %461 = vst [vmem:[#allocation2 + $0x138] sm:$0xff] %v443
      %462 = vst [vmem:[#allocation2 + $0x140] sm:$0xff] %v444
      %463 = vst [vmem:[#allocation2 + $0x148] sm:$0xff] %v445
      %464 = vst [vmem:[#allocation2 + $0x150] sm:$0xff] %v446
      %465 = vst [vmem:[#allocation2 + $0x158] sm:$0xff] %v447
      %466 = vst [vmem:[#allocation2 + $0x160] sm:$0xff] %v448
      %v467 = vld [vmem:[%s138] sm:$0xff]
      %v468 = vld [vmem:[%s138 + $0x8] sm:$0xff]
      %v469 = vld [vmem:[%s138 + $0x10] sm:$0xff]
      %v470 = vld [vmem:[%s138 + $0x18] sm:$0xff]
      %v471 = vld [vmem:[%s138 + $0x20] sm:$0xff]
      %v472 = vld [vmem:[%s138 + $0x28] sm:$0xff]
      %v473 = vld [vmem:[%s138 + $0x30] sm:$0xff]
      %v474 = vld [vmem:[%s138 + $0x38] sm:$0xff]
      %v475 = vld [vmem:[%s138 + $0x40] sm:$0xff]
      %v476 = vld [vmem:[%s138 + $0x48] sm:$0xff]
      %487 = vrot.lane.b32.xlu0 %v467, 95
      %v488 = vpop.permute.xlu0 %487
      %489 = vrot.lane.b32.xlu0 %v468, 95
      %v490 = vpop.permute.xlu0 %489
      %491 = vrot.lane.b32.xlu0 %v469, 95
      %v492 = vpop.permute.xlu0 %491
      %493 = vrot.lane.b32.xlu0 %v470, 95
      %v494 = vpop.permute.xlu0 %493
      %495 = vrot.lane.b32.xlu0 %v471, 95
      %v496 = vpop.permute.xlu0 %495
      %497 = vrot.lane.b32.xlu0 %v472, 95
      %v498 = vpop.permute.xlu0 %497
      %499 = vrot.lane.b32.xlu0 %v473, 95
      %v500 = vpop.permute.xlu0 %499
      %501 = vrot.lane.b32.xlu0 %v474, 95
      %v502 = vpop.permute.xlu0 %501
      %503 = vrot.lane.b32.xlu0 %v475, 95
      %v504 = vpop.permute.xlu0 %503
      %505 = vrot.lane.b32.xlu0 %v476, 95
      %v506 = vpop.permute.xlu0 %505
      %vm507 = vcmask 777216
      %v508 = vsel %vm507, %v488, %v490
      %v509 = vsel %vm507, %v490, %v492
      %v510 = vsel %vm507, %v492, %v494
      %v511 = vsel %vm507, %v494, %v496
      %v512 = vsel %vm507, %v496, %v498
      %v513 = vsel %vm507, %v498, %v500
      %v514 = vsel %vm507, %v500, %v502
      %v515 = vsel %vm507, %v502, %v504
      %v516 = vsel %vm507, %v504, %v506
      %526 = vst [vmem:[#allocation2 + $0x168] sm:$0xff] %v508
      %527 = vst [vmem:[#allocation2 + $0x170] sm:$0xff] %v509
      %528 = vst [vmem:[#allocation2 + $0x178] sm:$0xff] %v510
      %529 = vst [vmem:[#allocation2 + $0x180] sm:$0xff] %v511
      %530 = vst [vmem:[#allocation2 + $0x188] sm:$0xff] %v512
      %531 = vst [vmem:[#allocation2 + $0x190] sm:$0xff] %v513
      %532 = vst [vmem:[#allocation2 + $0x198] sm:$0xff] %v514
      %533 = vst [vmem:[#allocation2 + $0x1a0] sm:$0xff] %v515
      %534 = vst [vmem:[#allocation2 + $0x1a8] sm:$0xff] %v516
      %v535 = vld [vmem:[%s138] sm:$0xff]
      %v536 = vld [vmem:[%s138 + $0x8] sm:$0xff]
      %v537 = vld [vmem:[%s138 + $0x10] sm:$0xff]
      %v538 = vld [vmem:[%s138 + $0x18] sm:$0xff]
      %v539 = vld [vmem:[%s138 + $0x20] sm:$0xff]
      %v540 = vld [vmem:[%s138 + $0x28] sm:$0xff]
      %v541 = vld [vmem:[%s138 + $0x30] sm:$0xff]
      %v542 = vld [vmem:[%s138 + $0x38] sm:$0xff]
      %v543 = vld [vmem:[%s138 + $0x40] sm:$0xff]
      %v544 = vld [vmem:[%s138 + $0x48] sm:$0xff]
      %555 = vrot.lane.b32.xlu0 %v535, 94
      %v556 = vpop.permute.xlu0 %555
      %557 = vrot.lane.b32.xlu0 %v536, 94
      %v558 = vpop.permute.xlu0 %557
      %559 = vrot.lane.b32.xlu0 %v537, 94
      %v560 = vpop.permute.xlu0 %559
      %561 = vrot.lane.b32.xlu0 %v538, 94
      %v562 = vpop.permute.xlu0 %561
      %563 = vrot.lane.b32.xlu0 %v539, 94
      %v564 = vpop.permute.xlu0 %563
      %565 = vrot.lane.b32.xlu0 %v540, 94
      %v566 = vpop.permute.xlu0 %565
      %567 = vrot.lane.b32.xlu0 %v541, 94
      %v568 = vpop.permute.xlu0 %567
      %569 = vrot.lane.b32.xlu0 %v542, 94
      %v570 = vpop.permute.xlu0 %569
      %571 = vrot.lane.b32.xlu0 %v543, 94
      %v572 = vpop.permute.xlu0 %571
      %573 = vrot.lane.b32.xlu0 %v544, 94
      %v574 = vpop.permute.xlu0 %573
      %vm575 = vcmask 769024
      %v576 = vsel %vm575, %v556, %v558
      %v577 = vsel %vm575, %v558, %v560
      %v578 = vsel %vm575, %v560, %v562
      %v579 = vsel %vm575, %v562, %v564
      %v580 = vsel %vm575, %v564, %v566
      %v581 = vsel %vm575, %v566, %v568
      %v582 = vsel %vm575, %v568, %v570
      %v583 = vsel %vm575, %v570, %v572
      %v584 = vsel %vm575, %v572, %v574
      %594 = vst [vmem:[#allocation2 + $0x1b0] sm:$0xff] %v576
      %595 = vst [vmem:[#allocation2 + $0x1b8] sm:$0xff] %v577
      %596 = vst [vmem:[#allocation2 + $0x1c0] sm:$0xff] %v578
      %597 = vst [vmem:[#allocation2 + $0x1c8] sm:$0xff] %v579
      %598 = vst [vmem:[#allocation2 + $0x1d0] sm:$0xff] %v580
      %599 = vst [vmem:[#allocation2 + $0x1d8] sm:$0xff] %v581
      %600 = vst [vmem:[#allocation2 + $0x1e0] sm:$0xff] %v582
      %601 = vst [vmem:[#allocation2 + $0x1e8] sm:$0xff] %v583
      %602 = vst [vmem:[#allocation2 + $0x1f0] sm:$0xff] %v584
      %v603 = vld [vmem:[%s138] sm:$0xff]
      %v604 = vld [vmem:[%s138 + $0x8] sm:$0xff]
      %v605 = vld [vmem:[%s138 + $0x10] sm:$0xff]
      %v606 = vld [vmem:[%s138 + $0x18] sm:$0xff]
      %v607 = vld [vmem:[%s138 + $0x20] sm:$0xff]
      %v608 = vld [vmem:[%s138 + $0x28] sm:$0xff]
      %v609 = vld [vmem:[%s138 + $0x30] sm:$0xff]
      %v610 = vld [vmem:[%s138 + $0x38] sm:$0xff]
      %v611 = vld [vmem:[%s138 + $0x40] sm:$0xff]
      %v612 = vld [vmem:[%s138 + $0x48] sm:$0xff]
      %623 = vrot.lane.b32.xlu0 %v603, 93
      %v624 = vpop.permute.xlu0 %623
      %625 = vrot.lane.b32.xlu0 %v604, 93
      %v626 = vpop.permute.xlu0 %625
      %627 = vrot.lane.b32.xlu0 %v605, 93
      %v628 = vpop.permute.xlu0 %627
      %629 = vrot.lane.b32.xlu0 %v606, 93
      %v630 = vpop.permute.xlu0 %629
      %631 = vrot.lane.b32.xlu0 %v607, 93
      %v632 = vpop.permute.xlu0 %631
      %633 = vrot.lane.b32.xlu0 %v608, 93
      %v634 = vpop.permute.xlu0 %633
      %635 = vrot.lane.b32.xlu0 %v609, 93
      %v636 = vpop.permute.xlu0 %635
      %637 = vrot.lane.b32.xlu0 %v610, 93
      %v638 = vpop.permute.xlu0 %637
      %639 = vrot.lane.b32.xlu0 %v611, 93
      %v640 = vpop.permute.xlu0 %639
      %641 = vrot.lane.b32.xlu0 %v612, 93
      %v642 = vpop.permute.xlu0 %641
      %vm643 = vcmask 760832
      %v644 = vsel %vm643, %v624, %v626
      %v645 = vsel %vm643, %v626, %v628
      %v646 = vsel %vm643, %v628, %v630
      %v647 = vsel %vm643, %v630, %v632
      %v648 = vsel %vm643, %v632, %v634
      %v649 = vsel %vm643, %v634, %v636
      %v650 = vsel %vm643, %v636, %v638
      %v651 = vsel %vm643, %v638, %v640
      %v652 = vsel %vm643, %v640, %v642
      %662 = vst [vmem:[#allocation2 + $0x1f8] sm:$0xff] %v644
      %663 = vst [vmem:[#allocation2 + $0x200] sm:$0xff] %v645
      %664 = vst [vmem:[#allocation2 + $0x208] sm:$0xff] %v646
      %665 = vst [vmem:[#allocation2 + $0x210] sm:$0xff] %v647
      %666 = vst [vmem:[#allocation2 + $0x218] sm:$0xff] %v648
      %667 = vst [vmem:[#allocation2 + $0x220] sm:$0xff] %v649
      %668 = vst [vmem:[#allocation2 + $0x228] sm:$0xff] %v650
      %669 = vst [vmem:[#allocation2 + $0x230] sm:$0xff] %v651
      %670 = vst [vmem:[#allocation2 + $0x238] sm:$0xff] %v652
      %v671 = vld [vmem:[%s138] sm:$0xff]
      %v672 = vld [vmem:[%s138 + $0x8] sm:$0xff]
      %v673 = vld [vmem:[%s138 + $0x10] sm:$0xff]
      %v674 = vld [vmem:[%s138 + $0x18] sm:$0xff]
      %v675 = vld [vmem:[%s138 + $0x20] sm:$0xff]
      %v676 = vld [vmem:[%s138 + $0x28] sm:$0xff]
      %v677 = vld [vmem:[%s138 + $0x30] sm:$0xff]
      %v678 = vld [vmem:[%s138 + $0x38] sm:$0xff]
      %v679 = vld [vmem:[%s138 + $0x40] sm:$0xff]
      %v680 = vld [vmem:[%s138 + $0x48] sm:$0xff]
      %691 = vrot.lane.b32.xlu0 %v671, 64
      %v692 = vpop.permute.xlu0 %691
      %693 = vrot.lane.b32.xlu0 %v672, 64
      %v694 = vpop.permute.xlu0 %693
      %695 = vrot.lane.b32.xlu0 %v673, 64
      %v696 = vpop.permute.xlu0 %695
      %697 = vrot.lane.b32.xlu0 %v674, 64
      %v698 = vpop.permute.xlu0 %697
      %699 = vrot.lane.b32.xlu0 %v675, 64
      %v700 = vpop.permute.xlu0 %699
      %701 = vrot.lane.b32.xlu0 %v676, 64
      %v702 = vpop.permute.xlu0 %701
      %703 = vrot.lane.b32.xlu0 %v677, 64
      %v704 = vpop.permute.xlu0 %703
      %705 = vrot.lane.b32.xlu0 %v678, 64
      %v706 = vpop.permute.xlu0 %705
      %707 = vrot.lane.b32.xlu0 %v679, 64
      %v708 = vpop.permute.xlu0 %707
      %709 = vrot.lane.b32.xlu0 %v680, 64
      %v710 = vpop.permute.xlu0 %709
      %vm711 = vcmask 523264
      %v712 = vsel %vm711, %v692, %v694
      %v713 = vsel %vm711, %v694, %v696
      %v714 = vsel %vm711, %v696, %v698
      %v715 = vsel %vm711, %v698, %v700
      %v716 = vsel %vm711, %v700, %v702
      %v717 = vsel %vm711, %v702, %v704
      %v718 = vsel %vm711, %v704, %v706
      %v719 = vsel %vm711, %v706, %v708
      %v720 = vsel %vm711, %v708, %v710
      %730 = vst [vmem:[#allocation2 + $0x240] sm:$0xff] %v712
      %731 = vst [vmem:[#allocation2 + $0x248] sm:$0xff] %v713
      %732 = vst [vmem:[#allocation2 + $0x250] sm:$0xff] %v714
      %733 = vst [vmem:[#allocation2 + $0x258] sm:$0xff] %v715
      %734 = vst [vmem:[#allocation2 + $0x260] sm:$0xff] %v716
      %735 = vst [vmem:[#allocation2 + $0x268] sm:$0xff] %v717
      %736 = vst [vmem:[#allocation2 + $0x270] sm:$0xff] %v718
      %737 = vst [vmem:[#allocation2 + $0x278] sm:$0xff] %v719
      %738 = vst [vmem:[#allocation2 + $0x280] sm:$0xff] %v720
      %v739 = vld [vmem:[%s138] sm:$0xff]
      %v740 = vld [vmem:[%s138 + $0x8] sm:$0xff]
      %v741 = vld [vmem:[%s138 + $0x10] sm:$0xff]
      %v742 = vld [vmem:[%s138 + $0x18] sm:$0xff]
      %v743 = vld [vmem:[%s138 + $0x20] sm:$0xff]
      %v744 = vld [vmem:[%s138 + $0x28] sm:$0xff]
      %v745 = vld [vmem:[%s138 + $0x30] sm:$0xff]
      %v746 = vld [vmem:[%s138 + $0x38] sm:$0xff]
      %v747 = vld [vmem:[%s138 + $0x40] sm:$0xff]
      %v748 = vld [vmem:[%s138 + $0x48] sm:$0xff]
      %759 = vrot.lane.b32.xlu0 %v739, 63
      %v760 = vpop.permute.xlu0 %759
      %761 = vrot.lane.b32.xlu0 %v740, 63
      %v762 = vpop.permute.xlu0 %761
      %763 = vrot.lane.b32.xlu0 %v741, 63
      %v764 = vpop.permute.xlu0 %763
      %765 = vrot.lane.b32.xlu0 %v742, 63
      %v766 = vpop.permute.xlu0 %765
      %767 = vrot.lane.b32.xlu0 %v743, 63
      %v768 = vpop.permute.xlu0 %767
      %769 = vrot.lane.b32.xlu0 %v744, 63
      %v770 = vpop.permute.xlu0 %769
      %771 = vrot.lane.b32.xlu0 %v745, 63
      %v772 = vpop.permute.xlu0 %771
      %773 = vrot.lane.b32.xlu0 %v746, 63
      %v774 = vpop.permute.xlu0 %773
      %775 = vrot.lane.b32.xlu0 %v747, 63
      %v776 = vpop.permute.xlu0 %775
      %777 = vrot.lane.b32.xlu0 %v748, 63
      %v778 = vpop.permute.xlu0 %777
      %vm779 = vcmask 515072
      %v780 = vsel %vm779, %v760, %v762
      %v781 = vsel %vm779, %v762, %v764
      %v782 = vsel %vm779, %v764, %v766
      %v783 = vsel %vm779, %v766, %v768
      %v784 = vsel %vm779, %v768, %v770
      %v785 = vsel %vm779, %v770, %v772
      %v786 = vsel %vm779, %v772, %v774
      %v787 = vsel %vm779, %v774, %v776
      %v788 = vsel %vm779, %v776, %v778
      %798 = vst [vmem:[#allocation2 + $0x288] sm:$0xff] %v780
      %799 = vst [vmem:[#allocation2 + $0x290] sm:$0xff] %v781
      %800 = vst [vmem:[#allocation2 + $0x298] sm:$0xff] %v782
      %801 = vst [vmem:[#allocation2 + $0x2a0] sm:$0xff] %v783
      %802 = vst [vmem:[#allocation2 + $0x2a8] sm:$0xff] %v784
      %803 = vst [vmem:[#allocation2 + $0x2b0] sm:$0xff] %v785
      %804 = vst [vmem:[#allocation2 + $0x2b8] sm:$0xff] %v786
      %805 = vst [vmem:[#allocation2 + $0x2c0] sm:$0xff] %v787
      %806 = vst [vmem:[#allocation2 + $0x2c8] sm:$0xff] %v788
      %v807 = vld [vmem:[%s138] sm:$0xff]
      %v808 = vld [vmem:[%s138 + $0x8] sm:$0xff]
      %v809 = vld [vmem:[%s138 + $0x10] sm:$0xff]
      %v810 = vld [vmem:[%s138 + $0x18] sm:$0xff]
      %v811 = vld [vmem:[%s138 + $0x20] sm:$0xff]
      %v812 = vld [vmem:[%s138 + $0x28] sm:$0xff]
      %v813 = vld [vmem:[%s138 + $0x30] sm:$0xff]
      %v814 = vld [vmem:[%s138 + $0x38] sm:$0xff]
      %v815 = vld [vmem:[%s138 + $0x40] sm:$0xff]
      %v816 = vld [vmem:[%s138 + $0x48] sm:$0xff]
      %827 = vrot.lane.b32.xlu0 %v807, 62
      %v828 = vpop.permute.xlu0 %827
      %829 = vrot.lane.b32.xlu0 %v808, 62
      %v830 = vpop.permute.xlu0 %829
      %831 = vrot.lane.b32.xlu0 %v809, 62
      %v832 = vpop.permute.xlu0 %831
      %833 = vrot.lane.b32.xlu0 %v810, 62
      %v834 = vpop.permute.xlu0 %833
      %835 = vrot.lane.b32.xlu0 %v811, 62
      %v836 = vpop.permute.xlu0 %835
      %837 = vrot.lane.b32.xlu0 %v812, 62
      %v838 = vpop.permute.xlu0 %837
      %839 = vrot.lane.b32.xlu0 %v813, 62
      %v840 = vpop.permute.xlu0 %839
      %841 = vrot.lane.b32.xlu0 %v814, 62
      %v842 = vpop.permute.xlu0 %841
      %843 = vrot.lane.b32.xlu0 %v815, 62
      %v844 = vpop.permute.xlu0 %843
      %845 = vrot.lane.b32.xlu0 %v816, 62
      %v846 = vpop.permute.xlu0 %845
      %vm847 = vcmask 506880
      %v848 = vsel %vm847, %v828, %v830
      %v849 = vsel %vm847, %v830, %v832
      %v850 = vsel %vm847, %v832, %v834
      %v851 = vsel %vm847, %v834, %v836
      %v852 = vsel %vm847, %v836, %v838
      %v853 = vsel %vm847, %v838, %v840
      %v854 = vsel %vm847, %v840, %v842
      %v855 = vsel %vm847, %v842, %v844
      %v856 = vsel %vm847, %v844, %v846
      %866 = vst [vmem:[#allocation2 + $0x2d0] sm:$0xff] %v848
      %867 = vst [vmem:[#allocation2 + $0x2d8] sm:$0xff] %v849
      %868 = vst [vmem:[#allocation2 + $0x2e0] sm:$0xff] %v850
      %869 = vst [vmem:[#allocation2 + $0x2e8] sm:$0xff] %v851
      %870 = vst [vmem:[#allocation2 + $0x2f0] sm:$0xff] %v852
      %871 = vst [vmem:[#allocation2 + $0x2f8] sm:$0xff] %v853
      %872 = vst [vmem:[#allocation2 + $0x300] sm:$0xff] %v854
      %873 = vst [vmem:[#allocation2 + $0x308] sm:$0xff] %v855
      %874 = vst [vmem:[#allocation2 + $0x310] sm:$0xff] %v856
      %v875 = vld [vmem:[%s138] sm:$0xff]
      %v876 = vld [vmem:[%s138 + $0x8] sm:$0xff]
      %v877 = vld [vmem:[%s138 + $0x10] sm:$0xff]
      %v878 = vld [vmem:[%s138 + $0x18] sm:$0xff]
      %v879 = vld [vmem:[%s138 + $0x20] sm:$0xff]
      %v880 = vld [vmem:[%s138 + $0x28] sm:$0xff]
      %v881 = vld [vmem:[%s138 + $0x30] sm:$0xff]
      %v882 = vld [vmem:[%s138 + $0x38] sm:$0xff]
      %v883 = vld [vmem:[%s138 + $0x40] sm:$0xff]
      %v884 = vld [vmem:[%s138 + $0x48] sm:$0xff]
      %895 = vrot.lane.b32.xlu0 %v875, 61
      %v896 = vpop.permute.xlu0 %895
      %897 = vrot.lane.b32.xlu0 %v876, 61
      %v898 = vpop.permute.xlu0 %897
      %899 = vrot.lane.b32.xlu0 %v877, 61
      %v900 = vpop.permute.xlu0 %899
      %901 = vrot.lane.b32.xlu0 %v878, 61
      %v902 = vpop.permute.xlu0 %901
      %903 = vrot.lane.b32.xlu0 %v879, 61
      %v904 = vpop.permute.xlu0 %903
      %905 = vrot.lane.b32.xlu0 %v880, 61
      %v906 = vpop.permute.xlu0 %905
      %907 = vrot.lane.b32.xlu0 %v881, 61
      %v908 = vpop.permute.xlu0 %907
      %909 = vrot.lane.b32.xlu0 %v882, 61
      %v910 = vpop.permute.xlu0 %909
      %911 = vrot.lane.b32.xlu0 %v883, 61
      %v912 = vpop.permute.xlu0 %911
      %913 = vrot.lane.b32.xlu0 %v884, 61
      %v914 = vpop.permute.xlu0 %913
      %vm915 = vcmask 498688
      %v916 = vsel %vm915, %v896, %v898
      %v917 = vsel %vm915, %v898, %v900
      %v918 = vsel %vm915, %v900, %v902
      %v919 = vsel %vm915, %v902, %v904
      %v920 = vsel %vm915, %v904, %v906
      %v921 = vsel %vm915, %v906, %v908
      %v922 = vsel %vm915, %v908, %v910
      %v923 = vsel %vm915, %v910, %v912
      %v924 = vsel %vm915, %v912, %v914
      %934 = vst [vmem:[#allocation2 + $0x318] sm:$0xff] %v916
      %935 = vst [vmem:[#allocation2 + $0x320] sm:$0xff] %v917
      %936 = vst [vmem:[#allocation2 + $0x328] sm:$0xff] %v918
      %937 = vst [vmem:[#allocation2 + $0x330] sm:$0xff] %v919
      %938 = vst [vmem:[#allocation2 + $0x338] sm:$0xff] %v920
      %939 = vst [vmem:[#allocation2 + $0x340] sm:$0xff] %v921
      %940 = vst [vmem:[#allocation2 + $0x348] sm:$0xff] %v922
      %941 = vst [vmem:[#allocation2 + $0x350] sm:$0xff] %v923
      %942 = vst [vmem:[#allocation2 + $0x358] sm:$0xff] %v924
      %v943 = vld [vmem:[%s138] sm:$0xff]
      %v944 = vld [vmem:[%s138 + $0x8] sm:$0xff]
      %v945 = vld [vmem:[%s138 + $0x10] sm:$0xff]
      %v946 = vld [vmem:[%s138 + $0x18] sm:$0xff]
      %v947 = vld [vmem:[%s138 + $0x20] sm:$0xff]
      %v948 = vld [vmem:[%s138 + $0x28] sm:$0xff]
      %v949 = vld [vmem:[%s138 + $0x30] sm:$0xff]
      %v950 = vld [vmem:[%s138 + $0x38] sm:$0xff]
      %v951 = vld [vmem:[%s138 + $0x40] sm:$0xff]
      %v952 = vld [vmem:[%s138 + $0x48] sm:$0xff]
      %963 = vrot.lane.b32.xlu0 %v943, 32
      %v964 = vpop.permute.xlu0 %963
      %965 = vrot.lane.b32.xlu0 %v944, 32
      %v966 = vpop.permute.xlu0 %965
      %967 = vrot.lane.b32.xlu0 %v945, 32
      %v968 = vpop.permute.xlu0 %967
      %969 = vrot.lane.b32.xlu0 %v946, 32
      %v970 = vpop.permute.xlu0 %969
      %971 = vrot.lane.b32.xlu0 %v947, 32
      %v972 = vpop.permute.xlu0 %971
      %973 = vrot.lane.b32.xlu0 %v948, 32
      %v974 = vpop.permute.xlu0 %973
      %975 = vrot.lane.b32.xlu0 %v949, 32
      %v976 = vpop.permute.xlu0 %975
      %977 = vrot.lane.b32.xlu0 %v950, 32
      %v978 = vpop.permute.xlu0 %977
      %979 = vrot.lane.b32.xlu0 %v951, 32
      %v980 = vpop.permute.xlu0 %979
      %981 = vrot.lane.b32.xlu0 %v952, 32
      %v982 = vpop.permute.xlu0 %981
      %vm983 = vcmask 261120
      %v984 = vsel %vm983, %v964, %v966
      %v985 = vsel %vm983, %v966, %v968
      %v986 = vsel %vm983, %v968, %v970
      %v987 = vsel %vm983, %v970, %v972
      %v988 = vsel %vm983, %v972, %v974
      %v989 = vsel %vm983, %v974, %v976
      %v990 = vsel %vm983, %v976, %v978
      %v991 = vsel %vm983, %v978, %v980
      %v992 = vsel %vm983, %v980, %v982
      %1002 = vst [vmem:[#allocation2 + $0x360] sm:$0xff] %v984
      %1003 = vst [vmem:[#allocation2 + $0x368] sm:$0xff] %v985
      %1004 = vst [vmem:[#allocation2 + $0x370] sm:$0xff] %v986
      %1005 = vst [vmem:[#allocation2 + $0x378] sm:$0xff] %v987
      %1006 = vst [vmem:[#allocation2 + $0x380] sm:$0xff] %v988
      %1007 = vst [vmem:[#allocation2 + $0x388] sm:$0xff] %v989
      %1008 = vst [vmem:[#allocation2 + $0x390] sm:$0xff] %v990
      %1009 = vst [vmem:[#allocation2 + $0x398] sm:$0xff] %v991
      %1010 = vst [vmem:[#allocation2 + $0x3a0] sm:$0xff] %v992
      %v1011 = vld [vmem:[%s138] sm:$0xff]
      %v1012 = vld [vmem:[%s138 + $0x8] sm:$0xff]
      %v1013 = vld [vmem:[%s138 + $0x10] sm:$0xff]
      %v1014 = vld [vmem:[%s138 + $0x18] sm:$0xff]
      %v1015 = vld [vmem:[%s138 + $0x20] sm:$0xff]
      %v1016 = vld [vmem:[%s138 + $0x28] sm:$0xff]
      %v1017 = vld [vmem:[%s138 + $0x30] sm:$0xff]
      %v1018 = vld [vmem:[%s138 + $0x38] sm:$0xff]
      %v1019 = vld [vmem:[%s138 + $0x40] sm:$0xff]
      %v1020 = vld [vmem:[%s138 + $0x48] sm:$0xff]
      %1031 = vrot.lane.b32.xlu0 %v1011, 31
      %v1032 = vpop.permute.xlu0 %1031
      %1033 = vrot.lane.b32.xlu0 %v1012, 31
      %v1034 = vpop.permute.xlu0 %1033
      %1035 = vrot.lane.b32.xlu0 %v1013, 31
      %v1036 = vpop.permute.xlu0 %1035
      %1037 = vrot.lane.b32.xlu0 %v1014, 31
      %v1038 = vpop.permute.xlu0 %1037
      %1039 = vrot.lane.b32.xlu0 %v1015, 31
      %v1040 = vpop.permute.xlu0 %1039
      %1041 = vrot.lane.b32.xlu0 %v1016, 31
      %v1042 = vpop.permute.xlu0 %1041
      %1043 = vrot.lane.b32.xlu0 %v1017, 31
      %v1044 = vpop.permute.xlu0 %1043
      %1045 = vrot.lane.b32.xlu0 %v1018, 31
      %v1046 = vpop.permute.xlu0 %1045
      %1047 = vrot.lane.b32.xlu0 %v1019, 31
      %v1048 = vpop.permute.xlu0 %1047
      %1049 = vrot.lane.b32.xlu0 %v1020, 31
      %v1050 = vpop.permute.xlu0 %1049
      %vm1051 = vcmask 252928
      %v1052 = vsel %vm1051, %v1032, %v1034
      %v1053 = vsel %vm1051, %v1034, %v1036
      %v1054 = vsel %vm1051, %v1036, %v1038
      %v1055 = vsel %vm1051, %v1038, %v1040
      %v1056 = vsel %vm1051, %v1040, %v1042
      %v1057 = vsel %vm1051, %v1042, %v1044
      %v1058 = vsel %vm1051, %v1044, %v1046
      %v1059 = vsel %vm1051, %v1046, %v1048
      %v1060 = vsel %vm1051, %v1048, %v1050
      %1070 = vst [vmem:[#allocation2 + $0x3a8] sm:$0xff] %v1052
      %1071 = vst [vmem:[#allocation2 + $0x3b0] sm:$0xff] %v1053
      %1072 = vst [vmem:[#allocation2 + $0x3b8] sm:$0xff] %v1054
      %1073 = vst [vmem:[#allocation2 + $0x3c0] sm:$0xff] %v1055
      %1074 = vst [vmem:[#allocation2 + $0x3c8] sm:$0xff] %v1056
      %1075 = vst [vmem:[#allocation2 + $0x3d0] sm:$0xff] %v1057
      %1076 = vst [vmem:[#allocation2 + $0x3d8] sm:$0xff] %v1058
      %1077 = vst [vmem:[#allocation2 + $0x3e0] sm:$0xff] %v1059
      %1078 = vst [vmem:[#allocation2 + $0x3e8] sm:$0xff] %v1060
      %v1079 = vld [vmem:[%s138] sm:$0xff]
      %v1080 = vld [vmem:[%s138 + $0x8] sm:$0xff]
      %v1081 = vld [vmem:[%s138 + $0x10] sm:$0xff]
      %v1082 = vld [vmem:[%s138 + $0x18] sm:$0xff]
      %v1083 = vld [vmem:[%s138 + $0x20] sm:$0xff]
      %v1084 = vld [vmem:[%s138 + $0x28] sm:$0xff]
      %v1085 = vld [vmem:[%s138 + $0x30] sm:$0xff]
      %v1086 = vld [vmem:[%s138 + $0x38] sm:$0xff]
      %v1087 = vld [vmem:[%s138 + $0x40] sm:$0xff]
      %v1088 = vld [vmem:[%s138 + $0x48] sm:$0xff]
      %1099 = vrot.lane.b32.xlu0 %v1079, 30
      %v1100 = vpop.permute.xlu0 %1099
      %1101 = vrot.lane.b32.xlu0 %v1080, 30
      %v1102 = vpop.permute.xlu0 %1101
      %1103 = vrot.lane.b32.xlu0 %v1081, 30
      %v1104 = vpop.permute.xlu0 %1103
      %1105 = vrot.lane.b32.xlu0 %v1082, 30
      %v1106 = vpop.permute.xlu0 %1105
      %1107 = vrot.lane.b32.xlu0 %v1083, 30
      %v1108 = vpop.permute.xlu0 %1107
      %1109 = vrot.lane.b32.xlu0 %v1084, 30
      %v1110 = vpop.permute.xlu0 %1109
      %1111 = vrot.lane.b32.xlu0 %v1085, 30
      %v1112 = vpop.permute.xlu0 %1111
      %1113 = vrot.lane.b32.xlu0 %v1086, 30
      %v1114 = vpop.permute.xlu0 %1113
      %1115 = vrot.lane.b32.xlu0 %v1087, 30
      %v1116 = vpop.permute.xlu0 %1115
      %1117 = vrot.lane.b32.xlu0 %v1088, 30
      %v1118 = vpop.permute.xlu0 %1117
      %vm1119 = vcmask 244736
      %v1120 = vsel %vm1119, %v1100, %v1102
      %v1121 = vsel %vm1119, %v1102, %v1104
      %v1122 = vsel %vm1119, %v1104, %v1106
      %v1123 = vsel %vm1119, %v1106, %v1108
      %v1124 = vsel %vm1119, %v1108, %v1110
      %v1125 = vsel %vm1119, %v1110, %v1112
      %v1126 = vsel %vm1119, %v1112, %v1114
      %v1127 = vsel %vm1119, %v1114, %v1116
      %v1128 = vsel %vm1119, %v1116, %v1118
      %1138 = vst [vmem:[#allocation2 + $0x3f0] sm:$0xff] %v1120
      %1139 = vst [vmem:[#allocation2 + $0x3f8] sm:$0xff] %v1121
      %1140 = vst [vmem:[#allocation2 + $0x400] sm:$0xff] %v1122
      %1141 = vst [vmem:[#allocation2 + $0x408] sm:$0xff] %v1123
      %1142 = vst [vmem:[#allocation2 + $0x410] sm:$0xff] %v1124
      %1143 = vst [vmem:[#allocation2 + $0x418] sm:$0xff] %v1125
      %1144 = vst [vmem:[#allocation2 + $0x420] sm:$0xff] %v1126
      %1145 = vst [vmem:[#allocation2 + $0x428] sm:$0xff] %v1127
      %1146 = vst [vmem:[#allocation2 + $0x430] sm:$0xff] %v1128
      %v1147 = vld [vmem:[%s138] sm:$0xff]
      %v1148 = vld [vmem:[%s138 + $0x8] sm:$0xff]
      %v1149 = vld [vmem:[%s138 + $0x10] sm:$0xff]
      %v1150 = vld [vmem:[%s138 + $0x18] sm:$0xff]
      %v1151 = vld [vmem:[%s138 + $0x20] sm:$0xff]
      %v1152 = vld [vmem:[%s138 + $0x28] sm:$0xff]
      %v1153 = vld [vmem:[%s138 + $0x30] sm:$0xff]
      %v1154 = vld [vmem:[%s138 + $0x38] sm:$0xff]
      %v1155 = vld [vmem:[%s138 + $0x40] sm:$0xff]
      %v1156 = vld [vmem:[%s138 + $0x48] sm:$0xff]
      %1167 = vrot.lane.b32.xlu0 %v1147, 29
      %v1168 = vpop.permute.xlu0 %1167
      %1169 = vrot.lane.b32.xlu0 %v1148, 29
      %v1170 = vpop.permute.xlu0 %1169
      %1171 = vrot.lane.b32.xlu0 %v1149, 29
      %v1172 = vpop.permute.xlu0 %1171
      %1173 = vrot.lane.b32.xlu0 %v1150, 29
      %v1174 = vpop.permute.xlu0 %1173
      %1175 = vrot.lane.b32.xlu0 %v1151, 29
      %v1176 = vpop.permute.xlu0 %1175
      %1177 = vrot.lane.b32.xlu0 %v1152, 29
      %v1178 = vpop.permute.xlu0 %1177
      %1179 = vrot.lane.b32.xlu0 %v1153, 29
      %v1180 = vpop.permute.xlu0 %1179
      %1181 = vrot.lane.b32.xlu0 %v1154, 29
      %v1182 = vpop.permute.xlu0 %1181
      %1183 = vrot.lane.b32.xlu0 %v1155, 29
      %v1184 = vpop.permute.xlu0 %1183
      %1185 = vrot.lane.b32.xlu0 %v1156, 29
      %v1186 = vpop.permute.xlu0 %1185
      %vm1187 = vcmask 236544
      %v1188 = vsel %vm1187, %v1168, %v1170
      %v1189 = vsel %vm1187, %v1170, %v1172
      %v1190 = vsel %vm1187, %v1172, %v1174
      %v1191 = vsel %vm1187, %v1174, %v1176
      %v1192 = vsel %vm1187, %v1176, %v1178
      %v1193 = vsel %vm1187, %v1178, %v1180
      %v1194 = vsel %vm1187, %v1180, %v1182
      %v1195 = vsel %vm1187, %v1182, %v1184
      %v1196 = vsel %vm1187, %v1184, %v1186
      %1206 = vst [vmem:[#allocation2 + $0x438] sm:$0xff] %v1188
      %1207 = vst [vmem:[#allocation2 + $0x440] sm:$0xff] %v1189
      %1208 = vst [vmem:[#allocation2 + $0x448] sm:$0xff] %v1190
      %1209 = vst [vmem:[#allocation2 + $0x450] sm:$0xff] %v1191
      %1210 = vst [vmem:[#allocation2 + $0x458] sm:$0xff] %v1192
      %1211 = vst [vmem:[#allocation2 + $0x460] sm:$0xff] %v1193
      %1212 = vst [vmem:[#allocation2 + $0x468] sm:$0xff] %v1194
      %1213 = vst [vmem:[#allocation2 + $0x470] sm:$0xff] %v1195
      %1214 = vst [vmem:[#allocation2 + $0x478] sm:$0xff] %v1196
      %v1215 = vld [vmem:[#allocation2] sm:$0xff]
      %v1216 = vld [vmem:[#allocation2 + $0x8] sm:$0xff]
      %v1217 = vld [vmem:[#allocation2 + $0x10] sm:$0xff]
      %v1218 = vld [vmem:[#allocation2 + $0x18] sm:$0xff]
      %v1219 = vld [vmem:[#allocation2 + $0x20] sm:$0xff]
      %v1220 = vld [vmem:[#allocation2 + $0x28] sm:$0xff]
      %v1221 = vld [vmem:[#allocation2 + $0x30] sm:$0xff]
      %v1222 = vld [vmem:[#allocation2 + $0x38] sm:$0xff]
      %v1223 = vld [vmem:[#allocation2 + $0x40] sm:$0xff]
      %v1224 = vld [vmem:[#allocation2 + $0x48] sm:$0xff]
      %v1225 = vld [vmem:[#allocation2 + $0x50] sm:$0xff]
      %v1226 = vld [vmem:[#allocation2 + $0x58] sm:$0xff]
      %v1227 = vld [vmem:[#allocation2 + $0x60] sm:$0xff]
      %v1228 = vld [vmem:[#allocation2 + $0x68] sm:$0xff]
      %v1229 = vld [vmem:[#allocation2 + $0x70] sm:$0xff]
      %v1230 = vld [vmem:[#allocation2 + $0x78] sm:$0xff]
      %v1231 = vld [vmem:[#allocation2 + $0x80] sm:$0xff]
      %v1232 = vld [vmem:[#allocation2 + $0x88] sm:$0xff]
      %v1233 = vld [vmem:[#allocation2 + $0x90] sm:$0xff]
      %v1234 = vld [vmem:[#allocation2 + $0x98] sm:$0xff]
      %v1235 = vld [vmem:[#allocation2 + $0xa0] sm:$0xff]
      %v1236 = vld [vmem:[#allocation2 + $0xa8] sm:$0xff]
      %v1237 = vld [vmem:[#allocation2 + $0xb0] sm:$0xff]
      %v1238 = vld [vmem:[#allocation2 + $0xb8] sm:$0xff]
      %v1239 = vld [vmem:[#allocation2 + $0xc0] sm:$0xff]
      %v1240 = vld [vmem:[#allocation2 + $0xc8] sm:$0xff]
      %v1241 = vld [vmem:[#allocation2 + $0xd0] sm:$0xff]
      %v1242 = vld [vmem:[#allocation2 + $0xd8] sm:$0xff]
      %v1243 = vld [vmem:[#allocation2 + $0xe0] sm:$0xff]
      %v1244 = vld [vmem:[#allocation2 + $0xe8] sm:$0xff]
      %v1245 = vld [vmem:[#allocation2 + $0xf0] sm:$0xff]
      %v1246 = vld [vmem:[#allocation2 + $0xf8] sm:$0xff]
      %v1247 = vld [vmem:[#allocation2 + $0x100] sm:$0xff]
      %v1248 = vld [vmem:[#allocation2 + $0x108] sm:$0xff]
      %v1249 = vld [vmem:[#allocation2 + $0x110] sm:$0xff]
      %v1250 = vld [vmem:[#allocation2 + $0x118] sm:$0xff]
      %v1251 = vld [vmem:[#allocation2 + $0x120] sm:$0xff]
      %v1252 = vld [vmem:[#allocation2 + $0x128] sm:$0xff]
      %v1253 = vld [vmem:[#allocation2 + $0x130] sm:$0xff]
      %v1254 = vld [vmem:[#allocation2 + $0x138] sm:$0xff]
      %v1255 = vld [vmem:[#allocation2 + $0x140] sm:$0xff]
      %v1256 = vld [vmem:[#allocation2 + $0x148] sm:$0xff]
      %v1257 = vld [vmem:[#allocation2 + $0x150] sm:$0xff]
      %v1258 = vld [vmem:[#allocation2 + $0x158] sm:$0xff]
      %v1259 = vld [vmem:[#allocation2 + $0x160] sm:$0xff]
      %v1260 = vld [vmem:[#allocation2 + $0x168] sm:$0xff]
      %v1261 = vld [vmem:[#allocation2 + $0x170] sm:$0xff]
      %v1262 = vld [vmem:[#allocation2 + $0x178] sm:$0xff]
      %v1263 = vld [vmem:[#allocation2 + $0x180] sm:$0xff]
      %v1264 = vld [vmem:[#allocation2 + $0x188] sm:$0xff]
      %v1265 = vld [vmem:[#allocation2 + $0x190] sm:$0xff]
      %v1266 = vld [vmem:[#allocation2 + $0x198] sm:$0xff]
      %v1267 = vld [vmem:[#allocation2 + $0x1a0] sm:$0xff]
      %v1268 = vld [vmem:[#allocation2 + $0x1a8] sm:$0xff]
      %v1269 = vld [vmem:[#allocation2 + $0x1b0] sm:$0xff]
      %v1270 = vld [vmem:[#allocation2 + $0x1b8] sm:$0xff]
      %v1271 = vld [vmem:[#allocation2 + $0x1c0] sm:$0xff]
      %v1272 = vld [vmem:[#allocation2 + $0x1c8] sm:$0xff]
      %v1273 = vld [vmem:[#allocation2 + $0x1d0] sm:$0xff]
      %v1274 = vld [vmem:[#allocation2 + $0x1d8] sm:$0xff]
      %v1275 = vld [vmem:[#allocation2 + $0x1e0] sm:$0xff]
      %v1276 = vld [vmem:[#allocation2 + $0x1e8] sm:$0xff]
      %v1277 = vld [vmem:[#allocation2 + $0x1f0] sm:$0xff]
      %v1278 = vld [vmem:[#allocation2 + $0x1f8] sm:$0xff]
      %v1279 = vld [vmem:[#allocation2 + $0x200] sm:$0xff]
      %v1280 = vld [vmem:[#allocation2 + $0x208] sm:$0xff]
      %v1281 = vld [vmem:[#allocation2 + $0x210] sm:$0xff]
      %v1282 = vld [vmem:[#allocation2 + $0x218] sm:$0xff]
      %v1283 = vld [vmem:[#allocation2 + $0x220] sm:$0xff]
      %v1284 = vld [vmem:[#allocation2 + $0x228] sm:$0xff]
      %v1285 = vld [vmem:[#allocation2 + $0x230] sm:$0xff]
      %v1286 = vld [vmem:[#allocation2 + $0x238] sm:$0xff]
      %v1287 = vld [vmem:[#allocation2 + $0x240] sm:$0xff]
      %v1288 = vld [vmem:[#allocation2 + $0x248] sm:$0xff]
      %v1289 = vld [vmem:[#allocation2 + $0x250] sm:$0xff]
      %v1290 = vld [vmem:[#allocation2 + $0x258] sm:$0xff]
      %v1291 = vld [vmem:[#allocation2 + $0x260] sm:$0xff]
      %v1292 = vld [vmem:[#allocation2 + $0x268] sm:$0xff]
      %v1293 = vld [vmem:[#allocation2 + $0x270] sm:$0xff]
      %v1294 = vld [vmem:[#allocation2 + $0x278] sm:$0xff]
      %v1295 = vld [vmem:[#allocation2 + $0x280] sm:$0xff]
      %v1296 = vld [vmem:[#allocation2 + $0x288] sm:$0xff]
      %v1297 = vld [vmem:[#allocation2 + $0x290] sm:$0xff]
      %v1298 = vld [vmem:[#allocation2 + $0x298] sm:$0xff]
      %v1299 = vld [vmem:[#allocation2 + $0x2a0] sm:$0xff]
      %v1300 = vld [vmem:[#allocation2 + $0x2a8] sm:$0xff]
      %v1301 = vld [vmem:[#allocation2 + $0x2b0] sm:$0xff]
      %v1302 = vld [vmem:[#allocation2 + $0x2b8] sm:$0xff]
      %v1303 = vld [vmem:[#allocation2 + $0x2c0] sm:$0xff]
      %v1304 = vld [vmem:[#allocation2 + $0x2c8] sm:$0xff]
      %v1305 = vld [vmem:[#allocation2 + $0x2d0] sm:$0xff]
      %v1306 = vld [vmem:[#allocation2 + $0x2d8] sm:$0xff]
      %v1307 = vld [vmem:[#allocation2 + $0x2e0] sm:$0xff]
      %v1308 = vld [vmem:[#allocation2 + $0x2e8] sm:$0xff]
      %v1309 = vld [vmem:[#allocation2 + $0x2f0] sm:$0xff]
      %v1310 = vld [vmem:[#allocation2 + $0x2f8] sm:$0xff]
      %v1311 = vld [vmem:[#allocation2 + $0x300] sm:$0xff]
      %v1312 = vld [vmem:[#allocation2 + $0x308] sm:$0xff]
      %v1313 = vld [vmem:[#allocation2 + $0x310] sm:$0xff]
      %v1314 = vld [vmem:[#allocation2 + $0x318] sm:$0xff]
      %v1315 = vld [vmem:[#allocation2 + $0x320] sm:$0xff]
      %v1316 = vld [vmem:[#allocation2 + $0x328] sm:$0xff]
      %v1317 = vld [vmem:[#allocation2 + $0x330] sm:$0xff]
      %v1318 = vld [vmem:[#allocation2 + $0x338] sm:$0xff]
      %v1319 = vld [vmem:[#allocation2 + $0x340] sm:$0xff]
      %v1320 = vld [vmem:[#allocation2 + $0x348] sm:$0xff]
      %v1321 = vld [vmem:[#allocation2 + $0x350] sm:$0xff]
      %v1322 = vld [vmem:[#allocation2 + $0x358] sm:$0xff]
      %v1323 = vld [vmem:[#allocation2 + $0x360] sm:$0xff]
      %v1324 = vld [vmem:[#allocation2 + $0x368] sm:$0xff]
      %v1325 = vld [vmem:[#allocation2 + $0x370] sm:$0xff]
      %v1326 = vld [vmem:[#allocation2 + $0x378] sm:$0xff]
      %v1327 = vld [vmem:[#allocation2 + $0x380] sm:$0xff]
      %v1328 = vld [vmem:[#allocation2 + $0x388] sm:$0xff]
      %v1329 = vld [vmem:[#allocation2 + $0x390] sm:$0xff]
      %v1330 = vld [vmem:[#allocation2 + $0x398] sm:$0xff]
      %v1331 = vld [vmem:[#allocation2 + $0x3a0] sm:$0xff]
      %v1332 = vld [vmem:[#allocation2 + $0x3a8] sm:$0xff]
      %v1333 = vld [vmem:[#allocation2 + $0x3b0] sm:$0xff]
      %v1334 = vld [vmem:[#allocation2 + $0x3b8] sm:$0xff]
      %v1335 = vld [vmem:[#allocation2 + $0x3c0] sm:$0xff]
      %v1336 = vld [vmem:[#allocation2 + $0x3c8] sm:$0xff]
      %v1337 = vld [vmem:[#allocation2 + $0x3d0] sm:$0xff]
      %v1338 = vld [vmem:[#allocation2 + $0x3d8] sm:$0xff]
      %v1339 = vld [vmem:[#allocation2 + $0x3e0] sm:$0xff]
      %v1340 = vld [vmem:[#allocation2 + $0x3e8] sm:$0xff]
      %v1341 = vld [vmem:[#allocation2 + $0x3f0] sm:$0xff]
      %v1342 = vld [vmem:[#allocation2 + $0x3f8] sm:$0xff]
      %v1343 = vld [vmem:[#allocation2 + $0x400] sm:$0xff]
      %v1344 = vld [vmem:[#allocation2 + $0x408] sm:$0xff]
      %v1345 = vld [vmem:[#allocation2 + $0x410] sm:$0xff]
      %v1346 = vld [vmem:[#allocation2 + $0x418] sm:$0xff]
      %v1347 = vld [vmem:[#allocation2 + $0x420] sm:$0xff]
      %v1348 = vld [vmem:[#allocation2 + $0x428] sm:$0xff]
      %v1349 = vld [vmem:[#allocation2 + $0x430] sm:$0xff]
      %v1350 = vld [vmem:[#allocation2 + $0x438] sm:$0xff]
      %v1351 = vld [vmem:[#allocation2 + $0x440] sm:$0xff]
      %v1352 = vld [vmem:[#allocation2 + $0x448] sm:$0xff]
      %v1353 = vld [vmem:[#allocation2 + $0x450] sm:$0xff]
      %v1354 = vld [vmem:[#allocation2 + $0x458] sm:$0xff]
      %v1355 = vld [vmem:[#allocation2 + $0x460] sm:$0xff]
      %v1356 = vld [vmem:[#allocation2 + $0x468] sm:$0xff]
      %v1357 = vld [vmem:[#allocation2 + $0x470] sm:$0xff]
      %v1358 = vld [vmem:[#allocation2 + $0x478] sm:$0xff]
      %1359 = vmatprep.subr.mxu0 %v1216
      %1360 = vmatpush1.msra.mxu0 %v1215
      %1361 = vmatprep.subr.mxu0 %v1225
      %1362 = vmatpush1.msra.mxu0 %v1224
      %1363 = vmatprep.subr.mxu0 %v1234
      %1364 = vmatpush1.msra.mxu0 %v1233
      %1365 = vmatprep.subr.mxu0 %v1243
      %1366 = vmatpush1.msra.mxu0 %v1242
      %1367 = vmatprep.subr.mxu0 %v1252
      %1368 = vmatpush1.msra.mxu0 %v1251
      %1369 = vmatprep.subr.mxu0 %v1261
      %1370 = vmatpush1.msra.mxu0 %v1260
      %1371 = vmatprep.subr.mxu0 %v1270
      %1372 = vmatpush1.msra.mxu0 %v1269
      %1373 = vmatprep.subr.mxu0 %v1279
      %1374 = vmatpush1.msra.mxu0 %v1278
      %1375 = vmatprep.subr.mxu0 %v1288
      %1376 = vmatpush1.msra.mxu0 %v1287
      %1377 = vmatprep.subr.mxu0 %v1297
      %1378 = vmatpush1.msra.mxu0 %v1296
      %1379 = vmatprep.subr.mxu0 %v1306
      %1380 = vmatpush1.msra.mxu0 %v1305
      %1381 = vmatprep.subr.mxu0 %v1315
      %1382 = vmatpush1.msra.mxu0 %v1314
      %1383 = vmatprep.subr.mxu0 %v1324
      %1384 = vmatpush1.msra.mxu0 %v1323
      %1385 = vmatprep.subr.mxu0 %v1333
      %1386 = vmatpush1.msra.mxu0 %v1332
      %1387 = vmatprep.subr.mxu0 %v1342
      %1388 = vmatpush1.msra.mxu0 %v1341
      %1389 = vmatprep.subr.mxu0 %v1351
      %1390 = vmatpush1.msra.mxu0 %v1350
      %1391 = vmatprep.subr.mxu0 0.0
      %1392 = vmatpush1.msra.mxu0 0.0
      %1393 = vmatprep.subr.mxu0 0.0
      %1394 = vmatpush1.msra.mxu0 0.0
      %1395 = vmatprep.subr.mxu0 0.0
      %1396 = vmatpush1.msra.mxu0 0.0
      %1397 = vmatprep.subr.mxu0 0.0
      %1398 = vmatpush1.msra.mxu0 0.0
      %1399 = vmatprep.subr.mxu0 0.0
      %1400 = vmatpush1.msra.mxu0 0.0
      %1401 = vmatprep.subr.mxu0 0.0
      %1402 = vmatpush1.msra.mxu0 0.0
      %1403 = vmatprep.subr.mxu0 0.0
      %1404 = vmatpush1.msra.mxu0 0.0
      %1405 = vmatprep.subr.mxu0 0.0
      %1406 = vmatpush1.msra.mxu0 0.0
      %1407 = vmatprep.subr.mxu0 0.0
      %1408 = vmatpush1.msra.mxu0 0.0
      %1409 = vmatprep.subr.mxu0 0.0
      %1410 = vmatpush1.msra.mxu0 0.0
      %1411 = vmatprep.subr.mxu0 0.0
      %1412 = vmatpush1.msra.mxu0 0.0
      %1413 = vmatprep.subr.mxu0 0.0
      %1414 = vmatpush1.msra.mxu0 0.0
      %1415 = vmatprep.subr.mxu0 0.0
      %1416 = vmatpush1.msra.mxu0 0.0
      %1417 = vmatprep.subr.mxu0 0.0
      %1418 = vmatpush1.msra.mxu0 0.0
      %1419 = vmatprep.subr.mxu0 0.0
      %1420 = vmatpush1.msra.mxu0 0.0
      %1421 = vmatprep.subr.mxu0 0.0
      %1422 = vmatpush1.msra.mxu0 0.0
      %1423 = vmatprep.mubr.f32.mxu0 0.0
      %1424 = vmatmul.mubr.f32.gmra.mrb[0].mxu0 %v166
      %v1425 = vpop.f32.mrb[0].mxu0
      %v1426 = vadd.f32 0.0, %v1425
      %v1427 = vpop.f32.mrb[0].mxu0
      %v1428 = vadd.f32 0.0, %v1427
      %1429 = vmatprep.mubr.f32.mxu0 0.0
      %1430 = vmatmul.mubr.f32.gmra.mrb[0].mxu0 %v167
      %v1431 = vpop.f32.mrb[0].mxu0
      %v1432 = vadd.f32 0.0, %v1431
      %v1433 = vpop.f32.mrb[0].mxu0
      %v1434 = vadd.f32 0.0, %v1433
      %1435 = vdwg.mxu0
      %1436 = vmatprep.subr.mxu0 %v1218
      %1437 = vmatpush1.msra.mxu0 %v1217
      %1438 = vmatprep.subr.mxu0 %v1227
      %1439 = vmatpush1.msra.mxu0 %v1226
      %1440 = vmatprep.subr.mxu0 %v1236
      %1441 = vmatpush1.msra.mxu0 %v1235
      %1442 = vmatprep.subr.mxu0 %v1245
      %1443 = vmatpush1.msra.mxu0 %v1244
      %1444 = vmatprep.subr.mxu0 %v1254
      %1445 = vmatpush1.msra.mxu0 %v1253
      %1446 = vmatprep.subr.mxu0 %v1263
      %1447 = vmatpush1.msra.mxu0 %v1262
      %1448 = vmatprep.subr.mxu0 %v1272
      %1449 = vmatpush1.msra.mxu0 %v1271
      %1450 = vmatprep.subr.mxu0 %v1281
      %1451 = vmatpush1.msra.mxu0 %v1280
      %1452 = vmatprep.subr.mxu0 %v1290
      %1453 = vmatpush1.msra.mxu0 %v1289
      %1454 = vmatprep.subr.mxu0 %v1299
      %1455 = vmatpush1.msra.mxu0 %v1298
      %1456 = vmatprep.subr.mxu0 %v1308
      %1457 = vmatpush1.msra.mxu0 %v1307
      %1458 = vmatprep.subr.mxu0 %v1317
      %1459 = vmatpush1.msra.mxu0 %v1316
      %1460 = vmatprep.subr.mxu0 %v1326
      %1461 = vmatpush1.msra.mxu0 %v1325
      %1462 = vmatprep.subr.mxu0 %v1335
      %1463 = vmatpush1.msra.mxu0 %v1334
      %1464 = vmatprep.subr.mxu0 %v1344
      %1465 = vmatpush1.msra.mxu0 %v1343
      %1466 = vmatprep.subr.mxu0 %v1353
      %1467 = vmatpush1.msra.mxu0 %v1352
      %1468 = vmatprep.subr.mxu0 0.0
      %1469 = vmatpush1.msra.mxu0 0.0
      %1470 = vmatprep.subr.mxu0 0.0
      %1471 = vmatpush1.msra.mxu0 0.0
      %1472 = vmatprep.subr.mxu0 0.0
      %1473 = vmatpush1.msra.mxu0 0.0
      %1474 = vmatprep.subr.mxu0 0.0
      %1475 = vmatpush1.msra.mxu0 0.0
      %1476 = vmatprep.subr.mxu0 0.0
      %1477 = vmatpush1.msra.mxu0 0.0
      %1478 = vmatprep.subr.mxu0 0.0
      %1479 = vmatpush1.msra.mxu0 0.0
      %1480 = vmatprep.subr.mxu0 0.0
      %1481 = vmatpush1.msra.mxu0 0.0
      %1482 = vmatprep.subr.mxu0 0.0
      %1483 = vmatpush1.msra.mxu0 0.0
      %1484 = vmatprep.subr.mxu0 0.0
      %1485 = vmatpush1.msra.mxu0 0.0
      %1486 = vmatprep.subr.mxu0 0.0
      %1487 = vmatpush1.msra.mxu0 0.0
      %1488 = vmatprep.subr.mxu0 0.0
      %1489 = vmatpush1.msra.mxu0 0.0
      %1490 = vmatprep.subr.mxu0 0.0
      %1491 = vmatpush1.msra.mxu0 0.0
      %1492 = vmatprep.subr.mxu0 0.0
      %1493 = vmatpush1.msra.mxu0 0.0
      %1494 = vmatprep.subr.mxu0 0.0
      %1495 = vmatpush1.msra.mxu0 0.0
      %1496 = vmatprep.subr.mxu0 0.0
      %1497 = vmatpush1.msra.mxu0 0.0
      %1498 = vmatprep.subr.mxu0 0.0
      %1499 = vmatpush1.msra.mxu0 0.0
      %1500 = vmatprep.mubr.f32.mxu0 0.0
      %1501 = vmatmul.mubr.f32.gmra.mrb[0].mxu0 %v166
      %v1502 = vpop.f32.mrb[0].mxu0
      %v1503 = vadd.f32 0.0, %v1502
      %v1504 = vpop.f32.mrb[0].mxu0
      %v1505 = vadd.f32 0.0, %v1504
      %1506 = vmatprep.mubr.f32.mxu0 0.0
      %1507 = vmatmul.mubr.f32.gmra.mrb[0].mxu0 %v167
      %v1508 = vpop.f32.mrb[0].mxu0
      %v1509 = vadd.f32 0.0, %v1508
      %v1510 = vpop.f32.mrb[0].mxu0
      %v1511 = vadd.f32 0.0, %v1510
      %1512 = vdwg.mxu0
      %1513 = vmatprep.subr.mxu0 %v1220
      %1514 = vmatpush1.msra.mxu0 %v1219
      %1515 = vmatprep.subr.mxu0 %v1229
      %1516 = vmatpush1.msra.mxu0 %v1228
      %1517 = vmatprep.subr.mxu0 %v1238
      %1518 = vmatpush1.msra.mxu0 %v1237
      %1519 = vmatprep.subr.mxu0 %v1247
      %1520 = vmatpush1.msra.mxu0 %v1246
      %1521 = vmatprep.subr.mxu0 %v1256
      %1522 = vmatpush1.msra.mxu0 %v1255
      %1523 = vmatprep.subr.mxu0 %v1265
      %1524 = vmatpush1.msra.mxu0 %v1264
      %1525 = vmatprep.subr.mxu0 %v1274
      %1526 = vmatpush1.msra.mxu0 %v1273
      %1527 = vmatprep.subr.mxu0 %v1283
      %1528 = vmatpush1.msra.mxu0 %v1282
      %1529 = vmatprep.subr.mxu0 %v1292
      %1530 = vmatpush1.msra.mxu0 %v1291
      %1531 = vmatprep.subr.mxu0 %v1301
      %1532 = vmatpush1.msra.mxu0 %v1300
      %1533 = vmatprep.subr.mxu0 %v1310
      %1534 = vmatpush1.msra.mxu0 %v1309
      %1535 = vmatprep.subr.mxu0 %v1319
      %1536 = vmatpush1.msra.mxu0 %v1318
      %1537 = vmatprep.subr.mxu0 %v1328
      %1538 = vmatpush1.msra.mxu0 %v1327
      %1539 = vmatprep.subr.mxu0 %v1337
      %1540 = vmatpush1.msra.mxu0 %v1336
      %1541 = vmatprep.subr.mxu0 %v1346
      %1542 = vmatpush1.msra.mxu0 %v1345
      %1543 = vmatprep.subr.mxu0 %v1355
      %1544 = vmatpush1.msra.mxu0 %v1354
      %1545 = vmatprep.subr.mxu0 0.0
      %1546 = vmatpush1.msra.mxu0 0.0
      %1547 = vmatprep.subr.mxu0 0.0
      %1548 = vmatpush1.msra.mxu0 0.0
      %1549 = vmatprep.subr.mxu0 0.0
      %1550 = vmatpush1.msra.mxu0 0.0
      %1551 = vmatprep.subr.mxu0 0.0
      %1552 = vmatpush1.msra.mxu0 0.0
      %1553 = vmatprep.subr.mxu0 0.0
      %1554 = vmatpush1.msra.mxu0 0.0
      %1555 = vmatprep.subr.mxu0 0.0
      %1556 = vmatpush1.msra.mxu0 0.0
      %1557 = vmatprep.subr.mxu0 0.0
      %1558 = vmatpush1.msra.mxu0 0.0
      %1559 = vmatprep.subr.mxu0 0.0
      %1560 = vmatpush1.msra.mxu0 0.0
      %1561 = vmatprep.subr.mxu0 0.0
      %1562 = vmatpush1.msra.mxu0 0.0
      %1563 = vmatprep.subr.mxu0 0.0
      %1564 = vmatpush1.msra.mxu0 0.0
      %1565 = vmatprep.subr.mxu0 0.0
      %1566 = vmatpush1.msra.mxu0 0.0
      %1567 = vmatprep.subr.mxu0 0.0
      %1568 = vmatpush1.msra.mxu0 0.0
      %1569 = vmatprep.subr.mxu0 0.0
      %1570 = vmatpush1.msra.mxu0 0.0
      %1571 = vmatprep.subr.mxu0 0.0
      %1572 = vmatpush1.msra.mxu0 0.0
      %1573 = vmatprep.subr.mxu0 0.0
      %1574 = vmatpush1.msra.mxu0 0.0
      %1575 = vmatprep.subr.mxu0 0.0
      %1576 = vmatpush1.msra.mxu0 0.0
      %1577 = vmatprep.mubr.f32.mxu0 0.0
      %1578 = vmatmul.mubr.f32.gmra.mrb[0].mxu0 %v166
      %v1579 = vpop.f32.mrb[0].mxu0
      %v1580 = vadd.f32 0.0, %v1579
      %v1581 = vpop.f32.mrb[0].mxu0
      %v1582 = vadd.f32 0.0, %v1581
      %1583 = vmatprep.mubr.f32.mxu0 0.0
      %1584 = vmatmul.mubr.f32.gmra.mrb[0].mxu0 %v167
      %v1585 = vpop.f32.mrb[0].mxu0
      %v1586 = vadd.f32 0.0, %v1585
      %v1587 = vpop.f32.mrb[0].mxu0
      %v1588 = vadd.f32 0.0, %v1587
      %1589 = vdwg.mxu0
      %1590 = vmatprep.subr.mxu0 %v1222
      %1591 = vmatpush1.msra.mxu0 %v1221
      %1592 = vmatprep.subr.mxu0 %v1231
      %1593 = vmatpush1.msra.mxu0 %v1230
      %1594 = vmatprep.subr.mxu0 %v1240
      %1595 = vmatpush1.msra.mxu0 %v1239
      %1596 = vmatprep.subr.mxu0 %v1249
      %1597 = vmatpush1.msra.mxu0 %v1248
      %1598 = vmatprep.subr.mxu0 %v1258
      %1599 = vmatpush1.msra.mxu0 %v1257
      %1600 = vmatprep.subr.mxu0 %v1267
      %1601 = vmatpush1.msra.mxu0 %v1266
      %1602 = vmatprep.subr.mxu0 %v1276
      %1603 = vmatpush1.msra.mxu0 %v1275
      %1604 = vmatprep.subr.mxu0 %v1285
      %1605 = vmatpush1.msra.mxu0 %v1284
      %1606 = vmatprep.subr.mxu0 %v1294
      %1607 = vmatpush1.msra.mxu0 %v1293
      %1608 = vmatprep.subr.mxu0 %v1303
      %1609 = vmatpush1.msra.mxu0 %v1302
      %1610 = vmatprep.subr.mxu0 %v1312
      %1611 = vmatpush1.msra.mxu0 %v1311
      %1612 = vmatprep.subr.mxu0 %v1321
      %1613 = vmatpush1.msra.mxu0 %v1320
      %1614 = vmatprep.subr.mxu0 %v1330
      %1615 = vmatpush1.msra.mxu0 %v1329
      %1616 = vmatprep.subr.mxu0 %v1339
      %1617 = vmatpush1.msra.mxu0 %v1338
      %1618 = vmatprep.subr.mxu0 %v1348
      %1619 = vmatpush1.msra.mxu0 %v1347
      %1620 = vmatprep.subr.mxu0 %v1357
      %1621 = vmatpush1.msra.mxu0 %v1356
      %1622 = vmatprep.subr.mxu0 0.0
      %1623 = vmatpush1.msra.mxu0 0.0
      %1624 = vmatprep.subr.mxu0 0.0
      %1625 = vmatpush1.msra.mxu0 0.0
      %1626 = vmatprep.subr.mxu0 0.0
      %1627 = vmatpush1.msra.mxu0 0.0
      %1628 = vmatprep.subr.mxu0 0.0
      %1629 = vmatpush1.msra.mxu0 0.0
      %1630 = vmatprep.subr.mxu0 0.0
      %1631 = vmatpush1.msra.mxu0 0.0
      %1632 = vmatprep.subr.mxu0 0.0
      %1633 = vmatpush1.msra.mxu0 0.0
      %1634 = vmatprep.subr.mxu0 0.0
      %1635 = vmatpush1.msra.mxu0 0.0
      %1636 = vmatprep.subr.mxu0 0.0
      %1637 = vmatpush1.msra.mxu0 0.0
      %1638 = vmatprep.subr.mxu0 0.0
      %1639 = vmatpush1.msra.mxu0 0.0
      %1640 = vmatprep.subr.mxu0 0.0
      %1641 = vmatpush1.msra.mxu0 0.0
      %1642 = vmatprep.subr.mxu0 0.0
      %1643 = vmatpush1.msra.mxu0 0.0
      %1644 = vmatprep.subr.mxu0 0.0
      %1645 = vmatpush1.msra.mxu0 0.0
      %1646 = vmatprep.subr.mxu0 0.0
      %1647 = vmatpush1.msra.mxu0 0.0
      %1648 = vmatprep.subr.mxu0 0.0
      %1649 = vmatpush1.msra.mxu0 0.0
      %1650 = vmatprep.subr.mxu0 0.0
      %1651 = vmatpush1.msra.mxu0 0.0
      %1652 = vmatprep.subr.mxu0 0.0
      %1653 = vmatpush1.msra.mxu0 0.0
      %1654 = vmatprep.mubr.f32.mxu0 0.0
      %1655 = vmatmul.mubr.f32.gmra.mrb[0].mxu0 %v166
      %v1656 = vpop.f32.mrb[0].mxu0
      %v1657 = vadd.f32 0.0, %v1656
      %v1658 = vpop.f32.mrb[0].mxu0
      %v1659 = vadd.f32 0.0, %v1658
      %1660 = vmatprep.mubr.f32.mxu0 0.0
      %1661 = vmatmul.mubr.f32.gmra.mrb[0].mxu0 %v167
      %v1662 = vpop.f32.mrb[0].mxu0
      %v1663 = vadd.f32 0.0, %v1662
      %v1664 = vpop.f32.mrb[0].mxu0
      %v1665 = vadd.f32 0.0, %v1664
      %1666 = vdwg.mxu0
      %1667 = vmatprep.subr.mxu0 0.0
      %1668 = vmatpush1.msra.mxu0 %v1223
      %1669 = vmatprep.subr.mxu0 0.0
      %1670 = vmatpush1.msra.mxu0 %v1232
      %1671 = vmatprep.subr.mxu0 0.0
      %1672 = vmatpush1.msra.mxu0 %v1241
      %1673 = vmatprep.subr.mxu0 0.0
      %1674 = vmatpush1.msra.mxu0 %v1250
      %1675 = vmatprep.subr.mxu0 0.0
      %1676 = vmatpush1.msra.mxu0 %v1259
      %1677 = vmatprep.subr.mxu0 0.0
      %1678 = vmatpush1.msra.mxu0 %v1268
      %1679 = vmatprep.subr.mxu0 0.0
      %1680 = vmatpush1.msra.mxu0 %v1277
      %1681 = vmatprep.subr.mxu0 0.0
      %1682 = vmatpush1.msra.mxu0 %v1286
      %1683 = vmatprep.subr.mxu0 0.0
      %1684 = vmatpush1.msra.mxu0 %v1295
      %1685 = vmatprep.subr.mxu0 0.0
      %1686 = vmatpush1.msra.mxu0 %v1304
      %1687 = vmatprep.subr.mxu0 0.0
      %1688 = vmatpush1.msra.mxu0 %v1313
      %1689 = vmatprep.subr.mxu0 0.0
      %1690 = vmatpush1.msra.mxu0 %v1322
      %1691 = vmatprep.subr.mxu0 0.0
      %1692 = vmatpush1.msra.mxu0 %v1331
      %1693 = vmatprep.subr.mxu0 0.0
      %1694 = vmatpush1.msra.mxu0 %v1340
      %1695 = vmatprep.subr.mxu0 0.0
      %1696 = vmatpush1.msra.mxu0 %v1349
      %1697 = vmatprep.subr.mxu0 0.0
      %1698 = vmatpush1.msra.mxu0 %v1358
      %1699 = vmatprep.subr.mxu0 0.0
      %1700 = vmatpush1.msra.mxu0 0.0
      %1701 = vmatprep.subr.mxu0 0.0
      %1702 = vmatpush1.msra.mxu0 0.0
      %1703 = vmatprep.subr.mxu0 0.0
      %1704 = vmatpush1.msra.mxu0 0.0
      %1705 = vmatprep.subr.mxu0 0.0
      %1706 = vmatpush1.msra.mxu0 0.0
      %1707 = vmatprep.subr.mxu0 0.0
      %1708 = vmatpush1.msra.mxu0 0.0
      %1709 = vmatprep.subr.mxu0 0.0
      %1710 = vmatpush1.msra.mxu0 0.0
      %1711 = vmatprep.subr.mxu0 0.0
      %1712 = vmatpush1.msra.mxu0 0.0
      %1713 = vmatprep.subr.mxu0 0.0
      %1714 = vmatpush1.msra.mxu0 0.0
      %1715 = vmatprep.subr.mxu0 0.0
      %1716 = vmatpush1.msra.mxu0 0.0
      %1717 = vmatprep.subr.mxu0 0.0
      %1718 = vmatpush1.msra.mxu0 0.0
      %1719 = vmatprep.subr.mxu0 0.0
      %1720 = vmatpush1.msra.mxu0 0.0
      %1721 = vmatprep.subr.mxu0 0.0
      %1722 = vmatpush1.msra.mxu0 0.0
      %1723 = vmatprep.subr.mxu0 0.0
      %1724 = vmatpush1.msra.mxu0 0.0
      %1725 = vmatprep.subr.mxu0 0.0
      %1726 = vmatpush1.msra.mxu0 0.0
      %1727 = vmatprep.subr.mxu0 0.0
      %1728 = vmatpush1.msra.mxu0 0.0
      %1729 = vmatprep.subr.mxu0 0.0
      %1730 = vmatpush1.msra.mxu0 0.0
      %1731 = vmatprep.mubr.f32.mxu0 0.0
      %1732 = vmatmul.mubr.f32.gmra.mrb[0].mxu0 %v166
      %v1733 = vpop.f32.mrb[0].mxu0
      %v1734 = vadd.f32 0.0, %v1733
      %v1735 = vpop.f32.mrb[0].mxu0
      %1736 = vmatprep.mubr.f32.mxu0 0.0
      %1737 = vmatmul.mubr.f32.gmra.mrb[0].mxu0 %v167
      %v1738 = vpop.f32.mrb[0].mxu0
      %v1739 = vadd.f32 0.0, %v1738
      %v1740 = vpop.f32.mrb[0].mxu0
      %1741 = vdwg.mxu0
      %1742 = vst [vmem:[#allocation3] sm:$0xff] %v1426
      %1743 = vst [vmem:[#allocation3 + $0x8] sm:$0xff] %v1428
      %1744 = vst [vmem:[#allocation3 + $0x10] sm:$0xff] %v1503
      %1745 = vst [vmem:[#allocation3 + $0x18] sm:$0xff] %v1505
      %1746 = vst [vmem:[#allocation3 + $0x20] sm:$0xff] %v1580
      %1747 = vst [vmem:[#allocation3 + $0x28] sm:$0xff] %v1582
      %1748 = vst [vmem:[#allocation3 + $0x30] sm:$0xff] %v1657
      %1749 = vst [vmem:[#allocation3 + $0x38] sm:$0xff] %v1659
      %1750 = vst [vmem:[#allocation3 + $0x40] sm:$0xff] %v1734
      %1751 = vst [vmem:[#allocation3 + $0x48] sm:$0x3] %v1432
      %1752 = vst [vmem:[#allocation3 + $0x50] sm:$0x3] %v1434
      %1753 = vst [vmem:[#allocation3 + $0x58] sm:$0x3] %v1509
      %1754 = vst [vmem:[#allocation3 + $0x60] sm:$0x3] %v1511
      %1755 = vst [vmem:[#allocation3 + $0x68] sm:$0x3] %v1586
      %1756 = vst [vmem:[#allocation3 + $0x70] sm:$0x3] %v1588
      %1757 = vst [vmem:[#allocation3 + $0x78] sm:$0x3] %v1663
      %1758 = vst [vmem:[#allocation3 + $0x80] sm:$0x3] %v1665
      %1759 = vst [vmem:[#allocation3 + $0x88] sm:$0x3] %v1739
      %v1760 = vld [vmem:[#allocation3] sm:$0xff]
      %v1761 = vld [vmem:[#allocation3 + $0x8] sm:$0xff]
      %v1762 = vld [vmem:[#allocation3 + $0x10] sm:$0xff]
      %v1763 = vld [vmem:[#allocation3 + $0x18] sm:$0xff]
      %v1764 = vld [vmem:[#allocation3 + $0x20] sm:$0xff]
      %v1765 = vld [vmem:[#allocation3 + $0x28] sm:$0xff]
      %v1766 = vld [vmem:[#allocation3 + $0x30] sm:$0xff]
      %v1767 = vld [vmem:[#allocation3 + $0x38] sm:$0xff]
      %v1768 = vld [vmem:[#allocation3 + $0x48] sm:$0x3]
      %v1769 = vld [vmem:[#allocation3 + $0x50] sm:$0x3]
      %v1770 = vld [vmem:[#allocation3 + $0x58] sm:$0x3]
      %v1771 = vld [vmem:[#allocation3 + $0x60] sm:$0x3]
      %v1772 = vld [vmem:[#allocation3 + $0x68] sm:$0x3]
      %v1773 = vld [vmem:[#allocation3 + $0x70] sm:$0x3]
      %v1774 = vld [vmem:[#allocation3 + $0x78] sm:$0x3]
      %v1775 = vld [vmem:[#allocation3 + $0x80] sm:$0x3]
      %v1776 = vld [vmem:[#allocation3 + $0x40] sm:$0xff]
      %v1777 = vld [vmem:[#allocation3 + $0x88] sm:$0x3]
      %1796 = vrot.lane.b32.xlu0 %v1760, 127
      %v1797 = vpop.permute.xlu0 %1796
      %1798 = vrot.lane.b32.xlu0 %v1761, 127
      %v1799 = vpop.permute.xlu0 %1798
      %1800 = vrot.lane.b32.xlu0 %v1762, 127
      %v1801 = vpop.permute.xlu0 %1800
      %1802 = vrot.lane.b32.xlu0 %v1763, 127
      %v1803 = vpop.permute.xlu0 %1802
      %1804 = vrot.lane.b32.xlu0 %v1764, 127
      %v1805 = vpop.permute.xlu0 %1804
      %1806 = vrot.lane.b32.xlu0 %v1765, 127
      %v1807 = vpop.permute.xlu0 %1806
      %1808 = vrot.lane.b32.xlu0 %v1766, 127
      %v1809 = vpop.permute.xlu0 %1808
      %1810 = vrot.lane.b32.xlu0 %v1767, 127
      %v1811 = vpop.permute.xlu0 %1810
      %1812 = vrot.lane.b32.xlu0 %v1776, 127
      %v1813 = vpop.permute.xlu0 %1812
      %1814 = vrot.lane.b32.xlu0 %v1768, 127
      %v1815 = vpop.permute.xlu0 %1814
      %1816 = vrot.lane.b32.xlu0 %v1769, 127
      %v1817 = vpop.permute.xlu0 %1816
      %1818 = vrot.lane.b32.xlu0 %v1770, 127
      %v1819 = vpop.permute.xlu0 %1818
      %1820 = vrot.lane.b32.xlu0 %v1771, 127
      %v1821 = vpop.permute.xlu0 %1820
      %1822 = vrot.lane.b32.xlu0 %v1772, 127
      %v1823 = vpop.permute.xlu0 %1822
      %1824 = vrot.lane.b32.xlu0 %v1773, 127
      %v1825 = vpop.permute.xlu0 %1824
      %1826 = vrot.lane.b32.xlu0 %v1774, 127
      %v1827 = vpop.permute.xlu0 %1826
      %1828 = vrot.lane.b32.xlu0 %v1775, 127
      %v1829 = vpop.permute.xlu0 %1828
      %1830 = vrot.lane.b32.xlu0 %v1777, 127
      %v1831 = vpop.permute.xlu0 %1830
      %v1832 = vsel %vm235, %v1797, %v1799
      %v1833 = vsel %vm235, %v1799, %v1801
      %v1834 = vsel %vm235, %v1801, %v1803
      %v1835 = vsel %vm235, %v1803, %v1805
      %v1836 = vsel %vm235, %v1805, %v1807
      %v1837 = vsel %vm235, %v1807, %v1809
      %v1838 = vsel %vm235, %v1809, %v1811
      %v1839 = vsel %vm235, %v1811, %v1813
      %v1840 = vsel %vm235, %v1815, %v1817
      %v1841 = vsel %vm235, %v1817, %v1819
      %v1842 = vsel %vm235, %v1819, %v1821
      %v1843 = vsel %vm235, %v1821, %v1823
      %v1844 = vsel %vm235, %v1823, %v1825
      %v1845 = vsel %vm235, %v1825, %v1827
      %v1846 = vsel %vm235, %v1827, %v1829
      %v1847 = vsel %vm235, %v1829, %v1831
      %v1864 = vmax.f32 %v1760, %v1832
      %v1865 = vmax.f32 %v1761, %v1833
      %v1866 = vmax.f32 %v1762, %v1834
      %v1867 = vmax.f32 %v1763, %v1835
      %v1868 = vmax.f32 %v1764, %v1836
      %v1869 = vmax.f32 %v1765, %v1837
      %v1870 = vmax.f32 %v1766, %v1838
      %v1871 = vmax.f32 %v1767, %v1839
      %v1872 = vmax.f32 %v1768, %v1840
      %v1873 = vmax.f32 %v1769, %v1841
      %v1874 = vmax.f32 %v1770, %v1842
      %v1875 = vmax.f32 %v1771, %v1843
      %v1876 = vmax.f32 %v1772, %v1844
      %v1877 = vmax.f32 %v1773, %v1845
      %v1878 = vmax.f32 %v1774, %v1846
      %v1879 = vmax.f32 %v1775, %v1847
      %1880 = vrot.lane.b32.xlu0 %v1760, 126
      %v1881 = vpop.permute.xlu0 %1880
      %1882 = vrot.lane.b32.xlu0 %v1761, 126
      %v1883 = vpop.permute.xlu0 %1882
      %1884 = vrot.lane.b32.xlu0 %v1762, 126
      %v1885 = vpop.permute.xlu0 %1884
      %1886 = vrot.lane.b32.xlu0 %v1763, 126
      %v1887 = vpop.permute.xlu0 %1886
      %1888 = vrot.lane.b32.xlu0 %v1764, 126
      %v1889 = vpop.permute.xlu0 %1888
      %1890 = vrot.lane.b32.xlu0 %v1765, 126
      %v1891 = vpop.permute.xlu0 %1890
      %1892 = vrot.lane.b32.xlu0 %v1766, 126
      %v1893 = vpop.permute.xlu0 %1892
      %1894 = vrot.lane.b32.xlu0 %v1767, 126
      %v1895 = vpop.permute.xlu0 %1894
      %1896 = vrot.lane.b32.xlu0 %v1776, 126
      %v1897 = vpop.permute.xlu0 %1896
      %1898 = vrot.lane.b32.xlu0 %v1768, 126
      %v1899 = vpop.permute.xlu0 %1898
      %1900 = vrot.lane.b32.xlu0 %v1769, 126
      %v1901 = vpop.permute.xlu0 %1900
      %1902 = vrot.lane.b32.xlu0 %v1770, 126
      %v1903 = vpop.permute.xlu0 %1902
      %1904 = vrot.lane.b32.xlu0 %v1771, 126
      %v1905 = vpop.permute.xlu0 %1904
      %1906 = vrot.lane.b32.xlu0 %v1772, 126
      %v1907 = vpop.permute.xlu0 %1906
      %1908 = vrot.lane.b32.xlu0 %v1773, 126
      %v1909 = vpop.permute.xlu0 %1908
      %1910 = vrot.lane.b32.xlu0 %v1774, 126
      %v1911 = vpop.permute.xlu0 %1910
      %1912 = vrot.lane.b32.xlu0 %v1775, 126
      %v1913 = vpop.permute.xlu0 %1912
      %1914 = vrot.lane.b32.xlu0 %v1777, 126
      %v1915 = vpop.permute.xlu0 %1914
      %v1916 = vsel %vm303, %v1881, %v1883
      %v1917 = vsel %vm303, %v1883, %v1885
      %v1918 = vsel %vm303, %v1885, %v1887
      %v1919 = vsel %vm303, %v1887, %v1889
      %v1920 = vsel %vm303, %v1889, %v1891
      %v1921 = vsel %vm303, %v1891, %v1893
      %v1922 = vsel %vm303, %v1893, %v1895
      %v1923 = vsel %vm303, %v1895, %v1897
      %v1924 = vsel %vm303, %v1899, %v1901
      %v1925 = vsel %vm303, %v1901, %v1903
      %v1926 = vsel %vm303, %v1903, %v1905
      %v1927 = vsel %vm303, %v1905, %v1907
      %v1928 = vsel %vm303, %v1907, %v1909
      %v1929 = vsel %vm303, %v1909, %v1911
      %v1930 = vsel %vm303, %v1911, %v1913
      %v1931 = vsel %vm303, %v1913, %v1915
      %v1948 = vmax.f32 %v1864, %v1916
      %v1949 = vmax.f32 %v1865, %v1917
      %v1950 = vmax.f32 %v1866, %v1918
      %v1951 = vmax.f32 %v1867, %v1919
      %v1952 = vmax.f32 %v1868, %v1920
      %v1953 = vmax.f32 %v1869, %v1921
      %v1954 = vmax.f32 %v1870, %v1922
      %v1955 = vmax.f32 %v1871, %v1923
      %v1956 = vmax.f32 %v1872, %v1924
      %v1957 = vmax.f32 %v1873, %v1925
      %v1958 = vmax.f32 %v1874, %v1926
      %v1959 = vmax.f32 %v1875, %v1927
      %v1960 = vmax.f32 %v1876, %v1928
      %v1961 = vmax.f32 %v1877, %v1929
      %v1962 = vmax.f32 %v1878, %v1930
      %v1963 = vmax.f32 %v1879, %v1931
      %1964 = vrot.lane.b32.xlu0 %v1760, 96
      %v1965 = vpop.permute.xlu0 %1964
      %1966 = vrot.lane.b32.xlu0 %v1761, 96
      %v1967 = vpop.permute.xlu0 %1966
      %1968 = vrot.lane.b32.xlu0 %v1762, 96
      %v1969 = vpop.permute.xlu0 %1968
      %1970 = vrot.lane.b32.xlu0 %v1763, 96
      %v1971 = vpop.permute.xlu0 %1970
      %1972 = vrot.lane.b32.xlu0 %v1764, 96
      %v1973 = vpop.permute.xlu0 %1972
      %1974 = vrot.lane.b32.xlu0 %v1765, 96
      %v1975 = vpop.permute.xlu0 %1974
      %1976 = vrot.lane.b32.xlu0 %v1766, 96
      %v1977 = vpop.permute.xlu0 %1976
      %1978 = vrot.lane.b32.xlu0 %v1767, 96
      %v1979 = vpop.permute.xlu0 %1978
      %1980 = vrot.lane.b32.xlu0 %v1776, 96
      %v1981 = vpop.permute.xlu0 %1980
      %1982 = vrot.lane.b32.xlu0 %v1768, 96
      %v1983 = vpop.permute.xlu0 %1982
      %1984 = vrot.lane.b32.xlu0 %v1769, 96
      %v1985 = vpop.permute.xlu0 %1984
      %1986 = vrot.lane.b32.xlu0 %v1770, 96
      %v1987 = vpop.permute.xlu0 %1986
      %1988 = vrot.lane.b32.xlu0 %v1771, 96
      %v1989 = vpop.permute.xlu0 %1988
      %1990 = vrot.lane.b32.xlu0 %v1772, 96
      %v1991 = vpop.permute.xlu0 %1990
      %1992 = vrot.lane.b32.xlu0 %v1773, 96
      %v1993 = vpop.permute.xlu0 %1992
      %1994 = vrot.lane.b32.xlu0 %v1774, 96
      %v1995 = vpop.permute.xlu0 %1994
      %1996 = vrot.lane.b32.xlu0 %v1775, 96
      %v1997 = vpop.permute.xlu0 %1996
      %1998 = vrot.lane.b32.xlu0 %v1777, 96
      %v1999 = vpop.permute.xlu0 %1998
      %v2000 = vsel %vm439, %v1965, %v1967
      %v2001 = vsel %vm439, %v1967, %v1969
      %v2002 = vsel %vm439, %v1969, %v1971
      %v2003 = vsel %vm439, %v1971, %v1973
      %v2004 = vsel %vm439, %v1973, %v1975
      %v2005 = vsel %vm439, %v1975, %v1977
      %v2006 = vsel %vm439, %v1977, %v1979
      %v2007 = vsel %vm439, %v1979, %v1981
      %v2008 = vsel %vm439, %v1983, %v1985
      %v2009 = vsel %vm439, %v1985, %v1987
      %v2010 = vsel %vm439, %v1987, %v1989
      %v2011 = vsel %vm439, %v1989, %v1991
      %v2012 = vsel %vm439, %v1991, %v1993
      %v2013 = vsel %vm439, %v1993, %v1995
      %v2014 = vsel %vm439, %v1995, %v1997
      %v2015 = vsel %vm439, %v1997, %v1999
      %v2032 = vmax.f32 %v1948, %v2000
      %v2033 = vmax.f32 %v1949, %v2001
      %v2034 = vmax.f32 %v1950, %v2002
      %v2035 = vmax.f32 %v1951, %v2003
      %v2036 = vmax.f32 %v1952, %v2004
      %v2037 = vmax.f32 %v1953, %v2005
      %v2038 = vmax.f32 %v1954, %v2006
      %v2039 = vmax.f32 %v1955, %v2007
      %v2040 = vmax.f32 %v1956, %v2008
      %v2041 = vmax.f32 %v1957, %v2009
      %v2042 = vmax.f32 %v1958, %v2010
      %v2043 = vmax.f32 %v1959, %v2011
      %v2044 = vmax.f32 %v1960, %v2012
      %v2045 = vmax.f32 %v1961, %v2013
      %v2046 = vmax.f32 %v1962, %v2014
      %v2047 = vmax.f32 %v1963, %v2015
      %2048 = vrot.lane.b32.xlu0 %v1760, 95
      %v2049 = vpop.permute.xlu0 %2048
      %2050 = vrot.lane.b32.xlu0 %v1761, 95
      %v2051 = vpop.permute.xlu0 %2050
      %2052 = vrot.lane.b32.xlu0 %v1762, 95
      %v2053 = vpop.permute.xlu0 %2052
      %2054 = vrot.lane.b32.xlu0 %v1763, 95
      %v2055 = vpop.permute.xlu0 %2054
      %2056 = vrot.lane.b32.xlu0 %v1764, 95
      %v2057 = vpop.permute.xlu0 %2056
      %2058 = vrot.lane.b32.xlu0 %v1765, 95
      %v2059 = vpop.permute.xlu0 %2058
      %2060 = vrot.lane.b32.xlu0 %v1766, 95
      %v2061 = vpop.permute.xlu0 %2060
      %2062 = vrot.lane.b32.xlu0 %v1767, 95
      %v2063 = vpop.permute.xlu0 %2062
      %2064 = vrot.lane.b32.xlu0 %v1776, 95
      %v2065 = vpop.permute.xlu0 %2064
      %2066 = vrot.lane.b32.xlu0 %v1768, 95
      %v2067 = vpop.permute.xlu0 %2066
      %2068 = vrot.lane.b32.xlu0 %v1769, 95
      %v2069 = vpop.permute.xlu0 %2068
      %2070 = vrot.lane.b32.xlu0 %v1770, 95
      %v2071 = vpop.permute.xlu0 %2070
      %2072 = vrot.lane.b32.xlu0 %v1771, 95
      %v2073 = vpop.permute.xlu0 %2072
      %2074 = vrot.lane.b32.xlu0 %v1772, 95
      %v2075 = vpop.permute.xlu0 %2074
      %2076 = vrot.lane.b32.xlu0 %v1773, 95
      %v2077 = vpop.permute.xlu0 %2076
      %2078 = vrot.lane.b32.xlu0 %v1774, 95
      %v2079 = vpop.permute.xlu0 %2078
      %2080 = vrot.lane.b32.xlu0 %v1775, 95
      %v2081 = vpop.permute.xlu0 %2080
      %2082 = vrot.lane.b32.xlu0 %v1777, 95
      %v2083 = vpop.permute.xlu0 %2082
      %v2084 = vsel %vm507, %v2049, %v2051
      %v2085 = vsel %vm507, %v2051, %v2053
      %v2086 = vsel %vm507, %v2053, %v2055
      %v2087 = vsel %vm507, %v2055, %v2057
      %v2088 = vsel %vm507, %v2057, %v2059
      %v2089 = vsel %vm507, %v2059, %v2061
      %v2090 = vsel %vm507, %v2061, %v2063
      %v2091 = vsel %vm507, %v2063, %v2065
      %v2092 = vsel %vm507, %v2067, %v2069
      %v2093 = vsel %vm507, %v2069, %v2071
      %v2094 = vsel %vm507, %v2071, %v2073
      %v2095 = vsel %vm507, %v2073, %v2075
      %v2096 = vsel %vm507, %v2075, %v2077
      %v2097 = vsel %vm507, %v2077, %v2079
      %v2098 = vsel %vm507, %v2079, %v2081
      %v2099 = vsel %vm507, %v2081, %v2083
      %v2116 = vmax.f32 %v2032, %v2084
      %v2117 = vmax.f32 %v2033, %v2085
      %v2118 = vmax.f32 %v2034, %v2086
      %v2119 = vmax.f32 %v2035, %v2087
      %v2120 = vmax.f32 %v2036, %v2088
      %v2121 = vmax.f32 %v2037, %v2089
      %v2122 = vmax.f32 %v2038, %v2090
      %v2123 = vmax.f32 %v2039, %v2091
      %v2124 = vmax.f32 %v2040, %v2092
      %v2125 = vmax.f32 %v2041, %v2093
      %v2126 = vmax.f32 %v2042, %v2094
      %v2127 = vmax.f32 %v2043, %v2095
      %v2128 = vmax.f32 %v2044, %v2096
      %v2129 = vmax.f32 %v2045, %v2097
      %v2130 = vmax.f32 %v2046, %v2098
      %v2131 = vmax.f32 %v2047, %v2099
      %2132 = vrot.lane.b32.xlu0 %v1760, 94
      %v2133 = vpop.permute.xlu0 %2132
      %2134 = vrot.lane.b32.xlu0 %v1761, 94
      %v2135 = vpop.permute.xlu0 %2134
      %2136 = vrot.lane.b32.xlu0 %v1762, 94
      %v2137 = vpop.permute.xlu0 %2136
      %2138 = vrot.lane.b32.xlu0 %v1763, 94
      %v2139 = vpop.permute.xlu0 %2138
      %2140 = vrot.lane.b32.xlu0 %v1764, 94
      %v2141 = vpop.permute.xlu0 %2140
      %2142 = vrot.lane.b32.xlu0 %v1765, 94
      %v2143 = vpop.permute.xlu0 %2142
      %2144 = vrot.lane.b32.xlu0 %v1766, 94
      %v2145 = vpop.permute.xlu0 %2144
      %2146 = vrot.lane.b32.xlu0 %v1767, 94
      %v2147 = vpop.permute.xlu0 %2146
      %2148 = vrot.lane.b32.xlu0 %v1776, 94
      %v2149 = vpop.permute.xlu0 %2148
      %2150 = vrot.lane.b32.xlu0 %v1768, 94
      %v2151 = vpop.permute.xlu0 %2150
      %2152 = vrot.lane.b32.xlu0 %v1769, 94
      %v2153 = vpop.permute.xlu0 %2152
      %2154 = vrot.lane.b32.xlu0 %v1770, 94
      %v2155 = vpop.permute.xlu0 %2154
      %2156 = vrot.lane.b32.xlu0 %v1771, 94
      %v2157 = vpop.permute.xlu0 %2156
      %2158 = vrot.lane.b32.xlu0 %v1772, 94
      %v2159 = vpop.permute.xlu0 %2158
      %2160 = vrot.lane.b32.xlu0 %v1773, 94
      %v2161 = vpop.permute.xlu0 %2160
      %2162 = vrot.lane.b32.xlu0 %v1774, 94
      %v2163 = vpop.permute.xlu0 %2162
      %2164 = vrot.lane.b32.xlu0 %v1775, 94
      %v2165 = vpop.permute.xlu0 %2164
      %2166 = vrot.lane.b32.xlu0 %v1777, 94
      %v2167 = vpop.permute.xlu0 %2166
      %v2168 = vsel %vm575, %v2133, %v2135
      %v2169 = vsel %vm575, %v2135, %v2137
      %v2170 = vsel %vm575, %v2137, %v2139
      %v2171 = vsel %vm575, %v2139, %v2141
      %v2172 = vsel %vm575, %v2141, %v2143
      %v2173 = vsel %vm575, %v2143, %v2145
      %v2174 = vsel %vm575, %v2145, %v2147
      %v2175 = vsel %vm575, %v2147, %v2149
      %v2176 = vsel %vm575, %v2151, %v2153
      %v2177 = vsel %vm575, %v2153, %v2155
      %v2178 = vsel %vm575, %v2155, %v2157
      %v2179 = vsel %vm575, %v2157, %v2159
      %v2180 = vsel %vm575, %v2159, %v2161
      %v2181 = vsel %vm575, %v2161, %v2163
      %v2182 = vsel %vm575, %v2163, %v2165
      %v2183 = vsel %vm575, %v2165, %v2167
      %v2200 = vmax.f32 %v2116, %v2168
      %v2201 = vmax.f32 %v2117, %v2169
      %v2202 = vmax.f32 %v2118, %v2170
      %v2203 = vmax.f32 %v2119, %v2171
      %v2204 = vmax.f32 %v2120, %v2172
      %v2205 = vmax.f32 %v2121, %v2173
      %v2206 = vmax.f32 %v2122, %v2174
      %v2207 = vmax.f32 %v2123, %v2175
      %v2208 = vmax.f32 %v2124, %v2176
      %v2209 = vmax.f32 %v2125, %v2177
      %v2210 = vmax.f32 %v2126, %v2178
      %v2211 = vmax.f32 %v2127, %v2179
      %v2212 = vmax.f32 %v2128, %v2180
      %v2213 = vmax.f32 %v2129, %v2181
      %v2214 = vmax.f32 %v2130, %v2182
      %v2215 = vmax.f32 %v2131, %v2183
      %2216 = vrot.lane.b32.xlu0 %v1760, 64
      %v2217 = vpop.permute.xlu0 %2216
      %2218 = vrot.lane.b32.xlu0 %v1761, 64
      %v2219 = vpop.permute.xlu0 %2218
      %2220 = vrot.lane.b32.xlu0 %v1762, 64
      %v2221 = vpop.permute.xlu0 %2220
      %2222 = vrot.lane.b32.xlu0 %v1763, 64
      %v2223 = vpop.permute.xlu0 %2222
      %2224 = vrot.lane.b32.xlu0 %v1764, 64
      %v2225 = vpop.permute.xlu0 %2224
      %2226 = vrot.lane.b32.xlu0 %v1765, 64
      %v2227 = vpop.permute.xlu0 %2226
      %2228 = vrot.lane.b32.xlu0 %v1766, 64
      %v2229 = vpop.permute.xlu0 %2228
      %2230 = vrot.lane.b32.xlu0 %v1767, 64
      %v2231 = vpop.permute.xlu0 %2230
      %2232 = vrot.lane.b32.xlu0 %v1776, 64
      %v2233 = vpop.permute.xlu0 %2232
      %2234 = vrot.lane.b32.xlu0 %v1768, 64
      %v2235 = vpop.permute.xlu0 %2234
      %2236 = vrot.lane.b32.xlu0 %v1769, 64
      %v2237 = vpop.permute.xlu0 %2236
      %2238 = vrot.lane.b32.xlu0 %v1770, 64
      %v2239 = vpop.permute.xlu0 %2238
      %2240 = vrot.lane.b32.xlu0 %v1771, 64
      %v2241 = vpop.permute.xlu0 %2240
      %2242 = vrot.lane.b32.xlu0 %v1772, 64
      %v2243 = vpop.permute.xlu0 %2242
      %2244 = vrot.lane.b32.xlu0 %v1773, 64
      %v2245 = vpop.permute.xlu0 %2244
      %2246 = vrot.lane.b32.xlu0 %v1774, 64
      %v2247 = vpop.permute.xlu0 %2246
      %2248 = vrot.lane.b32.xlu0 %v1775, 64
      %v2249 = vpop.permute.xlu0 %2248
      %2250 = vrot.lane.b32.xlu0 %v1777, 64
      %v2251 = vpop.permute.xlu0 %2250
      %v2252 = vsel %vm711, %v2217, %v2219
      %v2253 = vsel %vm711, %v2219, %v2221
      %v2254 = vsel %vm711, %v2221, %v2223
      %v2255 = vsel %vm711, %v2223, %v2225
      %v2256 = vsel %vm711, %v2225, %v2227
      %v2257 = vsel %vm711, %v2227, %v2229
      %v2258 = vsel %vm711, %v2229, %v2231
      %v2259 = vsel %vm711, %v2231, %v2233
      %v2260 = vsel %vm711, %v2235, %v2237
      %v2261 = vsel %vm711, %v2237, %v2239
      %v2262 = vsel %vm711, %v2239, %v2241
      %v2263 = vsel %vm711, %v2241, %v2243
      %v2264 = vsel %vm711, %v2243, %v2245
      %v2265 = vsel %vm711, %v2245, %v2247
      %v2266 = vsel %vm711, %v2247, %v2249
      %v2267 = vsel %vm711, %v2249, %v2251
      %v2284 = vmax.f32 %v2200, %v2252
      %v2285 = vmax.f32 %v2201, %v2253
      %v2286 = vmax.f32 %v2202, %v2254
      %v2287 = vmax.f32 %v2203, %v2255
      %v2288 = vmax.f32 %v2204, %v2256
      %v2289 = vmax.f32 %v2205, %v2257
      %v2290 = vmax.f32 %v2206, %v2258
      %v2291 = vmax.f32 %v2207, %v2259
      %v2292 = vmax.f32 %v2208, %v2260
      %v2293 = vmax.f32 %v2209, %v2261
      %v2294 = vmax.f32 %v2210, %v2262
      %v2295 = vmax.f32 %v2211, %v2263
      %v2296 = vmax.f32 %v2212, %v2264
      %v2297 = vmax.f32 %v2213, %v2265
      %v2298 = vmax.f32 %v2214, %v2266
      %v2299 = vmax.f32 %v2215, %v2267
      %2300 = vrot.lane.b32.xlu0 %v1760, 63
      %v2301 = vpop.permute.xlu0 %2300
      %2302 = vrot.lane.b32.xlu0 %v1761, 63
      %v2303 = vpop.permute.xlu0 %2302
      %2304 = vrot.lane.b32.xlu0 %v1762, 63
      %v2305 = vpop.permute.xlu0 %2304
      %2306 = vrot.lane.b32.xlu0 %v1763, 63
      %v2307 = vpop.permute.xlu0 %2306
      %2308 = vrot.lane.b32.xlu0 %v1764, 63
      %v2309 = vpop.permute.xlu0 %2308
      %2310 = vrot.lane.b32.xlu0 %v1765, 63
      %v2311 = vpop.permute.xlu0 %2310
      %2312 = vrot.lane.b32.xlu0 %v1766, 63
      %v2313 = vpop.permute.xlu0 %2312
      %2314 = vrot.lane.b32.xlu0 %v1767, 63
      %v2315 = vpop.permute.xlu0 %2314
      %2316 = vrot.lane.b32.xlu0 %v1776, 63
      %v2317 = vpop.permute.xlu0 %2316
      %2318 = vrot.lane.b32.xlu0 %v1768, 63
      %v2319 = vpop.permute.xlu0 %2318
      %2320 = vrot.lane.b32.xlu0 %v1769, 63
      %v2321 = vpop.permute.xlu0 %2320
      %2322 = vrot.lane.b32.xlu0 %v1770, 63
      %v2323 = vpop.permute.xlu0 %2322
      %2324 = vrot.lane.b32.xlu0 %v1771, 63
      %v2325 = vpop.permute.xlu0 %2324
      %2326 = vrot.lane.b32.xlu0 %v1772, 63
      %v2327 = vpop.permute.xlu0 %2326
      %2328 = vrot.lane.b32.xlu0 %v1773, 63
      %v2329 = vpop.permute.xlu0 %2328
      %2330 = vrot.lane.b32.xlu0 %v1774, 63
      %v2331 = vpop.permute.xlu0 %2330
      %2332 = vrot.lane.b32.xlu0 %v1775, 63
      %v2333 = vpop.permute.xlu0 %2332
      %2334 = vrot.lane.b32.xlu0 %v1777, 63
      %v2335 = vpop.permute.xlu0 %2334
      %v2336 = vsel %vm779, %v2301, %v2303
      %v2337 = vsel %vm779, %v2303, %v2305
      %v2338 = vsel %vm779, %v2305, %v2307
      %v2339 = vsel %vm779, %v2307, %v2309
      %v2340 = vsel %vm779, %v2309, %v2311
      %v2341 = vsel %vm779, %v2311, %v2313
      %v2342 = vsel %vm779, %v2313, %v2315
      %v2343 = vsel %vm779, %v2315, %v2317
      %v2344 = vsel %vm779, %v2319, %v2321
      %v2345 = vsel %vm779, %v2321, %v2323
      %v2346 = vsel %vm779, %v2323, %v2325
      %v2347 = vsel %vm779, %v2325, %v2327
      %v2348 = vsel %vm779, %v2327, %v2329
      %v2349 = vsel %vm779, %v2329, %v2331
      %v2350 = vsel %vm779, %v2331, %v2333
      %v2351 = vsel %vm779, %v2333, %v2335
      %v2368 = vmax.f32 %v2284, %v2336
      %v2369 = vmax.f32 %v2285, %v2337
      %v2370 = vmax.f32 %v2286, %v2338
      %v2371 = vmax.f32 %v2287, %v2339
      %v2372 = vmax.f32 %v2288, %v2340
      %v2373 = vmax.f32 %v2289, %v2341
      %v2374 = vmax.f32 %v2290, %v2342
      %v2375 = vmax.f32 %v2291, %v2343
      %v2376 = vmax.f32 %v2292, %v2344
      %v2377 = vmax.f32 %v2293, %v2345
      %v2378 = vmax.f32 %v2294, %v2346
      %v2379 = vmax.f32 %v2295, %v2347
      %v2380 = vmax.f32 %v2296, %v2348
      %v2381 = vmax.f32 %v2297, %v2349
      %v2382 = vmax.f32 %v2298, %v2350
      %v2383 = vmax.f32 %v2299, %v2351
      %2384 = vrot.lane.b32.xlu0 %v1760, 62
      %v2385 = vpop.permute.xlu0 %2384
      %2386 = vrot.lane.b32.xlu0 %v1761, 62
      %v2387 = vpop.permute.xlu0 %2386
      %2388 = vrot.lane.b32.xlu0 %v1762, 62
      %v2389 = vpop.permute.xlu0 %2388
      %2390 = vrot.lane.b32.xlu0 %v1763, 62
      %v2391 = vpop.permute.xlu0 %2390
      %2392 = vrot.lane.b32.xlu0 %v1764, 62
      %v2393 = vpop.permute.xlu0 %2392
      %2394 = vrot.lane.b32.xlu0 %v1765, 62
      %v2395 = vpop.permute.xlu0 %2394
      %2396 = vrot.lane.b32.xlu0 %v1766, 62
      %v2397 = vpop.permute.xlu0 %2396
      %2398 = vrot.lane.b32.xlu0 %v1767, 62
      %v2399 = vpop.permute.xlu0 %2398
      %2400 = vrot.lane.b32.xlu0 %v1776, 62
      %v2401 = vpop.permute.xlu0 %2400
      %2402 = vrot.lane.b32.xlu0 %v1768, 62
      %v2403 = vpop.permute.xlu0 %2402
      %2404 = vrot.lane.b32.xlu0 %v1769, 62
      %v2405 = vpop.permute.xlu0 %2404
      %2406 = vrot.lane.b32.xlu0 %v1770, 62
      %v2407 = vpop.permute.xlu0 %2406
      %2408 = vrot.lane.b32.xlu0 %v1771, 62
      %v2409 = vpop.permute.xlu0 %2408
      %2410 = vrot.lane.b32.xlu0 %v1772, 62
      %v2411 = vpop.permute.xlu0 %2410
      %2412 = vrot.lane.b32.xlu0 %v1773, 62
      %v2413 = vpop.permute.xlu0 %2412
      %2414 = vrot.lane.b32.xlu0 %v1774, 62
      %v2415 = vpop.permute.xlu0 %2414
      %2416 = vrot.lane.b32.xlu0 %v1775, 62
      %v2417 = vpop.permute.xlu0 %2416
      %2418 = vrot.lane.b32.xlu0 %v1777, 62
      %v2419 = vpop.permute.xlu0 %2418
      %v2420 = vsel %vm847, %v2385, %v2387
      %v2421 = vsel %vm847, %v2387, %v2389
      %v2422 = vsel %vm847, %v2389, %v2391
      %v2423 = vsel %vm847, %v2391, %v2393
      %v2424 = vsel %vm847, %v2393, %v2395
      %v2425 = vsel %vm847, %v2395, %v2397
      %v2426 = vsel %vm847, %v2397, %v2399
      %v2427 = vsel %vm847, %v2399, %v2401
      %v2428 = vsel %vm847, %v2403, %v2405
      %v2429 = vsel %vm847, %v2405, %v2407
      %v2430 = vsel %vm847, %v2407, %v2409
      %v2431 = vsel %vm847, %v2409, %v2411
      %v2432 = vsel %vm847, %v2411, %v2413
      %v2433 = vsel %vm847, %v2413, %v2415
      %v2434 = vsel %vm847, %v2415, %v2417
      %v2435 = vsel %vm847, %v2417, %v2419
      %v2452 = vmax.f32 %v2368, %v2420
      %v2453 = vmax.f32 %v2369, %v2421
      %v2454 = vmax.f32 %v2370, %v2422
      %v2455 = vmax.f32 %v2371, %v2423
      %v2456 = vmax.f32 %v2372, %v2424
      %v2457 = vmax.f32 %v2373, %v2425
      %v2458 = vmax.f32 %v2374, %v2426
      %v2459 = vmax.f32 %v2375, %v2427
      %v2460 = vmax.f32 %v2376, %v2428
      %v2461 = vmax.f32 %v2377, %v2429
      %v2462 = vmax.f32 %v2378, %v2430
      %v2463 = vmax.f32 %v2379, %v2431
      %v2464 = vmax.f32 %v2380, %v2432
      %v2465 = vmax.f32 %v2381, %v2433
      %v2466 = vmax.f32 %v2382, %v2434
      %v2467 = vmax.f32 %v2383, %v2435
      %2468 = vst [vmem:[#allocation4] sm:$0xff] %v2452
      %2469 = vst [vmem:[#allocation4 + $0x8] sm:$0xff] %v2453
      %2470 = vst [vmem:[#allocation4 + $0x10] sm:$0xff] %v2454
      %2471 = vst [vmem:[#allocation4 + $0x18] sm:$0xff] %v2455
      %2472 = vst [vmem:[#allocation4 + $0x20] sm:$0xff] %v2456
      %2473 = vst [vmem:[#allocation4 + $0x28] sm:$0xff] %v2457
      %2474 = vst [vmem:[#allocation4 + $0x30] sm:$0xff] %v2458
      %2475 = vst [vmem:[#allocation4 + $0x38] sm:$0xff] %v2459
      %2476 = vst [vmem:[#allocation4 + $0x40] sm:$0x3] %v2460
      %2477 = vst [vmem:[#allocation4 + $0x48] sm:$0x3] %v2461
      %2478 = vst [vmem:[#allocation4 + $0x50] sm:$0x3] %v2462
      %2479 = vst [vmem:[#allocation4 + $0x58] sm:$0x3] %v2463
      %2480 = vst [vmem:[#allocation4 + $0x60] sm:$0x3] %v2464
      %2481 = vst [vmem:[#allocation4 + $0x68] sm:$0x3] %v2465
      %2482 = vst [vmem:[#allocation4 + $0x70] sm:$0x3] %v2466
      %2483 = vst [vmem:[#allocation4 + $0x78] sm:$0x3] %v2467
      %v2484 = vld [vmem:[#allocation4] sm:$0xff]
      %v2485 = vld [vmem:[#allocation4 + $0x8] sm:$0xff]
      %v2486 = vld [vmem:[#allocation4 + $0x10] sm:$0xff]
      %v2487 = vld [vmem:[#allocation4 + $0x18] sm:$0xff]
      %v2488 = vld [vmem:[#allocation4 + $0x20] sm:$0xff]
      %v2489 = vld [vmem:[#allocation4 + $0x28] sm:$0xff]
      %v2490 = vld [vmem:[#allocation4 + $0x40] sm:$0xff]
      %v2491 = vld [vmem:[#allocation4 + $0x48] sm:$0xff]
      %v2492 = vld [vmem:[#allocation4 + $0x50] sm:$0xff]
      %v2493 = vld [vmem:[#allocation4 + $0x58] sm:$0xff]
      %v2494 = vld [vmem:[#allocation4 + $0x60] sm:$0xff]
      %v2495 = vld [vmem:[#allocation4 + $0x68] sm:$0xff]
      %2496 = vst [vmem:[#allocation5] sm:$0xff] %v2484
      %2497 = vst [vmem:[#allocation5 + $0x8] sm:$0xff] %v2485
      %2498 = vst [vmem:[#allocation5 + $0x10] sm:$0xff] %v2486
      %2499 = vst [vmem:[#allocation5 + $0x18] sm:$0xff] %v2487
      %2500 = vst [vmem:[#allocation5 + $0x20] sm:$0xff] %v2488
      %2501 = vst [vmem:[#allocation5 + $0x28] sm:$0xff] %v2489
      %2502 = vst [vmem:[#allocation5 + $0x30] sm:$0xff] %v2490
      %2503 = vst [vmem:[#allocation5 + $0x38] sm:$0xff] %v2491
      %2504 = vst [vmem:[#allocation5 + $0x40] sm:$0xff] %v2492
      %2505 = vst [vmem:[#allocation5 + $0x48] sm:$0xff] %v2493
      %2506 = vst [vmem:[#allocation5 + $0x50] sm:$0xff] %v2494
      %2507 = vst [vmem:[#allocation5 + $0x58] sm:$0xff] %v2495
      %v2508 = vld [vmem:[#allocation4] sm:$0xff]
      %v2509 = vld [vmem:[#allocation4 + $0x8] sm:$0xff]
      %v2510 = vld [vmem:[#allocation4 + $0x10] sm:$0xff]
      %v2511 = vld [vmem:[#allocation4 + $0x18] sm:$0xff]
      %v2512 = vld [vmem:[#allocation4 + $0x20] sm:$0xff]
      %v2513 = vld [vmem:[#allocation4 + $0x28] sm:$0xff]
      %v2514 = vld [vmem:[#allocation4 + $0x30] sm:$0xff]
      %v2515 = vld [vmem:[#allocation4 + $0x40] sm:$0xff]
      %v2516 = vld [vmem:[#allocation4 + $0x48] sm:$0xff]
      %v2517 = vld [vmem:[#allocation4 + $0x50] sm:$0xff]
      %v2518 = vld [vmem:[#allocation4 + $0x58] sm:$0xff]
      %v2519 = vld [vmem:[#allocation4 + $0x60] sm:$0xff]
      %v2520 = vld [vmem:[#allocation4 + $0x68] sm:$0xff]
      %v2521 = vld [vmem:[#allocation4 + $0x70] sm:$0xff]
      %2536 = vrot.lane.b32.xlu0 %v2508, 125
      %v2537 = vpop.permute.xlu0 %2536
      %2538 = vrot.lane.b32.xlu0 %v2509, 125
      %v2539 = vpop.permute.xlu0 %2538
      %2540 = vrot.lane.b32.xlu0 %v2510, 125
      %v2541 = vpop.permute.xlu0 %2540
      %2542 = vrot.lane.b32.xlu0 %v2511, 125
      %v2543 = vpop.permute.xlu0 %2542
      %2544 = vrot.lane.b32.xlu0 %v2512, 125
      %v2545 = vpop.permute.xlu0 %2544
      %2546 = vrot.lane.b32.xlu0 %v2513, 125
      %v2547 = vpop.permute.xlu0 %2546
      %2548 = vrot.lane.b32.xlu0 %v2514, 125
      %v2549 = vpop.permute.xlu0 %2548
      %2550 = vrot.lane.b32.xlu0 %v2515, 125
      %v2551 = vpop.permute.xlu0 %2550
      %2552 = vrot.lane.b32.xlu0 %v2516, 125
      %v2553 = vpop.permute.xlu0 %2552
      %2554 = vrot.lane.b32.xlu0 %v2517, 125
      %v2555 = vpop.permute.xlu0 %2554
      %2556 = vrot.lane.b32.xlu0 %v2518, 125
      %v2557 = vpop.permute.xlu0 %2556
      %2558 = vrot.lane.b32.xlu0 %v2519, 125
      %v2559 = vpop.permute.xlu0 %2558
      %2560 = vrot.lane.b32.xlu0 %v2520, 125
      %v2561 = vpop.permute.xlu0 %2560
      %2562 = vrot.lane.b32.xlu0 %v2521, 125
      %v2563 = vpop.permute.xlu0 %2562
      %v2564 = vsel %vm371, %v2537, %v2539
      %v2565 = vsel %vm371, %v2539, %v2541
      %v2566 = vsel %vm371, %v2541, %v2543
      %v2567 = vsel %vm371, %v2543, %v2545
      %v2568 = vsel %vm371, %v2545, %v2547
      %v2569 = vsel %vm371, %v2547, %v2549
      %v2570 = vsel %vm371, %v2551, %v2553
      %v2571 = vsel %vm371, %v2553, %v2555
      %v2572 = vsel %vm371, %v2555, %v2557
      %v2573 = vsel %vm371, %v2557, %v2559
      %v2574 = vsel %vm371, %v2559, %v2561
      %v2575 = vsel %vm371, %v2561, %v2563
      %2588 = vst [vmem:[#allocation5 + $0x60] sm:$0xff] %v2564
      %2589 = vst [vmem:[#allocation5 + $0x68] sm:$0xff] %v2565
      %2590 = vst [vmem:[#allocation5 + $0x70] sm:$0xff] %v2566
      %2591 = vst [vmem:[#allocation5 + $0x78] sm:$0xff] %v2567
      %2592 = vst [vmem:[#allocation5 + $0x80] sm:$0xff] %v2568
      %2593 = vst [vmem:[#allocation5 + $0x88] sm:$0xff] %v2569
      %2594 = vst [vmem:[#allocation5 + $0x90] sm:$0xff] %v2570
      %2595 = vst [vmem:[#allocation5 + $0x98] sm:$0xff] %v2571
      %2596 = vst [vmem:[#allocation5 + $0xa0] sm:$0xff] %v2572
      %2597 = vst [vmem:[#allocation5 + $0xa8] sm:$0xff] %v2573
      %2598 = vst [vmem:[#allocation5 + $0xb0] sm:$0xff] %v2574
      %2599 = vst [vmem:[#allocation5 + $0xb8] sm:$0xff] %v2575
      %v2600 = vld [vmem:[#allocation4] sm:$0xff]
      %v2601 = vld [vmem:[#allocation4 + $0x8] sm:$0xff]
      %v2602 = vld [vmem:[#allocation4 + $0x10] sm:$0xff]
      %v2603 = vld [vmem:[#allocation4 + $0x18] sm:$0xff]
      %v2604 = vld [vmem:[#allocation4 + $0x20] sm:$0xff]
      %v2605 = vld [vmem:[#allocation4 + $0x28] sm:$0xff]
      %v2606 = vld [vmem:[#allocation4 + $0x30] sm:$0xff]
      %v2607 = vld [vmem:[#allocation4 + $0x40] sm:$0xff]
      %v2608 = vld [vmem:[#allocation4 + $0x48] sm:$0xff]
      %v2609 = vld [vmem:[#allocation4 + $0x50] sm:$0xff]
      %v2610 = vld [vmem:[#allocation4 + $0x58] sm:$0xff]
      %v2611 = vld [vmem:[#allocation4 + $0x60] sm:$0xff]
      %v2612 = vld [vmem:[#allocation4 + $0x68] sm:$0xff]
      %v2613 = vld [vmem:[#allocation4 + $0x70] sm:$0xff]
      %2628 = vrot.lane.b32.xlu0 %v2600, 122
      %v2629 = vpop.permute.xlu0 %2628
      %2630 = vrot.lane.b32.xlu0 %v2601, 122
      %v2631 = vpop.permute.xlu0 %2630
      %2632 = vrot.lane.b32.xlu0 %v2602, 122
      %v2633 = vpop.permute.xlu0 %2632
      %2634 = vrot.lane.b32.xlu0 %v2603, 122
      %v2635 = vpop.permute.xlu0 %2634
      %2636 = vrot.lane.b32.xlu0 %v2604, 122
      %v2637 = vpop.permute.xlu0 %2636
      %2638 = vrot.lane.b32.xlu0 %v2605, 122
      %v2639 = vpop.permute.xlu0 %2638
      %2640 = vrot.lane.b32.xlu0 %v2606, 122
      %v2641 = vpop.permute.xlu0 %2640
      %2642 = vrot.lane.b32.xlu0 %v2607, 122
      %v2643 = vpop.permute.xlu0 %2642
      %2644 = vrot.lane.b32.xlu0 %v2608, 122
      %v2645 = vpop.permute.xlu0 %2644
      %2646 = vrot.lane.b32.xlu0 %v2609, 122
      %v2647 = vpop.permute.xlu0 %2646
      %2648 = vrot.lane.b32.xlu0 %v2610, 122
      %v2649 = vpop.permute.xlu0 %2648
      %2650 = vrot.lane.b32.xlu0 %v2611, 122
      %v2651 = vpop.permute.xlu0 %2650
      %2652 = vrot.lane.b32.xlu0 %v2612, 122
      %v2653 = vpop.permute.xlu0 %2652
      %2654 = vrot.lane.b32.xlu0 %v2613, 122
      %v2655 = vpop.permute.xlu0 %2654
      %vm2656 = vcmask 998400
      %v2657 = vsel %vm2656, %v2629, %v2631
      %v2658 = vsel %vm2656, %v2631, %v2633
      %v2659 = vsel %vm2656, %v2633, %v2635
      %v2660 = vsel %vm2656, %v2635, %v2637
      %v2661 = vsel %vm2656, %v2637, %v2639
      %v2662 = vsel %vm2656, %v2639, %v2641
      %v2663 = vsel %vm2656, %v2643, %v2645
      %v2664 = vsel %vm2656, %v2645, %v2647
      %v2665 = vsel %vm2656, %v2647, %v2649
      %v2666 = vsel %vm2656, %v2649, %v2651
      %v2667 = vsel %vm2656, %v2651, %v2653
      %v2668 = vsel %vm2656, %v2653, %v2655
      %2681 = vst [vmem:[#allocation5 + $0xc0] sm:$0xff] %v2657
      %2682 = vst [vmem:[#allocation5 + $0xc8] sm:$0xff] %v2658
      %2683 = vst [vmem:[#allocation5 + $0xd0] sm:$0xff] %v2659
      %2684 = vst [vmem:[#allocation5 + $0xd8] sm:$0xff] %v2660
      %2685 = vst [vmem:[#allocation5 + $0xe0] sm:$0xff] %v2661
      %2686 = vst [vmem:[#allocation5 + $0xe8] sm:$0xff] %v2662
      %2687 = vst [vmem:[#allocation5 + $0xf0] sm:$0xff] %v2663
      %2688 = vst [vmem:[#allocation5 + $0xf8] sm:$0xff] %v2664
      %2689 = vst [vmem:[#allocation5 + $0x100] sm:$0xff] %v2665
      %2690 = vst [vmem:[#allocation5 + $0x108] sm:$0xff] %v2666
      %2691 = vst [vmem:[#allocation5 + $0x110] sm:$0xff] %v2667
      %2692 = vst [vmem:[#allocation5 + $0x118] sm:$0xff] %v2668
      %v2693 = vld [vmem:[#allocation4] sm:$0xff]
      %v2694 = vld [vmem:[#allocation4 + $0x8] sm:$0xff]
      %v2695 = vld [vmem:[#allocation4 + $0x10] sm:$0xff]
      %v2696 = vld [vmem:[#allocation4 + $0x18] sm:$0xff]
      %v2697 = vld [vmem:[#allocation4 + $0x20] sm:$0xff]
      %v2698 = vld [vmem:[#allocation4 + $0x28] sm:$0xff]
      %v2699 = vld [vmem:[#allocation4 + $0x30] sm:$0xff]
      %v2700 = vld [vmem:[#allocation4 + $0x40] sm:$0xff]
      %v2701 = vld [vmem:[#allocation4 + $0x48] sm:$0xff]
      %v2702 = vld [vmem:[#allocation4 + $0x50] sm:$0xff]
      %v2703 = vld [vmem:[#allocation4 + $0x58] sm:$0xff]
      %v2704 = vld [vmem:[#allocation4 + $0x60] sm:$0xff]
      %v2705 = vld [vmem:[#allocation4 + $0x68] sm:$0xff]
      %v2706 = vld [vmem:[#allocation4 + $0x70] sm:$0xff]
      %2721 = vrot.lane.b32.xlu0 %v2693, 32
      %v2722 = vpop.permute.xlu0 %2721
      %2723 = vrot.lane.b32.xlu0 %v2694, 32
      %v2724 = vpop.permute.xlu0 %2723
      %2725 = vrot.lane.b32.xlu0 %v2695, 32
      %v2726 = vpop.permute.xlu0 %2725
      %2727 = vrot.lane.b32.xlu0 %v2696, 32
      %v2728 = vpop.permute.xlu0 %2727
      %2729 = vrot.lane.b32.xlu0 %v2697, 32
      %v2730 = vpop.permute.xlu0 %2729
      %2731 = vrot.lane.b32.xlu0 %v2698, 32
      %v2732 = vpop.permute.xlu0 %2731
      %2733 = vrot.lane.b32.xlu0 %v2699, 32
      %v2734 = vpop.permute.xlu0 %2733
      %2735 = vrot.lane.b32.xlu0 %v2700, 32
      %v2736 = vpop.permute.xlu0 %2735
      %2737 = vrot.lane.b32.xlu0 %v2701, 32
      %v2738 = vpop.permute.xlu0 %2737
      %2739 = vrot.lane.b32.xlu0 %v2702, 32
      %v2740 = vpop.permute.xlu0 %2739
      %2741 = vrot.lane.b32.xlu0 %v2703, 32
      %v2742 = vpop.permute.xlu0 %2741
      %2743 = vrot.lane.b32.xlu0 %v2704, 32
      %v2744 = vpop.permute.xlu0 %2743
      %2745 = vrot.lane.b32.xlu0 %v2705, 32
      %v2746 = vpop.permute.xlu0 %2745
      %2747 = vrot.lane.b32.xlu0 %v2706, 32
      %v2748 = vpop.permute.xlu0 %2747
      %v2749 = vsel %vm983, %v2722, %v2724
      %v2750 = vsel %vm983, %v2724, %v2726
      %v2751 = vsel %vm983, %v2726, %v2728
      %v2752 = vsel %vm983, %v2728, %v2730
      %v2753 = vsel %vm983, %v2730, %v2732
      %v2754 = vsel %vm983, %v2732, %v2734
      %v2755 = vsel %vm983, %v2736, %v2738
      %v2756 = vsel %vm983, %v2738, %v2740
      %v2757 = vsel %vm983, %v2740, %v2742
      %v2758 = vsel %vm983, %v2742, %v2744
      %v2759 = vsel %vm983, %v2744, %v2746
      %v2760 = vsel %vm983, %v2746, %v2748
      %2773 = vst [vmem:[#allocation5 + $0x120] sm:$0xff] %v2749
      %2774 = vst [vmem:[#allocation5 + $0x128] sm:$0xff] %v2750
      %2775 = vst [vmem:[#allocation5 + $0x130] sm:$0xff] %v2751
      %2776 = vst [vmem:[#allocation5 + $0x138] sm:$0xff] %v2752
      %2777 = vst [vmem:[#allocation5 + $0x140] sm:$0xff] %v2753
      %2778 = vst [vmem:[#allocation5 + $0x148] sm:$0xff] %v2754
      %2779 = vst [vmem:[#allocation5 + $0x150] sm:$0xff] %v2755
      %2780 = vst [vmem:[#allocation5 + $0x158] sm:$0xff] %v2756
      %2781 = vst [vmem:[#allocation5 + $0x160] sm:$0xff] %v2757
      %2782 = vst [vmem:[#allocation5 + $0x168] sm:$0xff] %v2758
      %2783 = vst [vmem:[#allocation5 + $0x170] sm:$0xff] %v2759
      %2784 = vst [vmem:[#allocation5 + $0x178] sm:$0xff] %v2760
      %v2785 = vld [vmem:[#allocation4] sm:$0xff]
      %v2786 = vld [vmem:[#allocation4 + $0x8] sm:$0xff]
      %v2787 = vld [vmem:[#allocation4 + $0x10] sm:$0xff]
      %v2788 = vld [vmem:[#allocation4 + $0x18] sm:$0xff]
      %v2789 = vld [vmem:[#allocation4 + $0x20] sm:$0xff]
      %v2790 = vld [vmem:[#allocation4 + $0x28] sm:$0xff]
      %v2791 = vld [vmem:[#allocation4 + $0x30] sm:$0xff]
      %v2792 = vld [vmem:[#allocation4 + $0x40] sm:$0xff]
      %v2793 = vld [vmem:[#allocation4 + $0x48] sm:$0xff]
      %v2794 = vld [vmem:[#allocation4 + $0x50] sm:$0xff]
      %v2795 = vld [vmem:[#allocation4 + $0x58] sm:$0xff]
      %v2796 = vld [vmem:[#allocation4 + $0x60] sm:$0xff]
      %v2797 = vld [vmem:[#allocation4 + $0x68] sm:$0xff]
      %v2798 = vld [vmem:[#allocation4 + $0x70] sm:$0xff]
      %2813 = vrot.lane.b32.xlu0 %v2785, 29
      %v2814 = vpop.permute.xlu0 %2813
      %2815 = vrot.lane.b32.xlu0 %v2786, 29
      %v2816 = vpop.permute.xlu0 %2815
      %2817 = vrot.lane.b32.xlu0 %v2787, 29
      %v2818 = vpop.permute.xlu0 %2817
      %2819 = vrot.lane.b32.xlu0 %v2788, 29
      %v2820 = vpop.permute.xlu0 %2819
      %2821 = vrot.lane.b32.xlu0 %v2789, 29
      %v2822 = vpop.permute.xlu0 %2821
      %2823 = vrot.lane.b32.xlu0 %v2790, 29
      %v2824 = vpop.permute.xlu0 %2823
      %2825 = vrot.lane.b32.xlu0 %v2791, 29
      %v2826 = vpop.permute.xlu0 %2825
      %2827 = vrot.lane.b32.xlu0 %v2792, 29
      %v2828 = vpop.permute.xlu0 %2827
      %2829 = vrot.lane.b32.xlu0 %v2793, 29
      %v2830 = vpop.permute.xlu0 %2829
      %2831 = vrot.lane.b32.xlu0 %v2794, 29
      %v2832 = vpop.permute.xlu0 %2831
      %2833 = vrot.lane.b32.xlu0 %v2795, 29
      %v2834 = vpop.permute.xlu0 %2833
      %2835 = vrot.lane.b32.xlu0 %v2796, 29
      %v2836 = vpop.permute.xlu0 %2835
      %2837 = vrot.lane.b32.xlu0 %v2797, 29
      %v2838 = vpop.permute.xlu0 %2837
      %2839 = vrot.lane.b32.xlu0 %v2798, 29
      %v2840 = vpop.permute.xlu0 %2839
      %v2841 = vsel %vm1187, %v2814, %v2816
      %v2842 = vsel %vm1187, %v2816, %v2818
      %v2843 = vsel %vm1187, %v2818, %v2820
      %v2844 = vsel %vm1187, %v2820, %v2822
      %v2845 = vsel %vm1187, %v2822, %v2824
      %v2846 = vsel %vm1187, %v2824, %v2826
      %v2847 = vsel %vm1187, %v2828, %v2830
      %v2848 = vsel %vm1187, %v2830, %v2832
      %v2849 = vsel %vm1187, %v2832, %v2834
      %v2850 = vsel %vm1187, %v2834, %v2836
      %v2851 = vsel %vm1187, %v2836, %v2838
      %v2852 = vsel %vm1187, %v2838, %v2840
      %2865 = vst [vmem:[#allocation5 + $0x180] sm:$0xff] %v2841
      %2866 = vst [vmem:[#allocation5 + $0x188] sm:$0xff] %v2842
      %2867 = vst [vmem:[#allocation5 + $0x190] sm:$0xff] %v2843
      %2868 = vst [vmem:[#allocation5 + $0x198] sm:$0xff] %v2844
      %2869 = vst [vmem:[#allocation5 + $0x1a0] sm:$0xff] %v2845
      %2870 = vst [vmem:[#allocation5 + $0x1a8] sm:$0xff] %v2846
      %2871 = vst [vmem:[#allocation5 + $0x1b0] sm:$0xff] %v2847
      %2872 = vst [vmem:[#allocation5 + $0x1b8] sm:$0xff] %v2848
      %2873 = vst [vmem:[#allocation5 + $0x1c0] sm:$0xff] %v2849
      %2874 = vst [vmem:[#allocation5 + $0x1c8] sm:$0xff] %v2850
      %2875 = vst [vmem:[#allocation5 + $0x1d0] sm:$0xff] %v2851
      %2876 = vst [vmem:[#allocation5 + $0x1d8] sm:$0xff] %v2852
      %v2877 = vld [vmem:[#allocation4] sm:$0xff]
      %v2878 = vld [vmem:[#allocation4 + $0x8] sm:$0xff]
      %v2879 = vld [vmem:[#allocation4 + $0x10] sm:$0xff]
      %v2880 = vld [vmem:[#allocation4 + $0x18] sm:$0xff]
      %v2881 = vld [vmem:[#allocation4 + $0x20] sm:$0xff]
      %v2882 = vld [vmem:[#allocation4 + $0x28] sm:$0xff]
      %v2883 = vld [vmem:[#allocation4 + $0x30] sm:$0xff]
      %v2884 = vld [vmem:[#allocation4 + $0x40] sm:$0xff]
      %v2885 = vld [vmem:[#allocation4 + $0x48] sm:$0xff]
      %v2886 = vld [vmem:[#allocation4 + $0x50] sm:$0xff]
      %v2887 = vld [vmem:[#allocation4 + $0x58] sm:$0xff]
      %v2888 = vld [vmem:[#allocation4 + $0x60] sm:$0xff]
      %v2889 = vld [vmem:[#allocation4 + $0x68] sm:$0xff]
      %v2890 = vld [vmem:[#allocation4 + $0x70] sm:$0xff]
      %2905 = vrot.lane.b32.xlu0 %v2877, 26
      %v2906 = vpop.permute.xlu0 %2905
      %2907 = vrot.lane.b32.xlu0 %v2878, 26
      %v2908 = vpop.permute.xlu0 %2907
      %2909 = vrot.lane.b32.xlu0 %v2879, 26
      %v2910 = vpop.permute.xlu0 %2909
      %2911 = vrot.lane.b32.xlu0 %v2880, 26
      %v2912 = vpop.permute.xlu0 %2911
      %2913 = vrot.lane.b32.xlu0 %v2881, 26
      %v2914 = vpop.permute.xlu0 %2913
      %2915 = vrot.lane.b32.xlu0 %v2882, 26
      %v2916 = vpop.permute.xlu0 %2915
      %2917 = vrot.lane.b32.xlu0 %v2883, 26
      %v2918 = vpop.permute.xlu0 %2917
      %2919 = vrot.lane.b32.xlu0 %v2884, 26
      %v2920 = vpop.permute.xlu0 %2919
      %2921 = vrot.lane.b32.xlu0 %v2885, 26
      %v2922 = vpop.permute.xlu0 %2921
      %2923 = vrot.lane.b32.xlu0 %v2886, 26
      %v2924 = vpop.permute.xlu0 %2923
      %2925 = vrot.lane.b32.xlu0 %v2887, 26
      %v2926 = vpop.permute.xlu0 %2925
      %2927 = vrot.lane.b32.xlu0 %v2888, 26
      %v2928 = vpop.permute.xlu0 %2927
      %2929 = vrot.lane.b32.xlu0 %v2889, 26
      %v2930 = vpop.permute.xlu0 %2929
      %2931 = vrot.lane.b32.xlu0 %v2890, 26
      %v2932 = vpop.permute.xlu0 %2931
      %vm2933 = vcmask 211968
      %v2934 = vsel %vm2933, %v2906, %v2908
      %v2935 = vsel %vm2933, %v2908, %v2910
      %v2936 = vsel %vm2933, %v2910, %v2912
      %v2937 = vsel %vm2933, %v2912, %v2914
      %v2938 = vsel %vm2933, %v2914, %v2916
      %v2939 = vsel %vm2933, %v2916, %v2918
      %v2940 = vsel %vm2933, %v2920, %v2922
      %v2941 = vsel %vm2933, %v2922, %v2924
      %v2942 = vsel %vm2933, %v2924, %v2926
      %v2943 = vsel %vm2933, %v2926, %v2928
      %v2944 = vsel %vm2933, %v2928, %v2930
      %v2945 = vsel %vm2933, %v2930, %v2932
      %2958 = vst [vmem:[#allocation5 + $0x1e0] sm:$0xff] %v2934
      %2959 = vst [vmem:[#allocation5 + $0x1e8] sm:$0xff] %v2935
      %2960 = vst [vmem:[#allocation5 + $0x1f0] sm:$0xff] %v2936
      %2961 = vst [vmem:[#allocation5 + $0x1f8] sm:$0xff] %v2937
      %2962 = vst [vmem:[#allocation5 + $0x200] sm:$0xff] %v2938
      %2963 = vst [vmem:[#allocation5 + $0x208] sm:$0xff] %v2939
      %2964 = vst [vmem:[#allocation5 + $0x210] sm:$0xff] %v2940
      %2965 = vst [vmem:[#allocation5 + $0x218] sm:$0xff] %v2941
      %2966 = vst [vmem:[#allocation5 + $0x220] sm:$0xff] %v2942
      %2967 = vst [vmem:[#allocation5 + $0x228] sm:$0xff] %v2943
      %2968 = vst [vmem:[#allocation5 + $0x230] sm:$0xff] %v2944
      %2969 = vst [vmem:[#allocation5 + $0x238] sm:$0xff] %v2945
      %v2970 = vld [vmem:[#allocation4 + $0x8] sm:$0xff]
      %v2971 = vld [vmem:[#allocation4 + $0x10] sm:$0xff]
      %v2972 = vld [vmem:[#allocation4 + $0x18] sm:$0xff]
      %v2973 = vld [vmem:[#allocation4 + $0x20] sm:$0xff]
      %v2974 = vld [vmem:[#allocation4 + $0x28] sm:$0xff]
      %v2975 = vld [vmem:[#allocation4 + $0x30] sm:$0xff]
      %v2976 = vld [vmem:[#allocation4 + $0x38] sm:$0xff]
      %v2977 = vld [vmem:[#allocation4 + $0x48] sm:$0xff]
      %v2978 = vld [vmem:[#allocation4 + $0x50] sm:$0xff]
      %v2979 = vld [vmem:[#allocation4 + $0x58] sm:$0xff]
      %v2980 = vld [vmem:[#allocation4 + $0x60] sm:$0xff]
      %v2981 = vld [vmem:[#allocation4 + $0x68] sm:$0xff]
      %v2982 = vld [vmem:[#allocation4 + $0x70] sm:$0xff]
      %v2983 = vld [vmem:[#allocation4 + $0x78] sm:$0xff]
      %2998 = vrot.lane.b32.xlu0 %v2970, 64
      %v2999 = vpop.permute.xlu0 %2998
      %3000 = vrot.lane.b32.xlu0 %v2971, 64
      %v3001 = vpop.permute.xlu0 %3000
      %3002 = vrot.lane.b32.xlu0 %v2972, 64
      %v3003 = vpop.permute.xlu0 %3002
      %3004 = vrot.lane.b32.xlu0 %v2973, 64
      %v3005 = vpop.permute.xlu0 %3004
      %3006 = vrot.lane.b32.xlu0 %v2974, 64
      %v3007 = vpop.permute.xlu0 %3006
      %3008 = vrot.lane.b32.xlu0 %v2975, 64
      %v3009 = vpop.permute.xlu0 %3008
      %3010 = vrot.lane.b32.xlu0 %v2976, 64
      %v3011 = vpop.permute.xlu0 %3010
      %3012 = vrot.lane.b32.xlu0 %v2977, 64
      %v3013 = vpop.permute.xlu0 %3012
      %3014 = vrot.lane.b32.xlu0 %v2978, 64
      %v3015 = vpop.permute.xlu0 %3014
      %3016 = vrot.lane.b32.xlu0 %v2979, 64
      %v3017 = vpop.permute.xlu0 %3016
      %3018 = vrot.lane.b32.xlu0 %v2980, 64
      %v3019 = vpop.permute.xlu0 %3018
      %3020 = vrot.lane.b32.xlu0 %v2981, 64
      %v3021 = vpop.permute.xlu0 %3020
      %3022 = vrot.lane.b32.xlu0 %v2982, 64
      %v3023 = vpop.permute.xlu0 %3022
      %3024 = vrot.lane.b32.xlu0 %v2983, 64
      %v3025 = vpop.permute.xlu0 %3024
      %v3026 = vsel %vm711, %v2999, %v3001
      %v3027 = vsel %vm711, %v3001, %v3003
      %v3028 = vsel %vm711, %v3003, %v3005
      %v3029 = vsel %vm711, %v3005, %v3007
      %v3030 = vsel %vm711, %v3007, %v3009
      %v3031 = vsel %vm711, %v3009, %v3011
      %v3032 = vsel %vm711, %v3013, %v3015
      %v3033 = vsel %vm711, %v3015, %v3017
      %v3034 = vsel %vm711, %v3017, %v3019
      %v3035 = vsel %vm711, %v3019, %v3021
      %v3036 = vsel %vm711, %v3021, %v3023
      %v3037 = vsel %vm711, %v3023, %v3025
      %3050 = vst [vmem:[#allocation5 + $0x240] sm:$0xff] %v3026
      %3051 = vst [vmem:[#allocation5 + $0x248] sm:$0xff] %v3027
      %3052 = vst [vmem:[#allocation5 + $0x250] sm:$0xff] %v3028
      %3053 = vst [vmem:[#allocation5 + $0x258] sm:$0xff] %v3029
      %3054 = vst [vmem:[#allocation5 + $0x260] sm:$0xff] %v3030
      %3055 = vst [vmem:[#allocation5 + $0x268] sm:$0xff] %v3031
      %3056 = vst [vmem:[#allocation5 + $0x270] sm:$0xff] %v3032
      %3057 = vst [vmem:[#allocation5 + $0x278] sm:$0xff] %v3033
      %3058 = vst [vmem:[#allocation5 + $0x280] sm:$0xff] %v3034
      %3059 = vst [vmem:[#allocation5 + $0x288] sm:$0xff] %v3035
      %3060 = vst [vmem:[#allocation5 + $0x290] sm:$0xff] %v3036
      %3061 = vst [vmem:[#allocation5 + $0x298] sm:$0xff] %v3037
      %v3062 = vld [vmem:[#allocation4 + $0x8] sm:$0xff]
      %v3063 = vld [vmem:[#allocation4 + $0x10] sm:$0xff]
      %v3064 = vld [vmem:[#allocation4 + $0x18] sm:$0xff]
      %v3065 = vld [vmem:[#allocation4 + $0x20] sm:$0xff]
      %v3066 = vld [vmem:[#allocation4 + $0x28] sm:$0xff]
      %v3067 = vld [vmem:[#allocation4 + $0x30] sm:$0xff]
      %v3068 = vld [vmem:[#allocation4 + $0x38] sm:$0xff]
      %v3069 = vld [vmem:[#allocation4 + $0x48] sm:$0xff]
      %v3070 = vld [vmem:[#allocation4 + $0x50] sm:$0xff]
      %v3071 = vld [vmem:[#allocation4 + $0x58] sm:$0xff]
      %v3072 = vld [vmem:[#allocation4 + $0x60] sm:$0xff]
      %v3073 = vld [vmem:[#allocation4 + $0x68] sm:$0xff]
      %v3074 = vld [vmem:[#allocation4 + $0x70] sm:$0xff]
      %v3075 = vld [vmem:[#allocation4 + $0x78] sm:$0xff]
      %3090 = vrot.lane.b32.xlu0 %v3062, 61
      %v3091 = vpop.permute.xlu0 %3090
      %3092 = vrot.lane.b32.xlu0 %v3063, 61
      %v3093 = vpop.permute.xlu0 %3092
      %3094 = vrot.lane.b32.xlu0 %v3064, 61
      %v3095 = vpop.permute.xlu0 %3094
      %3096 = vrot.lane.b32.xlu0 %v3065, 61
      %v3097 = vpop.permute.xlu0 %3096
      %3098 = vrot.lane.b32.xlu0 %v3066, 61
      %v3099 = vpop.permute.xlu0 %3098
      %3100 = vrot.lane.b32.xlu0 %v3067, 61
      %v3101 = vpop.permute.xlu0 %3100
      %3102 = vrot.lane.b32.xlu0 %v3068, 61
      %v3103 = vpop.permute.xlu0 %3102
      %3104 = vrot.lane.b32.xlu0 %v3069, 61
      %v3105 = vpop.permute.xlu0 %3104
      %3106 = vrot.lane.b32.xlu0 %v3070, 61
      %v3107 = vpop.permute.xlu0 %3106
      %3108 = vrot.lane.b32.xlu0 %v3071, 61
      %v3109 = vpop.permute.xlu0 %3108
      %3110 = vrot.lane.b32.xlu0 %v3072, 61
      %v3111 = vpop.permute.xlu0 %3110
      %3112 = vrot.lane.b32.xlu0 %v3073, 61
      %v3113 = vpop.permute.xlu0 %3112
      %3114 = vrot.lane.b32.xlu0 %v3074, 61
      %v3115 = vpop.permute.xlu0 %3114
      %3116 = vrot.lane.b32.xlu0 %v3075, 61
      %v3117 = vpop.permute.xlu0 %3116
      %v3118 = vsel %vm915, %v3091, %v3093
      %v3119 = vsel %vm915, %v3093, %v3095
      %v3120 = vsel %vm915, %v3095, %v3097
      %v3121 = vsel %vm915, %v3097, %v3099
      %v3122 = vsel %vm915, %v3099, %v3101
      %v3123 = vsel %vm915, %v3101, %v3103
      %v3124 = vsel %vm915, %v3105, %v3107
      %v3125 = vsel %vm915, %v3107, %v3109
      %v3126 = vsel %vm915, %v3109, %v3111
      %v3127 = vsel %vm915, %v3111, %v3113
      %v3128 = vsel %vm915, %v3113, %v3115
      %v3129 = vsel %vm915, %v3115, %v3117
      %3142 = vst [vmem:[#allocation5 + $0x2a0] sm:$0xff] %v3118
      %3143 = vst [vmem:[#allocation5 + $0x2a8] sm:$0xff] %v3119
      %3144 = vst [vmem:[#allocation5 + $0x2b0] sm:$0xff] %v3120
      %3145 = vst [vmem:[#allocation5 + $0x2b8] sm:$0xff] %v3121
      %3146 = vst [vmem:[#allocation5 + $0x2c0] sm:$0xff] %v3122
      %3147 = vst [vmem:[#allocation5 + $0x2c8] sm:$0xff] %v3123
      %3148 = vst [vmem:[#allocation5 + $0x2d0] sm:$0xff] %v3124
      %3149 = vst [vmem:[#allocation5 + $0x2d8] sm:$0xff] %v3125
      %3150 = vst [vmem:[#allocation5 + $0x2e0] sm:$0xff] %v3126
      %3151 = vst [vmem:[#allocation5 + $0x2e8] sm:$0xff] %v3127
      %3152 = vst [vmem:[#allocation5 + $0x2f0] sm:$0xff] %v3128
      %3153 = vst [vmem:[#allocation5 + $0x2f8] sm:$0xff] %v3129
      %v3154 = vld [vmem:[#allocation4 + $0x8] sm:$0xff]
      %v3155 = vld [vmem:[#allocation4 + $0x10] sm:$0xff]
      %v3156 = vld [vmem:[#allocation4 + $0x18] sm:$0xff]
      %v3157 = vld [vmem:[#allocation4 + $0x20] sm:$0xff]
      %v3158 = vld [vmem:[#allocation4 + $0x28] sm:$0xff]
      %v3159 = vld [vmem:[#allocation4 + $0x30] sm:$0xff]
      %v3160 = vld [vmem:[#allocation4 + $0x38] sm:$0xff]
      %v3161 = vld [vmem:[#allocation4 + $0x48] sm:$0xff]
      %v3162 = vld [vmem:[#allocation4 + $0x50] sm:$0xff]
      %v3163 = vld [vmem:[#allocation4 + $0x58] sm:$0xff]
      %v3164 = vld [vmem:[#allocation4 + $0x60] sm:$0xff]
      %v3165 = vld [vmem:[#allocation4 + $0x68] sm:$0xff]
      %v3166 = vld [vmem:[#allocation4 + $0x70] sm:$0xff]
      %v3167 = vld [vmem:[#allocation4 + $0x78] sm:$0xff]
      %3182 = vrot.lane.b32.xlu0 %v3154, 58
      %v3183 = vpop.permute.xlu0 %3182
      %3184 = vrot.lane.b32.xlu0 %v3155, 58
      %v3185 = vpop.permute.xlu0 %3184
      %3186 = vrot.lane.b32.xlu0 %v3156, 58
      %v3187 = vpop.permute.xlu0 %3186
      %3188 = vrot.lane.b32.xlu0 %v3157, 58
      %v3189 = vpop.permute.xlu0 %3188
      %3190 = vrot.lane.b32.xlu0 %v3158, 58
      %v3191 = vpop.permute.xlu0 %3190
      %3192 = vrot.lane.b32.xlu0 %v3159, 58
      %v3193 = vpop.permute.xlu0 %3192
      %3194 = vrot.lane.b32.xlu0 %v3160, 58
      %v3195 = vpop.permute.xlu0 %3194
      %3196 = vrot.lane.b32.xlu0 %v3161, 58
      %v3197 = vpop.permute.xlu0 %3196
      %3198 = vrot.lane.b32.xlu0 %v3162, 58
      %v3199 = vpop.permute.xlu0 %3198
      %3200 = vrot.lane.b32.xlu0 %v3163, 58
      %v3201 = vpop.permute.xlu0 %3200
      %3202 = vrot.lane.b32.xlu0 %v3164, 58
      %v3203 = vpop.permute.xlu0 %3202
      %3204 = vrot.lane.b32.xlu0 %v3165, 58
      %v3205 = vpop.permute.xlu0 %3204
      %3206 = vrot.lane.b32.xlu0 %v3166, 58
      %v3207 = vpop.permute.xlu0 %3206
      %3208 = vrot.lane.b32.xlu0 %v3167, 58
      %v3209 = vpop.permute.xlu0 %3208
      %vm3210 = vcmask 474112
      %v3211 = vsel %vm3210, %v3183, %v3185
      %v3212 = vsel %vm3210, %v3185, %v3187
      %v3213 = vsel %vm3210, %v3187, %v3189
      %v3214 = vsel %vm3210, %v3189, %v3191
      %v3215 = vsel %vm3210, %v3191, %v3193
      %v3216 = vsel %vm3210, %v3193, %v3195
      %v3217 = vsel %vm3210, %v3197, %v3199
      %v3218 = vsel %vm3210, %v3199, %v3201
      %v3219 = vsel %vm3210, %v3201, %v3203
      %v3220 = vsel %vm3210, %v3203, %v3205
      %v3221 = vsel %vm3210, %v3205, %v3207
      %v3222 = vsel %vm3210, %v3207, %v3209
      %3235 = vst [vmem:[#allocation5 + $0x300] sm:$0xff] %v3211
      %3236 = vst [vmem:[#allocation5 + $0x308] sm:$0xff] %v3212
      %3237 = vst [vmem:[#allocation5 + $0x310] sm:$0xff] %v3213
      %3238 = vst [vmem:[#allocation5 + $0x318] sm:$0xff] %v3214
      %3239 = vst [vmem:[#allocation5 + $0x320] sm:$0xff] %v3215
      %3240 = vst [vmem:[#allocation5 + $0x328] sm:$0xff] %v3216
      %3241 = vst [vmem:[#allocation5 + $0x330] sm:$0xff] %v3217
      %3242 = vst [vmem:[#allocation5 + $0x338] sm:$0xff] %v3218
      %3243 = vst [vmem:[#allocation5 + $0x340] sm:$0xff] %v3219
      %3244 = vst [vmem:[#allocation5 + $0x348] sm:$0xff] %v3220
      %3245 = vst [vmem:[#allocation5 + $0x350] sm:$0xff] %v3221
      %3246 = vst [vmem:[#allocation5 + $0x358] sm:$0xff] %v3222
      %v3247 = vld [vmem:[#allocation5] sm:$0xff]
      %v3248 = vld [vmem:[#allocation5 + $0x8] sm:$0xff]
      %v3249 = vld [vmem:[#allocation5 + $0x10] sm:$0xff]
      %v3250 = vld [vmem:[#allocation5 + $0x18] sm:$0xff]
      %v3251 = vld [vmem:[#allocation5 + $0x20] sm:$0xff]
      %v3252 = vld [vmem:[#allocation5 + $0x28] sm:$0xff]
      %v3253 = vld [vmem:[#allocation5 + $0x30] sm:$0xff]
      %v3254 = vld [vmem:[#allocation5 + $0x38] sm:$0xff]
      %v3255 = vld [vmem:[#allocation5 + $0x40] sm:$0xff]
      %v3256 = vld [vmem:[#allocation5 + $0x48] sm:$0xff]
      %v3257 = vld [vmem:[#allocation5 + $0x50] sm:$0xff]
      %v3258 = vld [vmem:[#allocation5 + $0x58] sm:$0xff]
      %v3259 = vld [vmem:[#allocation5 + $0x60] sm:$0xff]
      %v3260 = vld [vmem:[#allocation5 + $0x68] sm:$0xff]
      %v3261 = vld [vmem:[#allocation5 + $0x70] sm:$0xff]
      %v3262 = vld [vmem:[#allocation5 + $0x78] sm:$0xff]
      %v3263 = vld [vmem:[#allocation5 + $0x80] sm:$0xff]
      %v3264 = vld [vmem:[#allocation5 + $0x88] sm:$0xff]
      %v3265 = vld [vmem:[#allocation5 + $0x90] sm:$0xff]
      %v3266 = vld [vmem:[#allocation5 + $0x98] sm:$0xff]
      %v3267 = vld [vmem:[#allocation5 + $0xa0] sm:$0xff]
      %v3268 = vld [vmem:[#allocation5 + $0xa8] sm:$0xff]
      %v3269 = vld [vmem:[#allocation5 + $0xb0] sm:$0xff]
      %v3270 = vld [vmem:[#allocation5 + $0xb8] sm:$0xff]
      %v3271 = vld [vmem:[#allocation5 + $0xc0] sm:$0xff]
      %v3272 = vld [vmem:[#allocation5 + $0xc8] sm:$0xff]
      %v3273 = vld [vmem:[#allocation5 + $0xd0] sm:$0xff]
      %v3274 = vld [vmem:[#allocation5 + $0xd8] sm:$0xff]
      %v3275 = vld [vmem:[#allocation5 + $0xe0] sm:$0xff]
      %v3276 = vld [vmem:[#allocation5 + $0xe8] sm:$0xff]
      %v3277 = vld [vmem:[#allocation5 + $0xf0] sm:$0xff]
      %v3278 = vld [vmem:[#allocation5 + $0xf8] sm:$0xff]
      %v3279 = vld [vmem:[#allocation5 + $0x100] sm:$0xff]
      %v3280 = vld [vmem:[#allocation5 + $0x108] sm:$0xff]
      %v3281 = vld [vmem:[#allocation5 + $0x110] sm:$0xff]
      %v3282 = vld [vmem:[#allocation5 + $0x118] sm:$0xff]
      %v3283 = vld [vmem:[#allocation5 + $0x120] sm:$0xff]
      %v3284 = vld [vmem:[#allocation5 + $0x128] sm:$0xff]
      %v3285 = vld [vmem:[#allocation5 + $0x130] sm:$0xff]
      %v3286 = vld [vmem:[#allocation5 + $0x138] sm:$0xff]
      %v3287 = vld [vmem:[#allocation5 + $0x140] sm:$0xff]
      %v3288 = vld [vmem:[#allocation5 + $0x148] sm:$0xff]
      %v3289 = vld [vmem:[#allocation5 + $0x150] sm:$0xff]
      %v3290 = vld [vmem:[#allocation5 + $0x158] sm:$0xff]
      %v3291 = vld [vmem:[#allocation5 + $0x160] sm:$0xff]
      %v3292 = vld [vmem:[#allocation5 + $0x168] sm:$0xff]
      %v3293 = vld [vmem:[#allocation5 + $0x170] sm:$0xff]
      %v3294 = vld [vmem:[#allocation5 + $0x178] sm:$0xff]
      %v3295 = vld [vmem:[#allocation5 + $0x180] sm:$0xff]
      %v3296 = vld [vmem:[#allocation5 + $0x188] sm:$0xff]
      %v3297 = vld [vmem:[#allocation5 + $0x190] sm:$0xff]
      %v3298 = vld [vmem:[#allocation5 + $0x198] sm:$0xff]
      %v3299 = vld [vmem:[#allocation5 + $0x1a0] sm:$0xff]
      %v3300 = vld [vmem:[#allocation5 + $0x1a8] sm:$0xff]
      %v3301 = vld [vmem:[#allocation5 + $0x1b0] sm:$0xff]
      %v3302 = vld [vmem:[#allocation5 + $0x1b8] sm:$0xff]
      %v3303 = vld [vmem:[#allocation5 + $0x1c0] sm:$0xff]
      %v3304 = vld [vmem:[#allocation5 + $0x1c8] sm:$0xff]
      %v3305 = vld [vmem:[#allocation5 + $0x1d0] sm:$0xff]
      %v3306 = vld [vmem:[#allocation5 + $0x1d8] sm:$0xff]
      %v3307 = vld [vmem:[#allocation5 + $0x1e0] sm:$0xff]
      %v3308 = vld [vmem:[#allocation5 + $0x1e8] sm:$0xff]
      %v3309 = vld [vmem:[#allocation5 + $0x1f0] sm:$0xff]
      %v3310 = vld [vmem:[#allocation5 + $0x1f8] sm:$0xff]
      %v3311 = vld [vmem:[#allocation5 + $0x200] sm:$0xff]
      %v3312 = vld [vmem:[#allocation5 + $0x208] sm:$0xff]
      %v3313 = vld [vmem:[#allocation5 + $0x210] sm:$0xff]
      %v3314 = vld [vmem:[#allocation5 + $0x218] sm:$0xff]
      %v3315 = vld [vmem:[#allocation5 + $0x220] sm:$0xff]
      %v3316 = vld [vmem:[#allocation5 + $0x228] sm:$0xff]
      %v3317 = vld [vmem:[#allocation5 + $0x230] sm:$0xff]
      %v3318 = vld [vmem:[#allocation5 + $0x238] sm:$0xff]
      %v3319 = vld [vmem:[#allocation5 + $0x240] sm:$0xff]
      %v3320 = vld [vmem:[#allocation5 + $0x248] sm:$0xff]
      %v3321 = vld [vmem:[#allocation5 + $0x250] sm:$0xff]
      %v3322 = vld [vmem:[#allocation5 + $0x258] sm:$0xff]
      %v3323 = vld [vmem:[#allocation5 + $0x260] sm:$0xff]
      %v3324 = vld [vmem:[#allocation5 + $0x268] sm:$0xff]
      %v3325 = vld [vmem:[#allocation5 + $0x270] sm:$0xff]
      %v3326 = vld [vmem:[#allocation5 + $0x278] sm:$0xff]
      %v3327 = vld [vmem:[#allocation5 + $0x280] sm:$0xff]
      %v3328 = vld [vmem:[#allocation5 + $0x288] sm:$0xff]
      %v3329 = vld [vmem:[#allocation5 + $0x290] sm:$0xff]
      %v3330 = vld [vmem:[#allocation5 + $0x298] sm:$0xff]
      %v3331 = vld [vmem:[#allocation5 + $0x2a0] sm:$0xff]
      %v3332 = vld [vmem:[#allocation5 + $0x2a8] sm:$0xff]
      %v3333 = vld [vmem:[#allocation5 + $0x2b0] sm:$0xff]
      %v3334 = vld [vmem:[#allocation5 + $0x2b8] sm:$0xff]
      %v3335 = vld [vmem:[#allocation5 + $0x2c0] sm:$0xff]
      %v3336 = vld [vmem:[#allocation5 + $0x2c8] sm:$0xff]
      %v3337 = vld [vmem:[#allocation5 + $0x2d0] sm:$0xff]
      %v3338 = vld [vmem:[#allocation5 + $0x2d8] sm:$0xff]
      %v3339 = vld [vmem:[#allocation5 + $0x2e0] sm:$0xff]
      %v3340 = vld [vmem:[#allocation5 + $0x2e8] sm:$0xff]
      %v3341 = vld [vmem:[#allocation5 + $0x2f0] sm:$0xff]
      %v3342 = vld [vmem:[#allocation5 + $0x2f8] sm:$0xff]
      %v3343 = vld [vmem:[#allocation5 + $0x300] sm:$0xff]
      %v3344 = vld [vmem:[#allocation5 + $0x308] sm:$0xff]
      %v3345 = vld [vmem:[#allocation5 + $0x310] sm:$0xff]
      %v3346 = vld [vmem:[#allocation5 + $0x318] sm:$0xff]
      %v3347 = vld [vmem:[#allocation5 + $0x320] sm:$0xff]
      %v3348 = vld [vmem:[#allocation5 + $0x328] sm:$0xff]
      %v3349 = vld [vmem:[#allocation5 + $0x330] sm:$0xff]
      %v3350 = vld [vmem:[#allocation5 + $0x338] sm:$0xff]
      %v3351 = vld [vmem:[#allocation5 + $0x340] sm:$0xff]
      %v3352 = vld [vmem:[#allocation5 + $0x348] sm:$0xff]
      %v3353 = vld [vmem:[#allocation5 + $0x350] sm:$0xff]
      %v3354 = vld [vmem:[#allocation5 + $0x358] sm:$0xff]
      %vm3355 = vcmask 130048
      %v3357 = vsel %vm3355, %v169, 0
      %v3360 = vsel %vm3355, %v171, 0
      %3362 = vmatprep.subr.mxu0 %v3248
      %3363 = vmatpush1.msra.mxu0 %v3247
      %3364 = vmatprep.subr.mxu0 %v3254
      %3365 = vmatpush1.msra.mxu0 %v3253
      %3366 = vmatprep.subr.mxu0 %v3260
      %3367 = vmatpush1.msra.mxu0 %v3259
      %3368 = vmatprep.subr.mxu0 %v3266
      %3369 = vmatpush1.msra.mxu0 %v3265
      %3370 = vmatprep.subr.mxu0 %v3272
      %3371 = vmatpush1.msra.mxu0 %v3271
      %3372 = vmatprep.subr.mxu0 %v3278
      %3373 = vmatpush1.msra.mxu0 %v3277
      %3374 = vmatprep.subr.mxu0 %v3284
      %3375 = vmatpush1.msra.mxu0 %v3283
      %3376 = vmatprep.subr.mxu0 %v3290
      %3377 = vmatpush1.msra.mxu0 %v3289
      %3378 = vmatprep.subr.mxu0 %v3296
      %3379 = vmatpush1.msra.mxu0 %v3295
      %3380 = vmatprep.subr.mxu0 %v3302
      %3381 = vmatpush1.msra.mxu0 %v3301
      %3382 = vmatprep.subr.mxu0 %v3308
      %3383 = vmatpush1.msra.mxu0 %v3307
      %3384 = vmatprep.subr.mxu0 %v3314
      %3385 = vmatpush1.msra.mxu0 %v3313
      %3386 = vmatprep.subr.mxu0 %v3320
      %3387 = vmatpush1.msra.mxu0 %v3319
      %3388 = vmatprep.subr.mxu0 %v3326
      %3389 = vmatpush1.msra.mxu0 %v3325
      %3390 = vmatprep.subr.mxu0 %v3332
      %3391 = vmatpush1.msra.mxu0 %v3331
      %3392 = vmatprep.subr.mxu0 %v3338
      %3393 = vmatpush1.msra.mxu0 %v3337
      %3394 = vmatprep.subr.mxu0 %v3344
      %3395 = vmatpush1.msra.mxu0 %v3343
      %3396 = vmatprep.subr.mxu0 %v3350
      %3397 = vmatpush1.msra.mxu0 %v3349
      %3398 = vmatprep.subr.mxu0 0.0
      %3399 = vmatpush1.msra.mxu0 0.0
      %3400 = vmatprep.subr.mxu0 0.0
      %3401 = vmatpush1.msra.mxu0 0.0
      %3402 = vmatprep.subr.mxu0 0.0
      %3403 = vmatpush1.msra.mxu0 0.0
      %3404 = vmatprep.subr.mxu0 0.0
      %3405 = vmatpush1.msra.mxu0 0.0
      %3406 = vmatprep.subr.mxu0 0.0
      %3407 = vmatpush1.msra.mxu0 0.0
      %3408 = vmatprep.subr.mxu0 0.0
      %3409 = vmatpush1.msra.mxu0 0.0
      %3410 = vmatprep.subr.mxu0 0.0
      %3411 = vmatpush1.msra.mxu0 0.0
      %3412 = vmatprep.subr.mxu0 0.0
      %3413 = vmatpush1.msra.mxu0 0.0
      %3414 = vmatprep.subr.mxu0 0.0
      %3415 = vmatpush1.msra.mxu0 0.0
      %3416 = vmatprep.subr.mxu0 0.0
      %3417 = vmatpush1.msra.mxu0 0.0
      %3418 = vmatprep.subr.mxu0 0.0
      %3419 = vmatpush1.msra.mxu0 0.0
      %3420 = vmatprep.subr.mxu0 0.0
      %3421 = vmatpush1.msra.mxu0 0.0
      %3422 = vmatprep.subr.mxu0 0.0
      %3423 = vmatpush1.msra.mxu0 0.0
      %3424 = vmatprep.subr.mxu0 0.0
      %3425 = vmatpush1.msra.mxu0 0.0
      %3426 = vmatprep.mubr.f32.mxu0 %v3357
      %3427 = vmatmul.mubr.f32.gmra.mrb[0].mxu0 %v168
      %v3428 = vpop.f32.mrb[0].mxu0
      %v3429 = vadd.f32 0.0, %v3428
      %v3430 = vpop.f32.mrb[0].mxu0
      %v3431 = vadd.f32 0.0, %v3430
      %3432 = vmatprep.mubr.f32.mxu0 %v3360
      %3433 = vmatmul.mubr.f32.gmra.mrb[0].mxu0 %v170
      %v3434 = vpop.f32.mrb[0].mxu0
      %v3435 = vadd.f32 0.0, %v3434
      %v3436 = vpop.f32.mrb[0].mxu0
      %v3437 = vadd.f32 0.0, %v3436
      %3438 = vdwg.mxu0
      %3439 = vmatprep.subr.mxu0 %v3250
      %3440 = vmatpush1.msra.mxu0 %v3249
      %3441 = vmatprep.subr.mxu0 %v3256
      %3442 = vmatpush1.msra.mxu0 %v3255
      %3443 = vmatprep.subr.mxu0 %v3262
      %3444 = vmatpush1.msra.mxu0 %v3261
      %3445 = vmatprep.subr.mxu0 %v3268
      %3446 = vmatpush1.msra.mxu0 %v3267
      %3447 = vmatprep.subr.mxu0 %v3274
      %3448 = vmatpush1.msra.mxu0 %v3273
      %3449 = vmatprep.subr.mxu0 %v3280
      %3450 = vmatpush1.msra.mxu0 %v3279
      %3451 = vmatprep.subr.mxu0 %v3286
      %3452 = vmatpush1.msra.mxu0 %v3285
      %3453 = vmatprep.subr.mxu0 %v3292
      %3454 = vmatpush1.msra.mxu0 %v3291
      %3455 = vmatprep.subr.mxu0 %v3298
      %3456 = vmatpush1.msra.mxu0 %v3297
      %3457 = vmatprep.subr.mxu0 %v3304
      %3458 = vmatpush1.msra.mxu0 %v3303
      %3459 = vmatprep.subr.mxu0 %v3310
      %3460 = vmatpush1.msra.mxu0 %v3309
      %3461 = vmatprep.subr.mxu0 %v3316
      %3462 = vmatpush1.msra.mxu0 %v3315
      %3463 = vmatprep.subr.mxu0 %v3322
      %3464 = vmatpush1.msra.mxu0 %v3321
      %3465 = vmatprep.subr.mxu0 %v3328
      %3466 = vmatpush1.msra.mxu0 %v3327
      %3467 = vmatprep.subr.mxu0 %v3334
      %3468 = vmatpush1.msra.mxu0 %v3333
      %3469 = vmatprep.subr.mxu0 %v3340
      %3470 = vmatpush1.msra.mxu0 %v3339
      %3471 = vmatprep.subr.mxu0 %v3346
      %3472 = vmatpush1.msra.mxu0 %v3345
      %3473 = vmatprep.subr.mxu0 %v3352
      %3474 = vmatpush1.msra.mxu0 %v3351
      %3475 = vmatprep.subr.mxu0 0.0
      %3476 = vmatpush1.msra.mxu0 0.0
      %3477 = vmatprep.subr.mxu0 0.0
      %3478 = vmatpush1.msra.mxu0 0.0
      %3479 = vmatprep.subr.mxu0 0.0
      %3480 = vmatpush1.msra.mxu0 0.0
      %3481 = vmatprep.subr.mxu0 0.0
      %3482 = vmatpush1.msra.mxu0 0.0
      %3483 = vmatprep.subr.mxu0 0.0
      %3484 = vmatpush1.msra.mxu0 0.0
      %3485 = vmatprep.subr.mxu0 0.0
      %3486 = vmatpush1.msra.mxu0 0.0
      %3487 = vmatprep.subr.mxu0 0.0
      %3488 = vmatpush1.msra.mxu0 0.0
      %3489 = vmatprep.subr.mxu0 0.0
      %3490 = vmatpush1.msra.mxu0 0.0
      %3491 = vmatprep.subr.mxu0 0.0
      %3492 = vmatpush1.msra.mxu0 0.0
      %3493 = vmatprep.subr.mxu0 0.0
      %3494 = vmatpush1.msra.mxu0 0.0
      %3495 = vmatprep.subr.mxu0 0.0
      %3496 = vmatpush1.msra.mxu0 0.0
      %3497 = vmatprep.subr.mxu0 0.0
      %3498 = vmatpush1.msra.mxu0 0.0
      %3499 = vmatprep.subr.mxu0 0.0
      %3500 = vmatpush1.msra.mxu0 0.0
      %3501 = vmatprep.subr.mxu0 0.0
      %3502 = vmatpush1.msra.mxu0 0.0
      %3503 = vmatprep.mubr.f32.mxu0 %v3357
      %3504 = vmatmul.mubr.f32.gmra.mrb[0].mxu0 %v168
      %v3505 = vpop.f32.mrb[0].mxu0
      %v3506 = vadd.f32 0.0, %v3505
      %v3507 = vpop.f32.mrb[0].mxu0
      %v3508 = vadd.f32 0.0, %v3507
      %3509 = vmatprep.mubr.f32.mxu0 %v3360
      %3510 = vmatmul.mubr.f32.gmra.mrb[0].mxu0 %v170
      %v3511 = vpop.f32.mrb[0].mxu0
      %v3512 = vadd.f32 0.0, %v3511
      %v3513 = vpop.f32.mrb[0].mxu0
      %v3514 = vadd.f32 0.0, %v3513
      %3515 = vdwg.mxu0
      %3516 = vmatprep.subr.mxu0 %v3252
      %3517 = vmatpush1.msra.mxu0 %v3251
      %3518 = vmatprep.subr.mxu0 %v3258
      %3519 = vmatpush1.msra.mxu0 %v3257
      %3520 = vmatprep.subr.mxu0 %v3264
      %3521 = vmatpush1.msra.mxu0 %v3263
      %3522 = vmatprep.subr.mxu0 %v3270
      %3523 = vmatpush1.msra.mxu0 %v3269
      %3524 = vmatprep.subr.mxu0 %v3276
      %3525 = vmatpush1.msra.mxu0 %v3275
      %3526 = vmatprep.subr.mxu0 %v3282
      %3527 = vmatpush1.msra.mxu0 %v3281
      %3528 = vmatprep.subr.mxu0 %v3288
      %3529 = vmatpush1.msra.mxu0 %v3287
      %3530 = vmatprep.subr.mxu0 %v3294
      %3531 = vmatpush1.msra.mxu0 %v3293
      %3532 = vmatprep.subr.mxu0 %v3300
      %3533 = vmatpush1.msra.mxu0 %v3299
      %3534 = vmatprep.subr.mxu0 %v3306
      %3535 = vmatpush1.msra.mxu0 %v3305
      %3536 = vmatprep.subr.mxu0 %v3312
      %3537 = vmatpush1.msra.mxu0 %v3311
      %3538 = vmatprep.subr.mxu0 %v3318
      %3539 = vmatpush1.msra.mxu0 %v3317
      %3540 = vmatprep.subr.mxu0 %v3324
      %3541 = vmatpush1.msra.mxu0 %v3323
      %3542 = vmatprep.subr.mxu0 %v3330
      %3543 = vmatpush1.msra.mxu0 %v3329
      %3544 = vmatprep.subr.mxu0 %v3336
      %3545 = vmatpush1.msra.mxu0 %v3335
      %3546 = vmatprep.subr.mxu0 %v3342
      %3547 = vmatpush1.msra.mxu0 %v3341
      %3548 = vmatprep.subr.mxu0 %v3348
      %3549 = vmatpush1.msra.mxu0 %v3347
      %3550 = vmatprep.subr.mxu0 %v3354
      %3551 = vmatpush1.msra.mxu0 %v3353
      %3552 = vmatprep.subr.mxu0 0.0
      %3553 = vmatpush1.msra.mxu0 0.0
      %3554 = vmatprep.subr.mxu0 0.0
      %3555 = vmatpush1.msra.mxu0 0.0
      %3556 = vmatprep.subr.mxu0 0.0
      %3557 = vmatpush1.msra.mxu0 0.0
      %3558 = vmatprep.subr.mxu0 0.0
      %3559 = vmatpush1.msra.mxu0 0.0
      %3560 = vmatprep.subr.mxu0 0.0
      %3561 = vmatpush1.msra.mxu0 0.0
      %3562 = vmatprep.subr.mxu0 0.0
      %3563 = vmatpush1.msra.mxu0 0.0
      %3564 = vmatprep.subr.mxu0 0.0
      %3565 = vmatpush1.msra.mxu0 0.0
      %3566 = vmatprep.subr.mxu0 0.0
      %3567 = vmatpush1.msra.mxu0 0.0
      %3568 = vmatprep.subr.mxu0 0.0
      %3569 = vmatpush1.msra.mxu0 0.0
      %3570 = vmatprep.subr.mxu0 0.0
      %3571 = vmatpush1.msra.mxu0 0.0
      %3572 = vmatprep.subr.mxu0 0.0
      %3573 = vmatpush1.msra.mxu0 0.0
      %3574 = vmatprep.subr.mxu0 0.0
      %3575 = vmatpush1.msra.mxu0 0.0
      %3576 = vmatprep.subr.mxu0 0.0
      %3577 = vmatpush1.msra.mxu0 0.0
      %3578 = vmatprep.subr.mxu0 0.0
      %3579 = vmatpush1.msra.mxu0 0.0
      %3580 = vmatprep.mubr.f32.mxu0 %v3357
      %3581 = vmatmul.mubr.f32.gmra.mrb[0].mxu0 %v168
      %v3582 = vpop.f32.mrb[0].mxu0
      %v3583 = vadd.f32 0.0, %v3582
      %v3584 = vpop.f32.mrb[0].mxu0
      %v3585 = vadd.f32 0.0, %v3584
      %3586 = vmatprep.mubr.f32.mxu0 %v3360
      %3587 = vmatmul.mubr.f32.gmra.mrb[0].mxu0 %v170
      %v3588 = vpop.f32.mrb[0].mxu0
      %v3589 = vadd.f32 0.0, %v3588
      %v3590 = vpop.f32.mrb[0].mxu0
      %v3591 = vadd.f32 0.0, %v3590
      %3592 = vdwg.mxu0
      %3593 = vst [vmem:[#allocation6] sm:$0xff] %v3429
      %3594 = vst [vmem:[#allocation6 + $0x8] sm:$0xff] %v3431
      %3595 = vst [vmem:[#allocation6 + $0x10] sm:$0xff] %v3506
      %3596 = vst [vmem:[#allocation6 + $0x18] sm:$0xff] %v3508
      %3597 = vst [vmem:[#allocation6 + $0x20] sm:$0xff] %v3583
      %3598 = vst [vmem:[#allocation6 + $0x28] sm:$0xff] %v3585
      %3599 = vst [vmem:[#allocation6 + $0x30] sm:$0x3] %v3435
      %3600 = vst [vmem:[#allocation6 + $0x38] sm:$0x3] %v3437
      %3601 = vst [vmem:[#allocation6 + $0x40] sm:$0x3] %v3512
      %3602 = vst [vmem:[#allocation6 + $0x48] sm:$0x3] %v3514
      %3603 = vst [vmem:[#allocation6 + $0x50] sm:$0x3] %v3589
      %3604 = vst [vmem:[#allocation6 + $0x58] sm:$0x3] %v3591
      %v3605 = vld [vmem:[#allocation6] sm:$0xff]
      %v3606 = vld [vmem:[#allocation6 + $0x8] sm:$0xff]
      %v3607 = vld [vmem:[#allocation6 + $0x10] sm:$0xff]
      %v3608 = vld [vmem:[#allocation6 + $0x18] sm:$0xff]
      %v3609 = vld [vmem:[#allocation6 + $0x30] sm:$0x3]
      %v3610 = vld [vmem:[#allocation6 + $0x38] sm:$0x3]
      %v3611 = vld [vmem:[#allocation6 + $0x40] sm:$0x3]
      %v3612 = vld [vmem:[#allocation6 + $0x48] sm:$0x3]
      %v3613 = vld [vmem:[#allocation6 + $0x20] sm:$0xff]
      %v3614 = vld [vmem:[#allocation6 + $0x50] sm:$0x3]
      %3625 = vrot.lane.b32.xlu0 %v3605, 125
      %v3626 = vpop.permute.xlu0 %3625
      %3627 = vrot.lane.b32.xlu0 %v3606, 125
      %v3628 = vpop.permute.xlu0 %3627
      %3629 = vrot.lane.b32.xlu0 %v3607, 125
      %v3630 = vpop.permute.xlu0 %3629
      %3631 = vrot.lane.b32.xlu0 %v3608, 125
      %v3632 = vpop.permute.xlu0 %3631
      %3633 = vrot.lane.b32.xlu0 %v3613, 125
      %v3634 = vpop.permute.xlu0 %3633
      %3635 = vrot.lane.b32.xlu0 %v3609, 125
      %v3636 = vpop.permute.xlu0 %3635
      %3637 = vrot.lane.b32.xlu0 %v3610, 125
      %v3638 = vpop.permute.xlu0 %3637
      %3639 = vrot.lane.b32.xlu0 %v3611, 125
      %v3640 = vpop.permute.xlu0 %3639
      %3641 = vrot.lane.b32.xlu0 %v3612, 125
      %v3642 = vpop.permute.xlu0 %3641
      %3643 = vrot.lane.b32.xlu0 %v3614, 125
      %v3644 = vpop.permute.xlu0 %3643
      %v3645 = vsel %vm371, %v3626, %v3628
      %v3646 = vsel %vm371, %v3628, %v3630
      %v3647 = vsel %vm371, %v3630, %v3632
      %v3648 = vsel %vm371, %v3632, %v3634
      %v3649 = vsel %vm371, %v3636, %v3638
      %v3650 = vsel %vm371, %v3638, %v3640
      %v3651 = vsel %vm371, %v3640, %v3642
      %v3652 = vsel %vm371, %v3642, %v3644
      %v3661 = vmax.f32 %v3605, %v3645
      %v3662 = vmax.f32 %v3606, %v3646
      %v3663 = vmax.f32 %v3607, %v3647
      %v3664 = vmax.f32 %v3608, %v3648
      %v3665 = vmax.f32 %v3609, %v3649
      %v3666 = vmax.f32 %v3610, %v3650
      %v3667 = vmax.f32 %v3611, %v3651
      %v3668 = vmax.f32 %v3612, %v3652
      %3669 = vrot.lane.b32.xlu0 %v3605, 122
      %v3670 = vpop.permute.xlu0 %3669
      %3671 = vrot.lane.b32.xlu0 %v3606, 122
      %v3672 = vpop.permute.xlu0 %3671
      %3673 = vrot.lane.b32.xlu0 %v3607, 122
      %v3674 = vpop.permute.xlu0 %3673
      %3675 = vrot.lane.b32.xlu0 %v3608, 122
      %v3676 = vpop.permute.xlu0 %3675
      %3677 = vrot.lane.b32.xlu0 %v3613, 122
      %v3678 = vpop.permute.xlu0 %3677
      %3679 = vrot.lane.b32.xlu0 %v3609, 122
      %v3680 = vpop.permute.xlu0 %3679
      %3681 = vrot.lane.b32.xlu0 %v3610, 122
      %v3682 = vpop.permute.xlu0 %3681
      %3683 = vrot.lane.b32.xlu0 %v3611, 122
      %v3684 = vpop.permute.xlu0 %3683
      %3685 = vrot.lane.b32.xlu0 %v3612, 122
      %v3686 = vpop.permute.xlu0 %3685
      %3687 = vrot.lane.b32.xlu0 %v3614, 122
      %v3688 = vpop.permute.xlu0 %3687
      %v3689 = vsel %vm2656, %v3670, %v3672
      %v3690 = vsel %vm2656, %v3672, %v3674
      %v3691 = vsel %vm2656, %v3674, %v3676
      %v3692 = vsel %vm2656, %v3676, %v3678
      %v3693 = vsel %vm2656, %v3680, %v3682
      %v3694 = vsel %vm2656, %v3682, %v3684
      %v3695 = vsel %vm2656, %v3684, %v3686
      %v3696 = vsel %vm2656, %v3686, %v3688
      %v3705 = vmax.f32 %v3661, %v3689
      %v3706 = vmax.f32 %v3662, %v3690
      %v3707 = vmax.f32 %v3663, %v3691
      %v3708 = vmax.f32 %v3664, %v3692
      %v3709 = vmax.f32 %v3665, %v3693
      %v3710 = vmax.f32 %v3666, %v3694
      %v3711 = vmax.f32 %v3667, %v3695
      %v3712 = vmax.f32 %v3668, %v3696
      %3713 = vrot.lane.b32.xlu0 %v3605, 32
      %v3714 = vpop.permute.xlu0 %3713
      %3715 = vrot.lane.b32.xlu0 %v3606, 32
      %v3716 = vpop.permute.xlu0 %3715
      %3717 = vrot.lane.b32.xlu0 %v3607, 32
      %v3718 = vpop.permute.xlu0 %3717
      %3719 = vrot.lane.b32.xlu0 %v3608, 32
      %v3720 = vpop.permute.xlu0 %3719
      %3721 = vrot.lane.b32.xlu0 %v3613, 32
      %v3722 = vpop.permute.xlu0 %3721
      %3723 = vrot.lane.b32.xlu0 %v3609, 32
      %v3724 = vpop.permute.xlu0 %3723
      %3725 = vrot.lane.b32.xlu0 %v3610, 32
      %v3726 = vpop.permute.xlu0 %3725
      %3727 = vrot.lane.b32.xlu0 %v3611, 32
      %v3728 = vpop.permute.xlu0 %3727
      %3729 = vrot.lane.b32.xlu0 %v3612, 32
      %v3730 = vpop.permute.xlu0 %3729
      %3731 = vrot.lane.b32.xlu0 %v3614, 32
      %v3732 = vpop.permute.xlu0 %3731
      %v3733 = vsel %vm983, %v3714, %v3716
      %v3734 = vsel %vm983, %v3716, %v3718
      %v3735 = vsel %vm983, %v3718, %v3720
      %v3736 = vsel %vm983, %v3720, %v3722
      %v3737 = vsel %vm983, %v3724, %v3726
      %v3738 = vsel %vm983, %v3726, %v3728
      %v3739 = vsel %vm983, %v3728, %v3730
      %v3740 = vsel %vm983, %v3730, %v3732
      %v3749 = vmax.f32 %v3705, %v3733
      %v3750 = vmax.f32 %v3706, %v3734
      %v3751 = vmax.f32 %v3707, %v3735
      %v3752 = vmax.f32 %v3708, %v3736
      %v3753 = vmax.f32 %v3709, %v3737
      %v3754 = vmax.f32 %v3710, %v3738
      %v3755 = vmax.f32 %v3711, %v3739
      %v3756 = vmax.f32 %v3712, %v3740
      %3757 = vrot.lane.b32.xlu0 %v3605, 29
      %v3758 = vpop.permute.xlu0 %3757
      %3759 = vrot.lane.b32.xlu0 %v3606, 29
      %v3760 = vpop.permute.xlu0 %3759
      %3761 = vrot.lane.b32.xlu0 %v3607, 29
      %v3762 = vpop.permute.xlu0 %3761
      %3763 = vrot.lane.b32.xlu0 %v3608, 29
      %v3764 = vpop.permute.xlu0 %3763
      %3765 = vrot.lane.b32.xlu0 %v3613, 29
      %v3766 = vpop.permute.xlu0 %3765
      %3767 = vrot.lane.b32.xlu0 %v3609, 29
      %v3768 = vpop.permute.xlu0 %3767
      %3769 = vrot.lane.b32.xlu0 %v3610, 29
      %v3770 = vpop.permute.xlu0 %3769
      %3771 = vrot.lane.b32.xlu0 %v3611, 29
      %v3772 = vpop.permute.xlu0 %3771
      %3773 = vrot.lane.b32.xlu0 %v3612, 29
      %v3774 = vpop.permute.xlu0 %3773
      %3775 = vrot.lane.b32.xlu0 %v3614, 29
      %v3776 = vpop.permute.xlu0 %3775
      %v3777 = vsel %vm1187, %v3758, %v3760
      %v3778 = vsel %vm1187, %v3760, %v3762
      %v3779 = vsel %vm1187, %v3762, %v3764
      %v3780 = vsel %vm1187, %v3764, %v3766
      %v3781 = vsel %vm1187, %v3768, %v3770
      %v3782 = vsel %vm1187, %v3770, %v3772
      %v3783 = vsel %vm1187, %v3772, %v3774
      %v3784 = vsel %vm1187, %v3774, %v3776
      %v3793 = vmax.f32 %v3749, %v3777
      %v3794 = vmax.f32 %v3750, %v3778
      %v3795 = vmax.f32 %v3751, %v3779
      %v3796 = vmax.f32 %v3752, %v3780
      %v3797 = vmax.f32 %v3753, %v3781
      %v3798 = vmax.f32 %v3754, %v3782
      %v3799 = vmax.f32 %v3755, %v3783
      %v3800 = vmax.f32 %v3756, %v3784
      %3801 = vrot.lane.b32.xlu0 %v3605, 26
      %v3802 = vpop.permute.xlu0 %3801
      %3803 = vrot.lane.b32.xlu0 %v3606, 26
      %v3804 = vpop.permute.xlu0 %3803
      %3805 = vrot.lane.b32.xlu0 %v3607, 26
      %v3806 = vpop.permute.xlu0 %3805
      %3807 = vrot.lane.b32.xlu0 %v3608, 26
      %v3808 = vpop.permute.xlu0 %3807
      %3809 = vrot.lane.b32.xlu0 %v3613, 26
      %v3810 = vpop.permute.xlu0 %3809
      %3811 = vrot.lane.b32.xlu0 %v3609, 26
      %v3812 = vpop.permute.xlu0 %3811
      %3813 = vrot.lane.b32.xlu0 %v3610, 26
      %v3814 = vpop.permute.xlu0 %3813
      %3815 = vrot.lane.b32.xlu0 %v3611, 26
      %v3816 = vpop.permute.xlu0 %3815
      %3817 = vrot.lane.b32.xlu0 %v3612, 26
      %v3818 = vpop.permute.xlu0 %3817
      %3819 = vrot.lane.b32.xlu0 %v3614, 26
      %v3820 = vpop.permute.xlu0 %3819
      %v3821 = vsel %vm2933, %v3802, %v3804
      %v3822 = vsel %vm2933, %v3804, %v3806
      %v3823 = vsel %vm2933, %v3806, %v3808
      %v3824 = vsel %vm2933, %v3808, %v3810
      %v3825 = vsel %vm2933, %v3812, %v3814
      %v3826 = vsel %vm2933, %v3814, %v3816
      %v3827 = vsel %vm2933, %v3816, %v3818
      %v3828 = vsel %vm2933, %v3818, %v3820
      %v3837 = vmax.f32 %v3793, %v3821
      %v3838 = vmax.f32 %v3794, %v3822
      %v3839 = vmax.f32 %v3795, %v3823
      %v3840 = vmax.f32 %v3796, %v3824
      %v3841 = vmax.f32 %v3797, %v3825
      %v3842 = vmax.f32 %v3798, %v3826
      %v3843 = vmax.f32 %v3799, %v3827
      %v3844 = vmax.f32 %v3800, %v3828
      %v3845 = vld [vmem:[#allocation6 + $0x28] sm:$0xff]
      %v3846 = vld [vmem:[#allocation6 + $0x58] sm:$0x3]
      %3849 = vrot.lane.b32.xlu0 %v3606, 64
      %v3850 = vpop.permute.xlu0 %3849
      %3851 = vrot.lane.b32.xlu0 %v3607, 64
      %v3852 = vpop.permute.xlu0 %3851
      %3853 = vrot.lane.b32.xlu0 %v3608, 64
      %v3854 = vpop.permute.xlu0 %3853
      %3855 = vrot.lane.b32.xlu0 %v3613, 64
      %v3856 = vpop.permute.xlu0 %3855
      %3857 = vrot.lane.b32.xlu0 %v3845, 64
      %v3858 = vpop.permute.xlu0 %3857
      %3859 = vrot.lane.b32.xlu0 %v3610, 64
      %v3860 = vpop.permute.xlu0 %3859
      %3861 = vrot.lane.b32.xlu0 %v3611, 64
      %v3862 = vpop.permute.xlu0 %3861
      %3863 = vrot.lane.b32.xlu0 %v3612, 64
      %v3864 = vpop.permute.xlu0 %3863
      %3865 = vrot.lane.b32.xlu0 %v3614, 64
      %v3866 = vpop.permute.xlu0 %3865
      %3867 = vrot.lane.b32.xlu0 %v3846, 64
      %v3868 = vpop.permute.xlu0 %3867
      %v3869 = vsel %vm711, %v3850, %v3852
      %v3870 = vsel %vm711, %v3852, %v3854
      %v3871 = vsel %vm711, %v3854, %v3856
      %v3872 = vsel %vm711, %v3856, %v3858
      %v3873 = vsel %vm711, %v3860, %v3862
      %v3874 = vsel %vm711, %v3862, %v3864
      %v3875 = vsel %vm711, %v3864, %v3866
      %v3876 = vsel %vm711, %v3866, %v3868
      %v3885 = vmax.f32 %v3837, %v3869
      %v3886 = vmax.f32 %v3838, %v3870
      %v3887 = vmax.f32 %v3839, %v3871
      %v3888 = vmax.f32 %v3840, %v3872
      %v3889 = vmax.f32 %v3841, %v3873
      %v3890 = vmax.f32 %v3842, %v3874
      %v3891 = vmax.f32 %v3843, %v3875
      %v3892 = vmax.f32 %v3844, %v3876
      %3893 = vrot.lane.b32.xlu0 %v3606, 61
      %v3894 = vpop.permute.xlu0 %3893
      %3895 = vrot.lane.b32.xlu0 %v3607, 61
      %v3896 = vpop.permute.xlu0 %3895
      %3897 = vrot.lane.b32.xlu0 %v3608, 61
      %v3898 = vpop.permute.xlu0 %3897
      %3899 = vrot.lane.b32.xlu0 %v3613, 61
      %v3900 = vpop.permute.xlu0 %3899
      %3901 = vrot.lane.b32.xlu0 %v3845, 61
      %v3902 = vpop.permute.xlu0 %3901
      %3903 = vrot.lane.b32.xlu0 %v3610, 61
      %v3904 = vpop.permute.xlu0 %3903
      %3905 = vrot.lane.b32.xlu0 %v3611, 61
      %v3906 = vpop.permute.xlu0 %3905
      %3907 = vrot.lane.b32.xlu0 %v3612, 61
      %v3908 = vpop.permute.xlu0 %3907
      %3909 = vrot.lane.b32.xlu0 %v3614, 61
      %v3910 = vpop.permute.xlu0 %3909
      %3911 = vrot.lane.b32.xlu0 %v3846, 61
      %v3912 = vpop.permute.xlu0 %3911
      %v3913 = vsel %vm915, %v3894, %v3896
      %v3914 = vsel %vm915, %v3896, %v3898
      %v3915 = vsel %vm915, %v3898, %v3900
      %v3916 = vsel %vm915, %v3900, %v3902
      %v3917 = vsel %vm915, %v3904, %v3906
      %v3918 = vsel %vm915, %v3906, %v3908
      %v3919 = vsel %vm915, %v3908, %v3910
      %v3920 = vsel %vm915, %v3910, %v3912
      %v3929 = vmax.f32 %v3885, %v3913
      %v3930 = vmax.f32 %v3886, %v3914
      %v3931 = vmax.f32 %v3887, %v3915
      %v3932 = vmax.f32 %v3888, %v3916
      %v3933 = vmax.f32 %v3889, %v3917
      %v3934 = vmax.f32 %v3890, %v3918
      %v3935 = vmax.f32 %v3891, %v3919
      %v3936 = vmax.f32 %v3892, %v3920
      %3937 = vrot.lane.b32.xlu0 %v3606, 58
      %v3938 = vpop.permute.xlu0 %3937
      %3939 = vrot.lane.b32.xlu0 %v3607, 58
      %v3940 = vpop.permute.xlu0 %3939
      %3941 = vrot.lane.b32.xlu0 %v3608, 58
      %v3942 = vpop.permute.xlu0 %3941
      %3943 = vrot.lane.b32.xlu0 %v3613, 58
      %v3944 = vpop.permute.xlu0 %3943
      %3945 = vrot.lane.b32.xlu0 %v3845, 58
      %v3946 = vpop.permute.xlu0 %3945
      %3947 = vrot.lane.b32.xlu0 %v3610, 58
      %v3948 = vpop.permute.xlu0 %3947
      %3949 = vrot.lane.b32.xlu0 %v3611, 58
      %v3950 = vpop.permute.xlu0 %3949
      %3951 = vrot.lane.b32.xlu0 %v3612, 58
      %v3952 = vpop.permute.xlu0 %3951
      %3953 = vrot.lane.b32.xlu0 %v3614, 58
      %v3954 = vpop.permute.xlu0 %3953
      %3955 = vrot.lane.b32.xlu0 %v3846, 58
      %v3956 = vpop.permute.xlu0 %3955
      %v3957 = vsel %vm3210, %v3938, %v3940
      %v3958 = vsel %vm3210, %v3940, %v3942
      %v3959 = vsel %vm3210, %v3942, %v3944
      %v3960 = vsel %vm3210, %v3944, %v3946
      %v3961 = vsel %vm3210, %v3948, %v3950
      %v3962 = vsel %vm3210, %v3950, %v3952
      %v3963 = vsel %vm3210, %v3952, %v3954
      %v3964 = vsel %vm3210, %v3954, %v3956
      %v3973 = vmax.f32 %v3929, %v3957
      %v3974 = vmax.f32 %v3930, %v3958
      %v3975 = vmax.f32 %v3931, %v3959
      %v3976 = vmax.f32 %v3932, %v3960
      %v3977 = vmax.f32 %v3933, %v3961
      %v3978 = vmax.f32 %v3934, %v3962
      %v3979 = vmax.f32 %v3935, %v3963
      %v3980 = vmax.f32 %v3936, %v3964
      %3981 = vst [vmem:[#allocation7] sm:$0xff] %v3973
      %3982 = vst [vmem:[#allocation7 + $0x8] sm:$0xff] %v3974
      %3983 = vst [vmem:[#allocation7 + $0x10] sm:$0xff] %v3975
      %3984 = vst [vmem:[#allocation7 + $0x18] sm:$0xff] %v3976
      %3985 = vst [vmem:[#allocation7 + $0x20] sm:$0x3] %v3977
      %3986 = vst [vmem:[#allocation7 + $0x28] sm:$0x3] %v3978
      %3987 = vst [vmem:[#allocation7 + $0x30] sm:$0x3] %v3979
      %3988 = vst [vmem:[#allocation7 + $0x38] sm:$0x3] %v3980
      %v3989 = vld [vmem:[#allocation7] sm:$0xff]
      %v3990 = vld [vmem:[#allocation7 + $0x20] sm:$0xff]
      %3991 = vst [vmem:[#allocation8] sm:$0xff] %v3989
      %3992 = vst [vmem:[#allocation8 + $0x8] sm:$0xff] %v3990
      %v3993 = vld [vmem:[#allocation7] sm:$0xff]
      %v3994 = vld [vmem:[#allocation7 + $0x8] sm:$0xff]
      %v3995 = vld [vmem:[#allocation7 + $0x20] sm:$0xff]
      %v3996 = vld [vmem:[#allocation7 + $0x28] sm:$0xff]
      %4001 = vrot.lane.b32.xlu0 %v3993, 119
      %v4002 = vpop.permute.xlu0 %4001
      %4003 = vrot.lane.b32.xlu0 %v3994, 119
      %v4004 = vpop.permute.xlu0 %4003
      %4005 = vrot.lane.b32.xlu0 %v3995, 119
      %v4006 = vpop.permute.xlu0 %4005
      %4007 = vrot.lane.b32.xlu0 %v3996, 119
      %v4008 = vpop.permute.xlu0 %4007
      %vm4009 = vcmask 973824
      %v4010 = vsel %vm4009, %v4002, %v4004
      %v4011 = vsel %vm4009, %v4006, %v4008
      %4014 = vst [vmem:[#allocation8 + $0x10] sm:$0xff] %v4010
      %4015 = vst [vmem:[#allocation8 + $0x18] sm:$0xff] %v4011
      %v4016 = vld [vmem:[#allocation7 + $0x10] sm:$0xff]
      %v4017 = vld [vmem:[#allocation7 + $0x18] sm:$0xff]
      %v4018 = vld [vmem:[#allocation7 + $0x30] sm:$0xff]
      %v4019 = vld [vmem:[#allocation7 + $0x38] sm:$0xff]
      %4024 = vrot.lane.b32.xlu0 %v4016, 96
      %v4025 = vpop.permute.xlu0 %4024
      %4026 = vrot.lane.b32.xlu0 %v4017, 96
      %v4027 = vpop.permute.xlu0 %4026
      %4028 = vrot.lane.b32.xlu0 %v4018, 96
      %v4029 = vpop.permute.xlu0 %4028
      %4030 = vrot.lane.b32.xlu0 %v4019, 96
      %v4031 = vpop.permute.xlu0 %4030
      %v4032 = vsel %vm439, %v4025, %v4027
      %v4033 = vsel %vm439, %v4029, %v4031
      %4036 = vst [vmem:[#allocation8 + $0x20] sm:$0xff] %v4032
      %4037 = vst [vmem:[#allocation8 + $0x28] sm:$0xff] %v4033
      %v4038 = vld [vmem:[#allocation7 + $0x10] sm:$0xff]
      %v4039 = vld [vmem:[#allocation7 + $0x18] sm:$0xff]
      %v4040 = vld [vmem:[#allocation7 + $0x30] sm:$0xff]
      %v4041 = vld [vmem:[#allocation7 + $0x38] sm:$0xff]
      %4046 = vrot.lane.b32.xlu0 %v4038, 87
      %v4047 = vpop.permute.xlu0 %4046
      %4048 = vrot.lane.b32.xlu0 %v4039, 87
      %v4049 = vpop.permute.xlu0 %4048
      %4050 = vrot.lane.b32.xlu0 %v4040, 87
      %v4051 = vpop.permute.xlu0 %4050
      %4052 = vrot.lane.b32.xlu0 %v4041, 87
      %v4053 = vpop.permute.xlu0 %4052
      %vm4054 = vcmask 711680
      %v4055 = vsel %vm4054, %v4047, %v4049
      %v4056 = vsel %vm4054, %v4051, %v4053
      %4059 = vst [vmem:[#allocation8 + $0x30] sm:$0xff] %v4055
      %4060 = vst [vmem:[#allocation8 + $0x38] sm:$0xff] %v4056
      %v4061 = vld [vmem:[#allocation8] sm:$0xff]
      %v4062 = vld [vmem:[#allocation8 + $0x8] sm:$0xff]
      %v4063 = vld [vmem:[#allocation8 + $0x10] sm:$0xff]
      %v4064 = vld [vmem:[#allocation8 + $0x18] sm:$0xff]
      %v4065 = vld [vmem:[#allocation8 + $0x20] sm:$0xff]
      %v4066 = vld [vmem:[#allocation8 + $0x28] sm:$0xff]
      %v4067 = vld [vmem:[#allocation8 + $0x30] sm:$0xff]
      %v4068 = vld [vmem:[#allocation8 + $0x38] sm:$0xff]
      %v4070 = vsel %vm711, %v172, 0
      %v4073 = vsel %vm711, %v173, 0
      %v4076 = vsel %vm711, %v174, 0
      %4078 = vmatprep.subr.mxu0 0.0
      %4079 = vmatpush1.msra.mxu0 %v4061
      %4080 = vmatprep.subr.mxu0 0.0
      %4081 = vmatpush1.msra.mxu0 %v4062
      %4082 = vmatprep.subr.mxu0 0.0
      %4083 = vmatpush1.msra.mxu0 %v4063
      %4084 = vmatprep.subr.mxu0 0.0
      %4085 = vmatpush1.msra.mxu0 %v4064
      %4086 = vmatprep.subr.mxu0 0.0
      %4087 = vmatpush1.msra.mxu0 %v4065
      %4088 = vmatprep.subr.mxu0 0.0
      %4089 = vmatpush1.msra.mxu0 %v4066
      %4090 = vmatprep.subr.mxu0 0.0
      %4091 = vmatpush1.msra.mxu0 %v4067
      %4092 = vmatprep.subr.mxu0 0.0
      %4093 = vmatpush1.msra.mxu0 %v4068
      %4094 = vmatprep.subr.mxu0 0.0
      %4095 = vmatpush1.msra.mxu0 0.0
      %4096 = vmatprep.subr.mxu0 0.0
      %4097 = vmatpush1.msra.mxu0 0.0
      %4098 = vmatprep.subr.mxu0 0.0
      %4099 = vmatpush1.msra.mxu0 0.0
      %4100 = vmatprep.subr.mxu0 0.0
      %4101 = vmatpush1.msra.mxu0 0.0
      %4102 = vmatprep.subr.mxu0 0.0
      %4103 = vmatpush1.msra.mxu0 0.0
      %4104 = vmatprep.subr.mxu0 0.0
      %4105 = vmatpush1.msra.mxu0 0.0
      %4106 = vmatprep.subr.mxu0 0.0
      %4107 = vmatpush1.msra.mxu0 0.0
      %4108 = vmatprep.subr.mxu0 0.0
      %4109 = vmatpush1.msra.mxu0 0.0
      %4110 = vmatprep.subr.mxu0 0.0
      %4111 = vmatpush1.msra.mxu0 0.0
      %4112 = vmatprep.subr.mxu0 0.0
      %4113 = vmatpush1.msra.mxu0 0.0
      %4114 = vmatprep.subr.mxu0 0.0
      %4115 = vmatpush1.msra.mxu0 0.0
      %4116 = vmatprep.subr.mxu0 0.0
      %4117 = vmatpush1.msra.mxu0 0.0
      %4118 = vmatprep.subr.mxu0 0.0
      %4119 = vmatpush1.msra.mxu0 0.0
      %4120 = vmatprep.subr.mxu0 0.0
      %4121 = vmatpush1.msra.mxu0 0.0
      %4122 = vmatprep.subr.mxu0 0.0
      %4123 = vmatpush1.msra.mxu0 0.0
      %4124 = vmatprep.subr.mxu0 0.0
      %4125 = vmatpush1.msra.mxu0 0.0
      %4126 = vmatprep.subr.mxu0 0.0
      %4127 = vmatpush1.msra.mxu0 0.0
      %4128 = vmatprep.subr.mxu0 0.0
      %4129 = vmatpush1.msra.mxu0 0.0
      %4130 = vmatprep.subr.mxu0 0.0
      %4131 = vmatpush1.msra.mxu0 0.0
      %4132 = vmatprep.subr.mxu0 0.0
      %4133 = vmatpush1.msra.mxu0 0.0
      %4134 = vmatprep.subr.mxu0 0.0
      %4135 = vmatpush1.msra.mxu0 0.0
      %4136 = vmatprep.subr.mxu0 0.0
      %4137 = vmatpush1.msra.mxu0 0.0
      %4138 = vmatprep.subr.mxu0 0.0
      %4139 = vmatpush1.msra.mxu0 0.0
      %4140 = vmatprep.subr.mxu0 0.0
      %4141 = vmatpush1.msra.mxu0 0.0
      %4142 = vmatprep.mubr.f32.mxu0 0.0
      %4143 = vmatmul.mubr.f32.gmra.mrb[0].mxu0 %v4070
      %v4144 = vpop.f32.mrb[0].mxu0
      %v4145 = vadd.f32 0.0, %v4144
      %v4146 = vpop.f32.mrb[0].mxu0
      %4147 = vmatprep.mubr.f32.mxu0 0.0
      %4148 = vmatmul.mubr.f32.gmra.mrb[0].mxu0 %v4073
      %v4149 = vpop.f32.mrb[0].mxu0
      %v4150 = vadd.f32 0.0, %v4149
      %v4151 = vpop.f32.mrb[0].mxu0
      %4152 = vmatprep.mubr.f32.mxu0 0.0
      %4153 = vmatmul.mubr.f32.gmra.mrb[0].mxu0 %v4076
      %v4154 = vpop.f32.mrb[0].mxu0
      %v4155 = vadd.f32 0.0, %v4154
      %v4156 = vpop.f32.mrb[0].mxu0
      %4157 = vdwg.mxu0
      %v4158 = vmax.f32 %v4145, 0.0
      %v4159 = vmax.f32 %v4150, 0.0
      %v4160 = vmax.f32 %v4155, 0.0
      %4162 = vset.pattern.permute.xlu0 20
      %4163 = vperm.xlu0 %4162, %v175
      %v4164 = vpop.permute.xlu0 %4163
      %4166 = vset.pattern.permute.xlu0 20
      %4167 = vperm.xlu0 %4166, %v176
      %v4168 = vpop.permute.xlu0 %4167
      %vm4169 = vcmask 1043456
      %v4170 = vrot.slane %v175, 4
      %v4171 = vrot.slane %v176, 4
      %v4172 = vsel %vm4169, %v4170, %v4171
      %v4173 = vrot.slane %v4164, 4
      %v4174 = vrot.slane %v4168, 4
      %v4175 = vsel %vm4169, %v4173, %v4174
      %vm4178 = vcmask 162816
      %v4179 = vsel %vm4178, %v4172, 0
      %v4181 = vsel %vm4178, %v4171, 0
      %v4184 = vsel %vm4169, %v4160, 0
      %4186 = vmatprep.subr.mxu0 0.0
      %4187 = vmatpush1.msra.mxu0 %v4158
      %4188 = vmatprep.subr.mxu0 0.0
      %4189 = vmatpush1.msra.mxu0 %v4159
      %4190 = vmatprep.subr.mxu0 0.0
      %4191 = vmatpush1.msra.mxu0 %v4184
      %4192 = vmatprep.subr.mxu0 0.0
      %4193 = vmatpush1.msra.mxu0 0.0
      %4194 = vmatprep.subr.mxu0 0.0
      %4195 = vmatpush1.msra.mxu0 0.0
      %4196 = vmatprep.subr.mxu0 0.0
      %4197 = vmatpush1.msra.mxu0 0.0
      %4198 = vmatprep.subr.mxu0 0.0
      %4199 = vmatpush1.msra.mxu0 0.0
      %4200 = vmatprep.subr.mxu0 0.0
      %4201 = vmatpush1.msra.mxu0 0.0
      %4202 = vmatprep.subr.mxu0 0.0
      %4203 = vmatpush1.msra.mxu0 0.0
      %4204 = vmatprep.subr.mxu0 0.0
      %4205 = vmatpush1.msra.mxu0 0.0
      %4206 = vmatprep.subr.mxu0 0.0
      %4207 = vmatpush1.msra.mxu0 0.0
      %4208 = vmatprep.subr.mxu0 0.0
      %4209 = vmatpush1.msra.mxu0 0.0
      %4210 = vmatprep.subr.mxu0 0.0
      %4211 = vmatpush1.msra.mxu0 0.0
      %4212 = vmatprep.subr.mxu0 0.0
      %4213 = vmatpush1.msra.mxu0 0.0
      %4214 = vmatprep.subr.mxu0 0.0
      %4215 = vmatpush1.msra.mxu0 0.0
      %4216 = vmatprep.subr.mxu0 0.0
      %4217 = vmatpush1.msra.mxu0 0.0
      %4218 = vmatprep.subr.mxu0 0.0
      %4219 = vmatpush1.msra.mxu0 0.0
      %4220 = vmatprep.subr.mxu0 0.0
      %4221 = vmatpush1.msra.mxu0 0.0
      %4222 = vmatprep.subr.mxu0 0.0
      %4223 = vmatpush1.msra.mxu0 0.0
      %4224 = vmatprep.subr.mxu0 0.0
      %4225 = vmatpush1.msra.mxu0 0.0
      %4226 = vmatprep.subr.mxu0 0.0
      %4227 = vmatpush1.msra.mxu0 0.0
      %4228 = vmatprep.subr.mxu0 0.0
      %4229 = vmatpush1.msra.mxu0 0.0
      %4230 = vmatprep.subr.mxu0 0.0
      %4231 = vmatpush1.msra.mxu0 0.0
      %4232 = vmatprep.subr.mxu0 0.0
      %4233 = vmatpush1.msra.mxu0 0.0
      %4234 = vmatprep.subr.mxu0 0.0
      %4235 = vmatpush1.msra.mxu0 0.0
      %4236 = vmatprep.subr.mxu0 0.0
      %4237 = vmatpush1.msra.mxu0 0.0
      %4238 = vmatprep.subr.mxu0 0.0
      %4239 = vmatpush1.msra.mxu0 0.0
      %4240 = vmatprep.subr.mxu0 0.0
      %4241 = vmatpush1.msra.mxu0 0.0
      %4242 = vmatprep.subr.mxu0 0.0
      %4243 = vmatpush1.msra.mxu0 0.0
      %4244 = vmatprep.subr.mxu0 0.0
      %4245 = vmatpush1.msra.mxu0 0.0
      %4246 = vmatprep.subr.mxu0 0.0
      %4247 = vmatpush1.msra.mxu0 0.0
      %4248 = vmatprep.subr.mxu0 0.0
      %4249 = vmatpush1.msra.mxu0 0.0
      %4250 = vmatprep.mubr.f32.mxu0 0.0
      %4251 = vmatmul.mubr.f32.gmra.mrb[0].mxu0 %v4179
      %v4252 = vpop.f32.mrb[0].mxu0
      %v4253 = vadd.f32 %v4175, %v4252
      %v4254 = vpop.f32.mrb[0].mxu0
      %4255 = vmatprep.mubr.f32.mxu0 0.0
      %4256 = vmatmul.mubr.f32.gmra.mrb[0].mxu0 %v4181
      %v4257 = vpop.f32.mrb[0].mxu0
      %v4258 = vadd.f32 %v4174, %v4257
      %v4259 = vpop.f32.mrb[0].mxu0
      %4260 = vdwg.mxu0
      %4261 = vst [vmem:[%s143] sm:$0xff] %v4253
      %4262 = vst [vmem:[%s143 + $0x8] sm:$0x3] %v4258
      %p4263 = scmp.lt.s32.totalorder %s13, 1
      %s4264 = scalar_select %p4263, %s13, 1
      %s4265 = smul.addr %s4264, 2
      %s4266 = smul.addr %s4265, 8
      %s4267 = scalar_lea.vmem %s2, %s4266
      // Predicated region
      $region29: #{simple_cnn_forward.1} parent=27 // pred_check
        %p4268 = pneg %p78
      $region30: #{simple_cnn_forward.1} parent=27 // pred_check_branch
        %4270 = sbr.rel (%p4268) target = $region32
      $region31: #{simple_cnn_forward.1} parent=27 // pred_region
        _
      $region32: #{simple_cnn_forward.1} parent=27 // pred_fallthru
        _
    $region28: #{simple_cnn_forward.1} parent=5 // pred_fallthru
      _
    %p4271 = scmp.le.s32.totalorder 2, %s8
    // Predicated region
    $region33: #{simple_cnn_forward.1} parent=5 // pred_check
      %p4272 = pneg %p4271
    $region34: #{simple_cnn_forward.1} parent=5 // pred_check_branch
      %4274 = sbr.rel (%p4272) target = $region36
    $region35: #{simple_cnn_forward.1} parent=5 // pred_region
      %s4275 = ssub.s32 %s8, 2
      // Predicated region
      $region37: #{simple_cnn_forward.1} parent=35 // pred_check
        %p4276 = pneg %p84
      $region38: #{simple_cnn_forward.1} parent=35 // pred_check_branch
        %4278 = sbr.rel (%p4276) target = $region40
      $region39: #{simple_cnn_forward.1} parent=35 // pred_region
        %p4279 = scmp.lt.s32.totalorder %s14, 1
        %s4280 = scalar_select %p4279, %s14, 1
        %s4281 = smul.addr %s4280, 2
        %s4282 = smul.addr %s4281, 8
        %s4283 = scalar_lea.vmem %s2, %s4282
      $region40: #{simple_cnn_forward.1} parent=35 // pred_fallthru
        _
    $region36: #{simple_cnn_forward.1} parent=5 // pred_fallthru
      _
  $region6: #{simple_cnn_forward.1} parent=0 // loop_footer
    %s12 = sadd.s32 1, %s8
  $region7: #{simple_cnn_forward.1} parent=0 // loop_footer_branch
    %7 = sbr.rel target = $region3
  $region8: #{simple_cnn_forward.1} parent=0 // loop_exit
    _

</llo_original>
